<compile_context>
chip_gen: v6e
topology: v6e:2x2x1
jax: 0.10.0
libtpu: 0.0.40
codegen_flags: <defaults>
</compile_context>

<pallas_src>
import jax
import jax.numpy as jnp
from jax.experimental import pallas as pl
from jax.experimental.pallas import tpu as pltpu

EPS = 1e-5  # PyTorch InstanceNorm2d default eps


# ---------------------------------------------------------------------------
# In-kernel helpers (traced Python inside the Pallas kernel body)
# ---------------------------------------------------------------------------
def _fill_reflect_pad(pad_ref, x):
    """Write ReflectionPad2d(1) of x (H, W, C) into pad_ref (H+2, W+2, C)."""
    H, W, _ = x.shape
    # interior
    pad_ref[1:H + 1, 1:W + 1, :] = x
    # top / bottom rows (reflections of rows 1 and H-2)
    pad_ref[0:1, 1:W + 1, :] = x[1:2]
    pad_ref[H + 1:H + 2, 1:W + 1, :] = x[H - 2:H - 1]
    # left / right columns incl. corners (reflections of padded cols 2, W-1)
    pad_ref[:, 0:1, :] = pad_ref[:, 2:3, :]
    pad_ref[:, W + 1:W + 2, :] = pad_ref[:, W - 1:W, :]


def _conv3x3_mxu(pad_ref, w_ref):
    """Valid 3x3 conv of the padded image via 3 MXU matmuls (K = 3*Cin).

    pad_ref: Ref (H+2, W+2, Cin)   reflection-padded image (f32)
    w_ref:   Ref (3, 3*Cin, Cout)  tap-major weights: [dy, dx*Cin + c, o]
    returns  (H*W, Cout) f32 (no bias: it is cancelled by InstanceNorm)
    """
    Hp, Wp, Cin = pad_ref.shape
    H, W = Hp - 2, Wp - 2
    Cout = w_ref.shape[2]

    xp = pad_ref[...].astype(w_ref.dtype)                # (Hp, Wp, Cin)
    # im2col along W, built once per stage: (Hp, W, 3*Cin)
    xcat = jnp.concatenate(
        [xp[:, 0:W], xp[:, 1:W + 1], xp[:, 2:W + 2]], axis=-1)

    acc = jnp.zeros((H * W, Cout), jnp.float32)
    for dy in range(3):                                   # leading-axis slices
        lhs = xcat[dy:dy + H].reshape(H * W, 3 * Cin)
        acc = acc + jnp.dot(lhs, w_ref[dy],
                            preferred_element_type=jnp.float32)
    return acc


def _instance_norm_cols(y, inv_n):
    """InstanceNorm over rows of (H*W, C): per-channel, biased var, f32."""
    s = jnp.sum(y, axis=0, keepdims=True)                # (1, C)
    ss = jnp.sum(y * y, axis=0, keepdims=True)           # (1, C)
    mean = s * inv_n
    var = jnp.maximum(ss * inv_n - mean * mean, 0.0)     # clamp cancellation
    return (y - mean) * jax.lax.rsqrt(var + EPS)


# ---------------------------------------------------------------------------
# Fused kernel: conv1 -> IN -> ReLU -> conv2 -> IN -> +x, one batch per step
# ---------------------------------------------------------------------------
def _resblock_kernel(x_ref, w1_ref, w2_ref, o_ref, pad_ref):
    _, H, W, C = x_ref.shape
    x = x_ref[0]                                          # (H, W, C)
    inv_n = 1.0 / float(H * W)

    # Stage 1: ReflectionPad -> Conv (bias dropped) -> InstanceNorm -> ReLU
    _fill_reflect_pad(pad_ref, x)
    y = _conv3x3_mxu(pad_ref, w1_ref)                     # (H*W, C) f32
    y = _instance_norm_cols(y, inv_n)
    y = jnp.maximum(y, 0.0)

    # Stage 2: ReflectionPad -> Conv (bias dropped) -> InstanceNorm
    _fill_reflect_pad(pad_ref, y.reshape(H, W, C))        # scratch reused
    y = _conv3x3_mxu(pad_ref, w2_ref)
    y = _instance_norm_cols(y, inv_n)

    # Residual add
    o_ref[0] = x + y.reshape(H, W, C)


# ---------------------------------------------------------------------------
# Wrappers
# ---------------------------------------------------------------------------
def residual_block_nhwc(x_nhwc, w1, b1, w2, b2, *, mxu_bf16=False):
    """Channels-last entry point: x_nhwc (N, H, W, C) f32 -> (N, H, W, C).

    b1/b2 accepted for nn.Conv2d interface parity but unused: a bias added
    right before InstanceNorm2d(affine=False) is cancelled exactly by the
    mean subtraction (variance unchanged).
    """
    del b1, b2
    N, H, W, C = x_nhwc.shape
    mxu_dtype = jnp.bfloat16 if mxu_bf16 else jnp.float32
    # (Cout, Cin, 3, 3) -> (3, 3*Cin, Cout): index [dy, dx*Cin + c, o]
    w1r = jnp.transpose(w1, (2, 3, 1, 0)).reshape(3, 3 * C, C).astype(mxu_dtype)
    w2r = jnp.transpose(w2, (2, 3, 1, 0)).reshape(3, 3 * C, C).astype(mxu_dtype)

    img_spec = pl.BlockSpec((1, H, W, C), lambda b: (b, 0, 0, 0))
    w_spec = pl.BlockSpec((3, 3 * C, C), lambda b: (0, 0, 0))

    # Scoped-VMEM budget from actual residency: double-buffered in/out image
    # blocks, padded scratch, im2col patch (~3x image), accumulators, weights.
    img_bytes = H * W * C * 4
    w_bytes = 2 * 3 * 3 * C * C * jnp.dtype(mxu_dtype).itemsize
    vmem_limit = int(min(64 * 2**20,
                         max(32 * 2**20, 16 * img_bytes + w_bytes + (4 << 20))))

    return pl.pallas_call(
        _resblock_kernel,
        out_shape=jax.ShapeDtypeStruct((N, H, W, C), jnp.float32),
        grid=(N,),
        in_specs=[img_spec, w_spec, w_spec],
        out_specs=img_spec,
        scratch_shapes=[pltpu.VMEM((H + 2, W + 2, C), jnp.float32)],
        compiler_params=pltpu.CompilerParams(
            dimension_semantics=("parallel",),
            vmem_limit_bytes=vmem_limit),
    )(x_nhwc, w1r, w2r)


def residual_block(x, w1, b1, w2, b2, *, mxu_bf16=False):
    """PyTorch-layout wrapper. x: (N, C, H, W) f32; w*: (C, C, 3, 3); b*: (C,).

    For a stack of residual blocks, call residual_block_nhwc directly and keep
    activations in NHWC to avoid per-block HBM transposes.
    """
    x_nhwc = jnp.transpose(x, (0, 2, 3, 1))               # (N, H, W, C)
    out = residual_block_nhwc(x_nhwc, w1, b1, w2, b2, mxu_bf16=mxu_bf16)
    return jnp.transpose(out, (0, 3, 1, 2))               # back to NCHW


# ---------------------------------------------------------------------------
# Pure-JAX reference (mirrors the PyTorch forward exactly, biases included)
# ---------------------------------------------------------------------------
def _reflect_pad1(x):
    return jnp.pad(x, ((0, 0), (0, 0), (1, 1), (1, 1)), mode="reflect")


def _reference(x, w1, b1, w2, b2):
    def conv(xp, w, b):
        y = jax.lax.conv_general_dilated(
            xp, w, window_strides=(1, 1), padding="VALID",
            dimension_numbers=("NCHW", "OIHW", "NCHW"))
        return y + b[None, :, None, None]

    def inorm(y):
        m = jnp.mean(y, axis=(2, 3), keepdims=True)
        v = jnp.mean((y - m) ** 2, axis=(2, 3), keepdims=True)
        return (y - m) * jax.lax.rsqrt(v + EPS)

    y = conv(_reflect_pad1(x), w1, b1)
    y = jnp.maximum(inorm(y), 0.0)
    y = conv(_reflect_pad1(y), w2, b2)
    y = inorm(y)
    return x + y


if __name__ == "__main__":
    N, C, H, W = 2, 4, 16, 16
    key = jax.random.PRNGKey(0)
    kx, k1, k2, k3, k4 = jax.random.split(key, 5)

    x = jax.random.normal(kx, (N, C, H, W), jnp.float32)
    fan_in = C * 3 * 3
    bound = 1.0 / (fan_in ** 0.5)
    w1 = jax.random.uniform(k1, (C, C, 3, 3), jnp.float32, -bound, bound)
    b1 = jax.random.uniform(k2, (C,), jnp.float32, -bound, bound)
    w2 = jax.random.uniform(k3, (C, C, 3, 3), jnp.float32, -bound, bound)
    b2 = jax.random.uniform(k4, (C,), jnp.float32, -bound, bound)

    out = jax.jit(residual_block)(x, w1, b1, w2, b2)
    out = jax.block_until_ready(out)

    ref = _reference(x, w1, b1, w2, b2)
    assert out.shape == (N, C, H, W) and out.dtype == jnp.float32
    max_err = float(jnp.max(jnp.abs(out - ref)))
    assert max_err < 1e-4, f"mismatch vs reference: {max_err}"
    print("KERNEL_OK")
</pallas_src>

<mosaic_0001>
module attributes {stable_mosaic.version = 11 : i64} {
  func.func @_resblock_kernel(%arg0: i32, %arg1: memref<1x16x16x4xf32, #tpu.memory_space<vmem>>, %arg2: memref<3x12x4xf32, #tpu.memory_space<vmem>>, %arg3: memref<3x12x4xf32, #tpu.memory_space<vmem>>, %arg4: memref<1x16x16x4xf32, #tpu.memory_space<vmem>>, %arg5: memref<18x18x4xf32, #tpu.memory_space<vmem>>) attributes {dimension_semantics = [#tpu.dimension_semantics<parallel>], iteration_bounds = array<i64: 2>, scalar_prefetch = 0 : i64, scratch_operands = 1 : i64, tpu.core_type = #tpu.core_type<tc>, window_params = [{transform_indices = @transform_0, window_bounds = array<i64: 1, 16, 16, 4>}, {pipeline_mode = #tpu.pipeline_mode<synchronous>, transform_indices = @transform_1, window_bounds = array<i64: 3, 12, 4>}, {pipeline_mode = #tpu.pipeline_mode<synchronous>, transform_indices = @transform_2, window_bounds = array<i64: 3, 12, 4>}, {transform_indices = @transform_3, window_bounds = array<i64: 1, 16, 16, 4>}]} {
    %c0 = arith.constant 0 : index
    %c0_0 = arith.constant 0 : index
    %c0_1 = arith.constant 0 : index
    %c0_2 = arith.constant 0 : index
    %0 = vector.load %arg1[%c0, %c0_0, %c0_1, %c0_2] : memref<1x16x16x4xf32, #tpu.memory_space<vmem>>, vector<1x16x16x4xf32>
    %1 = vector.shape_cast %0 : vector<1x16x16x4xf32> to vector<16x16x4xf32>
    %c1 = arith.constant 1 : index
    %c1_3 = arith.constant 1 : index
    %c0_4 = arith.constant 0 : index
    %2 = vector.load %arg5[%c1, %c1_3, %c0_4] : memref<18x18x4xf32, #tpu.memory_space<vmem>>, vector<16x16x4xf32>
    tpu.vector_store %arg5[%c1, %c1_3, %c0_4], %1 {strides = array<i32>} : memref<18x18x4xf32, #tpu.memory_space<vmem>>, vector<16x16x4xf32>,
    %3 = vector.extract_strided_slice %1 {offsets = [1, 0, 0], sizes = [1, 16, 4], strides = [1, 1, 1]} : vector<16x16x4xf32> to vector<1x16x4xf32>
    %c0_5 = arith.constant 0 : index
    %c1_6 = arith.constant 1 : index
    %c0_7 = arith.constant 0 : index
    %4 = vector.load %arg5[%c0_5, %c1_6, %c0_7] : memref<18x18x4xf32, #tpu.memory_space<vmem>>, vector<1x16x4xf32>
    tpu.vector_store %arg5[%c0_5, %c1_6, %c0_7], %3 {strides = array<i32>} : memref<18x18x4xf32, #tpu.memory_space<vmem>>, vector<1x16x4xf32>,
    %5 = vector.extract_strided_slice %1 {offsets = [14, 0, 0], sizes = [1, 16, 4], strides = [1, 1, 1]} : vector<16x16x4xf32> to vector<1x16x4xf32>
    %c17 = arith.constant 17 : index
    %c1_8 = arith.constant 1 : index
    %c0_9 = arith.constant 0 : index
    %6 = vector.load %arg5[%c17, %c1_8, %c0_9] : memref<18x18x4xf32, #tpu.memory_space<vmem>>, vector<1x16x4xf32>
    tpu.vector_store %arg5[%c17, %c1_8, %c0_9], %5 {strides = array<i32>} : memref<18x18x4xf32, #tpu.memory_space<vmem>>, vector<1x16x4xf32>,
    %c0_10 = arith.constant 0 : index
    %c2 = arith.constant 2 : index
    %c0_11 = arith.constant 0 : index
    %7 = vector.load %arg5[%c0_10, %c2, %c0_11] : memref<18x18x4xf32, #tpu.memory_space<vmem>>, vector<18x1x4xf32>
    %c0_12 = arith.constant 0 : index
    %c0_13 = arith.constant 0 : index
    %c0_14 = arith.constant 0 : index
    %8 = vector.load %arg5[%c0_12, %c0_13, %c0_14] : memref<18x18x4xf32, #tpu.memory_space<vmem>>, vector<18x1x4xf32>
    tpu.vector_store %arg5[%c0_12, %c0_13, %c0_14], %7 {strides = array<i32>} : memref<18x18x4xf32, #tpu.memory_space<vmem>>, vector<18x1x4xf32>,
    %c0_15 = arith.constant 0 : index
    %c15 = arith.constant 15 : index
    %c0_16 = arith.constant 0 : index
    %9 = vector.load %arg5[%c0_15, %c15, %c0_16] : memref<18x18x4xf32, #tpu.memory_space<vmem>>, vector<18x1x4xf32>
    %c0_17 = arith.constant 0 : index
    %c17_18 = arith.constant 17 : index
    %c0_19 = arith.constant 0 : index
    %10 = vector.load %arg5[%c0_17, %c17_18, %c0_19] : memref<18x18x4xf32, #tpu.memory_space<vmem>>, vector<18x1x4xf32>
    tpu.vector_store %arg5[%c0_17, %c17_18, %c0_19], %9 {strides = array<i32>} : memref<18x18x4xf32, #tpu.memory_space<vmem>>, vector<18x1x4xf32>,
    %c0_20 = arith.constant 0 : index
    %c0_21 = arith.constant 0 : index
    %c0_22 = arith.constant 0 : index
    %11 = vector.load %arg5[%c0_20, %c0_21, %c0_22] : memref<18x18x4xf32, #tpu.memory_space<vmem>>, vector<18x18x4xf32>
    %12 = vector.extract_strided_slice %11 {offsets = [0, 0, 0], sizes = [18, 16, 4], strides = [1, 1, 1]} : vector<18x18x4xf32> to vector<18x16x4xf32>
    %13 = vector.extract_strided_slice %11 {offsets = [0, 1, 0], sizes = [18, 16, 4], strides = [1, 1, 1]} : vector<18x18x4xf32> to vector<18x16x4xf32>
    %14 = vector.extract_strided_slice %11 {offsets = [0, 2, 0], sizes = [18, 16, 4], strides = [1, 1, 1]} : vector<18x18x4xf32> to vector<18x16x4xf32>
    %15 = tpu.concatenate %12, %13, %14 in 2 : vector<18x16x4xf32>, vector<18x16x4xf32>, vector<18x16x4xf32> -> vector<18x16x12xf32>
    %cst = arith.constant 0.000000e+00 : f32
    %16 = vector.broadcast %cst : f32 to vector<256x4xf32>
    %17 = vector.extract_strided_slice %15 {offsets = [0, 0, 0], sizes = [16, 16, 12], strides = [1, 1, 1]} : vector<18x16x12xf32> to vector<16x16x12xf32>
    %18 = vector.shape_cast %17 : vector<16x16x12xf32> to vector<256x12xf32>
    %c0_23 = arith.constant 0 : index
    %c0_24 = arith.constant 0 : index
    %c0_25 = arith.constant 0 : index
    %19 = vector.load %arg2[%c0_23, %c0_24, %c0_25] : memref<3x12x4xf32, #tpu.memory_space<vmem>>, vector<1x12x4xf32>
    %20 = vector.shape_cast %19 : vector<1x12x4xf32> to vector<12x4xf32>
    %cst_26 = arith.constant dense<0.000000e+00> : vector<256x4xf32>
    %21 = tpu.matmul %18, %20, %cst_26 {dimension_numbers = #tpu.dot_dimension_numbers<[1], [0], [0], [1], [0, 0, 1, 1], [], []>} : vector<256x12xf32>, vector<12x4xf32>, vector<256x4xf32> -> vector<256x4xf32>
    %22 = arith.addf %16, %21 : vector<256x4xf32>
    %23 = vector.extract_strided_slice %15 {offsets = [1, 0, 0], sizes = [16, 16, 12], strides = [1, 1, 1]} : vector<18x16x12xf32> to vector<16x16x12xf32>
    %24 = vector.shape_cast %23 : vector<16x16x12xf32> to vector<256x12xf32>
    %c1_27 = arith.constant 1 : index
    %c0_28 = arith.constant 0 : index
    %c0_29 = arith.constant 0 : index
    %25 = vector.load %arg2[%c1_27, %c0_28, %c0_29] : memref<3x12x4xf32, #tpu.memory_space<vmem>>, vector<1x12x4xf32>
    %26 = vector.shape_cast %25 : vector<1x12x4xf32> to vector<12x4xf32>
    %cst_30 = arith.constant dense<0.000000e+00> : vector<256x4xf32>
    %27 = tpu.matmul %24, %26, %cst_30 {dimension_numbers = #tpu.dot_dimension_numbers<[1], [0], [0], [1], [0, 0, 1, 1], [], []>} : vector<256x12xf32>, vector<12x4xf32>, vector<256x4xf32> -> vector<256x4xf32>
    %28 = arith.addf %22, %27 : vector<256x4xf32>
    %29 = vector.extract_strided_slice %15 {offsets = [2, 0, 0], sizes = [16, 16, 12], strides = [1, 1, 1]} : vector<18x16x12xf32> to vector<16x16x12xf32>
    %30 = vector.shape_cast %29 : vector<16x16x12xf32> to vector<256x12xf32>
    %c2_31 = arith.constant 2 : index
    %c0_32 = arith.constant 0 : index
    %c0_33 = arith.constant 0 : index
    %31 = vector.load %arg2[%c2_31, %c0_32, %c0_33] : memref<3x12x4xf32, #tpu.memory_space<vmem>>, vector<1x12x4xf32>
    %32 = vector.shape_cast %31 : vector<1x12x4xf32> to vector<12x4xf32>
    %cst_34 = arith.constant dense<0.000000e+00> : vector<256x4xf32>
    %33 = tpu.matmul %30, %32, %cst_34 {dimension_numbers = #tpu.dot_dimension_numbers<[1], [0], [0], [1], [0, 0, 1, 1], [], []>} : vector<256x12xf32>, vector<12x4xf32>, vector<256x4xf32> -> vector<256x4xf32>
    %34 = arith.addf %28, %33 : vector<256x4xf32>
    %cst_35 = arith.constant dense<0.000000e+00> : vector<4xf32>
    %35 = vector.multi_reduction <add>, %34, %cst_35 [0] : vector<256x4xf32> to vector<4xf32>
    %36 = vector.shape_cast %35 : vector<4xf32> to vector<1x4xf32>
    %37 = arith.mulf %34, %34 : vector<256x4xf32>
    %cst_36 = arith.constant dense<0.000000e+00> : vector<4xf32>
    %38 = vector.multi_reduction <add>, %37, %cst_36 [0] : vector<256x4xf32> to vector<4xf32>
    %39 = vector.shape_cast %38 : vector<4xf32> to vector<1x4xf32>
    %cst_37 = arith.constant 3.906250e-03 : f32
    %40 = vector.broadcast %cst_37 : f32 to vector<1x4xf32>
    %41 = arith.mulf %36, %40 : vector<1x4xf32>
    %cst_38 = arith.constant 3.906250e-03 : f32
    %42 = vector.broadcast %cst_38 : f32 to vector<1x4xf32>
    %43 = arith.mulf %39, %42 : vector<1x4xf32>
    %44 = arith.mulf %41, %41 : vector<1x4xf32>
    %45 = arith.subf %43, %44 : vector<1x4xf32>
    %cst_39 = arith.constant 0.000000e+00 : f32
    %46 = vector.broadcast %cst_39 : f32 to vector<1x4xf32>
    %47 = arith.maximumf %45, %46 : vector<1x4xf32>
    %48 = vector.broadcast %41 : vector<1x4xf32> to vector<256x4xf32>
    %49 = arith.subf %34, %48 : vector<256x4xf32>
    %cst_40 = arith.constant 9.99999974E-6 : f32
    %50 = vector.broadcast %cst_40 : f32 to vector<1x4xf32>
    %51 = arith.addf %47, %50 : vector<1x4xf32>
    %52 = math.rsqrt %51 : vector<1x4xf32>
    %53 = vector.broadcast %52 : vector<1x4xf32> to vector<256x4xf32>
    %54 = arith.mulf %49, %53 : vector<256x4xf32>
    %cst_41 = arith.constant 0.000000e+00 : f32
    %55 = vector.broadcast %cst_41 : f32 to vector<256x4xf32>
    %56 = arith.maximumf %54, %55 : vector<256x4xf32>
    %57 = vector.shape_cast %56 : vector<256x4xf32> to vector<16x16x4xf32>
    %c1_42 = arith.constant 1 : index
    %c1_43 = arith.constant 1 : index
    %c0_44 = arith.constant 0 : index
    %58 = vector.load %arg5[%c1_42, %c1_43, %c0_44] : memref<18x18x4xf32, #tpu.memory_space<vmem>>, vector<16x16x4xf32>
    tpu.vector_store %arg5[%c1_42, %c1_43, %c0_44], %57 {strides = array<i32>} : memref<18x18x4xf32, #tpu.memory_space<vmem>>, vector<16x16x4xf32>,
    %59 = vector.extract_strided_slice %57 {offsets = [1, 0, 0], sizes = [1, 16, 4], strides = [1, 1, 1]} : vector<16x16x4xf32> to vector<1x16x4xf32>
    %c0_45 = arith.constant 0 : index
    %c1_46 = arith.constant 1 : index
    %c0_47 = arith.constant 0 : index
    %60 = vector.load %arg5[%c0_45, %c1_46, %c0_47] : memref<18x18x4xf32, #tpu.memory_space<vmem>>, vector<1x16x4xf32>
    tpu.vector_store %arg5[%c0_45, %c1_46, %c0_47], %59 {strides = array<i32>} : memref<18x18x4xf32, #tpu.memory_space<vmem>>, vector<1x16x4xf32>,
    %61 = vector.extract_strided_slice %57 {offsets = [14, 0, 0], sizes = [1, 16, 4], strides = [1, 1, 1]} : vector<16x16x4xf32> to vector<1x16x4xf32>
    %c17_48 = arith.constant 17 : index
    %c1_49 = arith.constant 1 : index
    %c0_50 = arith.constant 0 : index
    %62 = vector.load %arg5[%c17_48, %c1_49, %c0_50] : memref<18x18x4xf32, #tpu.memory_space<vmem>>, vector<1x16x4xf32>
    tpu.vector_store %arg5[%c17_48, %c1_49, %c0_50], %61 {strides = array<i32>} : memref<18x18x4xf32, #tpu.memory_space<vmem>>, vector<1x16x4xf32>,
    %c0_51 = arith.constant 0 : index
    %c2_52 = arith.constant 2 : index
    %c0_53 = arith.constant 0 : index
    %63 = vector.load %arg5[%c0_51, %c2_52, %c0_53] : memref<18x18x4xf32, #tpu.memory_space<vmem>>, vector<18x1x4xf32>
    %c0_54 = arith.constant 0 : index
    %c0_55 = arith.constant 0 : index
    %c0_56 = arith.constant 0 : index
    %64 = vector.load %arg5[%c0_54, %c0_55, %c0_56] : memref<18x18x4xf32, #tpu.memory_space<vmem>>, vector<18x1x4xf32>
    tpu.vector_store %arg5[%c0_54, %c0_55, %c0_56], %63 {strides = array<i32>} : memref<18x18x4xf32, #tpu.memory_space<vmem>>, vector<18x1x4xf32>,
    %c0_57 = arith.constant 0 : index
    %c15_58 = arith.constant 15 : index
    %c0_59 = arith.constant 0 : index
    %65 = vector.load %arg5[%c0_57, %c15_58, %c0_59] : memref<18x18x4xf32, #tpu.memory_space<vmem>>, vector<18x1x4xf32>
    %c0_60 = arith.constant 0 : index
    %c17_61 = arith.constant 17 : index
    %c0_62 = arith.constant 0 : index
    %66 = vector.load %arg5[%c0_60, %c17_61, %c0_62] : memref<18x18x4xf32, #tpu.memory_space<vmem>>, vector<18x1x4xf32>
    tpu.vector_store %arg5[%c0_60, %c17_61, %c0_62], %65 {strides = array<i32>} : memref<18x18x4xf32, #tpu.memory_space<vmem>>, vector<18x1x4xf32>,
    %c0_63 = arith.constant 0 : index
    %c0_64 = arith.constant 0 : index
    %c0_65 = arith.constant 0 : index
    %67 = vector.load %arg5[%c0_63, %c0_64, %c0_65] : memref<18x18x4xf32, #tpu.memory_space<vmem>>, vector<18x18x4xf32>
    %68 = vector.extract_strided_slice %67 {offsets = [0, 0, 0], sizes = [18, 16, 4], strides = [1, 1, 1]} : vector<18x18x4xf32> to vector<18x16x4xf32>
    %69 = vector.extract_strided_slice %67 {offsets = [0, 1, 0], sizes = [18, 16, 4], strides = [1, 1, 1]} : vector<18x18x4xf32> to vector<18x16x4xf32>
    %70 = vector.extract_strided_slice %67 {offsets = [0, 2, 0], sizes = [18, 16, 4], strides = [1, 1, 1]} : vector<18x18x4xf32> to vector<18x16x4xf32>
    %71 = tpu.concatenate %68, %69, %70 in 2 : vector<18x16x4xf32>, vector<18x16x4xf32>, vector<18x16x4xf32> -> vector<18x16x12xf32>
    %cst_66 = arith.constant 0.000000e+00 : f32
    %72 = vector.broadcast %cst_66 : f32 to vector<256x4xf32>
    %73 = vector.extract_strided_slice %71 {offsets = [0, 0, 0], sizes = [16, 16, 12], strides = [1, 1, 1]} : vector<18x16x12xf32> to vector<16x16x12xf32>
    %74 = vector.shape_cast %73 : vector<16x16x12xf32> to vector<256x12xf32>
    %c0_67 = arith.constant 0 : index
    %c0_68 = arith.constant 0 : index
    %c0_69 = arith.constant 0 : index
    %75 = vector.load %arg3[%c0_67, %c0_68, %c0_69] : memref<3x12x4xf32, #tpu.memory_space<vmem>>, vector<1x12x4xf32>
    %76 = vector.shape_cast %75 : vector<1x12x4xf32> to vector<12x4xf32>
    %cst_70 = arith.constant dense<0.000000e+00> : vector<256x4xf32>
    %77 = tpu.matmul %74, %76, %cst_70 {dimension_numbers = #tpu.dot_dimension_numbers<[1], [0], [0], [1], [0, 0, 1, 1], [], []>} : vector<256x12xf32>, vector<12x4xf32>, vector<256x4xf32> -> vector<256x4xf32>
    %78 = arith.addf %72, %77 : vector<256x4xf32>
    %79 = vector.extract_strided_slice %71 {offsets = [1, 0, 0], sizes = [16, 16, 12], strides = [1, 1, 1]} : vector<18x16x12xf32> to vector<16x16x12xf32>
    %80 = vector.shape_cast %79 : vector<16x16x12xf32> to vector<256x12xf32>
    %c1_71 = arith.constant 1 : index
    %c0_72 = arith.constant 0 : index
    %c0_73 = arith.constant 0 : index
    %81 = vector.load %arg3[%c1_71, %c0_72, %c0_73] : memref<3x12x4xf32, #tpu.memory_space<vmem>>, vector<1x12x4xf32>
    %82 = vector.shape_cast %81 : vector<1x12x4xf32> to vector<12x4xf32>
    %cst_74 = arith.constant dense<0.000000e+00> : vector<256x4xf32>
    %83 = tpu.matmul %80, %82, %cst_74 {dimension_numbers = #tpu.dot_dimension_numbers<[1], [0], [0], [1], [0, 0, 1, 1], [], []>} : vector<256x12xf32>, vector<12x4xf32>, vector<256x4xf32> -> vector<256x4xf32>
    %84 = arith.addf %78, %83 : vector<256x4xf32>
    %85 = vector.extract_strided_slice %71 {offsets = [2, 0, 0], sizes = [16, 16, 12], strides = [1, 1, 1]} : vector<18x16x12xf32> to vector<16x16x12xf32>
    %86 = vector.shape_cast %85 : vector<16x16x12xf32> to vector<256x12xf32>
    %c2_75 = arith.constant 2 : index
    %c0_76 = arith.constant 0 : index
    %c0_77 = arith.constant 0 : index
    %87 = vector.load %arg3[%c2_75, %c0_76, %c0_77] : memref<3x12x4xf32, #tpu.memory_space<vmem>>, vector<1x12x4xf32>
    %88 = vector.shape_cast %87 : vector<1x12x4xf32> to vector<12x4xf32>
    %cst_78 = arith.constant dense<0.000000e+00> : vector<256x4xf32>
    %89 = tpu.matmul %86, %88, %cst_78 {dimension_numbers = #tpu.dot_dimension_numbers<[1], [0], [0], [1], [0, 0, 1, 1], [], []>} : vector<256x12xf32>, vector<12x4xf32>, vector<256x4xf32> -> vector<256x4xf32>
    %90 = arith.addf %84, %89 : vector<256x4xf32>
    %cst_79 = arith.constant dense<0.000000e+00> : vector<4xf32>
    %91 = vector.multi_reduction <add>, %90, %cst_79 [0] : vector<256x4xf32> to vector<4xf32>
    %92 = vector.shape_cast %91 : vector<4xf32> to vector<1x4xf32>
    %93 = arith.mulf %90, %90 : vector<256x4xf32>
    %cst_80 = arith.constant dense<0.000000e+00> : vector<4xf32>
    %94 = vector.multi_reduction <add>, %93, %cst_80 [0] : vector<256x4xf32> to vector<4xf32>
    %95 = vector.shape_cast %94 : vector<4xf32> to vector<1x4xf32>
    %cst_81 = arith.constant 3.906250e-03 : f32
    %96 = vector.broadcast %cst_81 : f32 to vector<1x4xf32>
    %97 = arith.mulf %92, %96 : vector<1x4xf32>
    %cst_82 = arith.constant 3.906250e-03 : f32
    %98 = vector.broadcast %cst_82 : f32 to vector<1x4xf32>
    %99 = arith.mulf %95, %98 : vector<1x4xf32>
    %100 = arith.mulf %97, %97 : vector<1x4xf32>
    %101 = arith.subf %99, %100 : vector<1x4xf32>
    %cst_83 = arith.constant 0.000000e+00 : f32
    %102 = vector.broadcast %cst_83 : f32 to vector<1x4xf32>
    %103 = arith.maximumf %101, %102 : vector<1x4xf32>
    %104 = vector.broadcast %97 : vector<1x4xf32> to vector<256x4xf32>
    %105 = arith.subf %90, %104 : vector<256x4xf32>
    %cst_84 = arith.constant 9.99999974E-6 : f32
    %106 = vector.broadcast %cst_84 : f32 to vector<1x4xf32>
    %107 = arith.addf %103, %106 : vector<1x4xf32>
    %108 = math.rsqrt %107 : vector<1x4xf32>
    %109 = vector.broadcast %108 : vector<1x4xf32> to vector<256x4xf32>
    %110 = arith.mulf %105, %109 : vector<256x4xf32>
    %111 = vector.shape_cast %110 : vector<256x4xf32> to vector<16x16x4xf32>
    %112 = arith.addf %1, %111 : vector<16x16x4xf32>
    %c0_85 = arith.constant 0 : index
    %c0_86 = arith.constant 0 : index
    %c0_87 = arith.constant 0 : index
    %c0_88 = arith.constant 0 : index
    %113 = vector.load %arg4[%c0_85, %c0_86, %c0_87, %c0_88] : memref<1x16x16x4xf32, #tpu.memory_space<vmem>>, vector<1x16x16x4xf32>
    %114 = vector.shape_cast %113 : vector<1x16x16x4xf32> to vector<16x16x4xf32>
    %115 = vector.shape_cast %112 : vector<16x16x4xf32> to vector<1x16x16x4xf32>
    tpu.vector_store %arg4[%c0_85, %c0_86, %c0_87, %c0_88], %115 {strides = array<i32>} : memref<1x16x16x4xf32, #tpu.memory_space<vmem>>, vector<1x16x16x4xf32>,
    return
  }
  func.func @transform_0(%arg0: i32) -> (i32, i32, i32, i32) {
    %c0_i32 = arith.constant 0 : i32
    %c0_i32_0 = arith.constant 0 : i32
    %c0_i32_1 = arith.constant 0 : i32
    %c0_i32_2 = arith.constant 0 : i32
    return %arg0, %c0_i32, %c0_i32_0, %c0_i32_1 : i32, i32, i32, i32
  }
  func.func @transform_1(%arg0: i32) -> (i32, i32, i32) {
    %c0_i32 = arith.constant 0 : i32
    %c0_i32_0 = arith.constant 0 : i32
    %c0_i32_1 = arith.constant 0 : i32
    %c0_i32_2 = arith.constant 0 : i32
    return %c0_i32, %c0_i32_0, %c0_i32_1 : i32, i32, i32
  }
  func.func @transform_2(%arg0: i32) -> (i32, i32, i32) {
    %c0_i32 = arith.constant 0 : i32
    %c0_i32_0 = arith.constant 0 : i32
    %c0_i32_1 = arith.constant 0 : i32
    %c0_i32_2 = arith.constant 0 : i32
    return %c0_i32, %c0_i32_0, %c0_i32_1 : i32, i32, i32
  }
  func.func @transform_3(%arg0: i32) -> (i32, i32, i32, i32) {
    %c0_i32 = arith.constant 0 : i32
    %c0_i32_0 = arith.constant 0 : i32
    %c0_i32_1 = arith.constant 0 : i32
    %c0_i32_2 = arith.constant 0 : i32
    return %arg0, %c0_i32, %c0_i32_0, %c0_i32_1 : i32, i32, i32, i32
  }
}

</mosaic_0001>

<llo_original>
// kernel: residual_block.1
$region0: #{residual_block.1}
  #allocation0 [shape = 'u32[]', space=smem, size = 0x4, offset = 0x4, fixed_abs, tag = 'smem constant byte address 0x4 - core index']
  #allocation1 [shape = 'u32[144,128]{1,0:T(1,128)}', space=vmem, size = 0x12000, scoped, tag = 'internal scratch']
  #allocation2 [shape = 'f32[18,18,4]{2,1,0:T(8,128)}', space=vmem, size = 0x36000, scoped, tag = 'scratch operand']
  %s0 = inlined_call_operand.vmem [shape: f32[2,16,16,4], index: 0, kind: input, shape index: {}]
  %s1 = inlined_call_operand.vmem [shape: f32[3,12,4], index: 1, kind: input, shape index: {}]
  %s2 = inlined_call_operand.vmem [shape: f32[3,12,4], index: 2, kind: input, shape index: {}]
  %s3 = inlined_call_operand.vmem [shape: f32[2,16,16,4], index: 3, kind: output, shape index: {}]
  %s4 = sld [smem:[#allocation0]]
  $region45: #{residual_block.1} parent=0
    _
  %s6 = ssub.s32 1, %s4
  %s7 = scalar_select 0, %s6, %s4
  loop: start=0, step=1, limit=4
  $region2: #{residual_block.1} parent=0 // loop_pre_header
    _
  $region3: #{residual_block.1} parent=0 // loop_header
    %s9 = sphi 0, %s13
    %p10 = scmp.ge.s32.totalorder %s9, 4
    %s19 = sphi 0, %s21
    %s22 = sphi 0, %s19
    %s23 = sphi 0, %s22
    %s39 = sphi 0, %s23
    %s43 = sphi 0, %s43
    %s45 = sphi 0, %s43
    %s46 = sphi 0, %s45
    %s60 = sphi 0, %s46
    %s64 = sphi 0, %s64
    %s66 = sphi 0, %s64
    %s67 = sphi 0, %s66
    %s81 = sphi 0, %s67
    %s87 = sphi 0, %s89
    %s90 = sphi 0, %s87
    %s91 = sphi 0, %s90
    %s107 = sphi 0, %s91
  $region4: #{residual_block.1} parent=0 // loop_header_branch
    %12 = sbr.rel (%p10) target = $region8
  $region5: #{residual_block.1} parent=0 // loop_body
    %s14 = ssub.s32 %s9, 1
    %s15 = ssub.s32 %s9, 2
    %s16 = sadd.s32 %s9, 1
    %s17 = ssub.s32 %s9, %s16
    %p18 = scmp.eq.s32.totalorder %s17, 0
    %s20 = sadd.s32 %s19, 1
    %s21 = scalar_select %p18, %s19, %s20
    %p24 = pneg %p18
    %p25 = scmp.eq.s32.totalorder %s9, 1
    %p26 = por %p24, %p25
    %p27 = scmp.ne.s32.totalorder %s19, %s22
    %p28 = scmp.eq.s32.totalorder %s9, 0
    %p29 = por %p27, %p28
    %p30 = scmp.ne.s32.totalorder %s19, %s22
    %p31 = scmp.eq.s32.totalorder %s14, 1
    %p32 = por %p30, %p31
    %p33 = scmp.ne.s32.totalorder %s22, %s23
    %p34 = scmp.eq.s32.totalorder %s14, 0
    %p35 = por %p33, %p34
    %p36 = scmp.ne.s32.totalorder %s22, %s23
    %p37 = scmp.eq.s32.totalorder %s15, 1
    %p38 = por %p36, %p37
    %p40 = scmp.ne.s32.totalorder %s23, %s39
    %p41 = scmp.eq.s32.totalorder %s15, 0
    %p42 = por %p40, %p41
    %s44 = sadd.s32 %s43, 1
    %p47 = scmp.eq.s32.totalorder %s9, 1
    %p48 = scmp.ne.s32.totalorder %s43, %s45
    %p49 = scmp.eq.s32.totalorder %s9, 0
    %p50 = por %p48, %p49
    %p51 = scmp.ne.s32.totalorder %s43, %s45
    %p52 = scmp.eq.s32.totalorder %s14, 1
    %p53 = por %p51, %p52
    %p54 = scmp.ne.s32.totalorder %s45, %s46
    %p55 = scmp.eq.s32.totalorder %s14, 0
    %p56 = por %p54, %p55
    %p57 = scmp.ne.s32.totalorder %s45, %s46
    %p58 = scmp.eq.s32.totalorder %s15, 1
    %p59 = por %p57, %p58
    %p61 = scmp.ne.s32.totalorder %s46, %s60
    %p62 = scmp.eq.s32.totalorder %s15, 0
    %p63 = por %p61, %p62
    %s65 = sadd.s32 %s64, 1
    %p68 = scmp.eq.s32.totalorder %s9, 1
    %p69 = scmp.ne.s32.totalorder %s64, %s66
    %p70 = scmp.eq.s32.totalorder %s9, 0
    %p71 = por %p69, %p70
    %p72 = scmp.ne.s32.totalorder %s64, %s66
    %p73 = scmp.eq.s32.totalorder %s14, 1
    %p74 = por %p72, %p73
    %p75 = scmp.ne.s32.totalorder %s66, %s67
    %p76 = scmp.eq.s32.totalorder %s14, 0
    %p77 = por %p75, %p76
    %p78 = scmp.ne.s32.totalorder %s66, %s67
    %p79 = scmp.eq.s32.totalorder %s15, 1
    %p80 = por %p78, %p79
    %p82 = scmp.ne.s32.totalorder %s67, %s81
    %p83 = scmp.eq.s32.totalorder %s15, 0
    %p84 = por %p82, %p83
    %s85 = ssub.s32 %s9, %s16
    %p86 = scmp.eq.s32.totalorder %s85, 0
    %s88 = sadd.s32 %s87, 1
    %s89 = scalar_select %p86, %s87, %s88
    %p92 = pneg %p86
    %p93 = scmp.eq.s32.totalorder %s9, 1
    %p94 = por %p92, %p93
    %p95 = scmp.ne.s32.totalorder %s87, %s90
    %p96 = scmp.eq.s32.totalorder %s9, 0
    %p97 = por %p95, %p96
    %p98 = scmp.ne.s32.totalorder %s87, %s90
    %p99 = scmp.eq.s32.totalorder %s14, 1
    %p100 = por %p98, %p99
    %p101 = scmp.ne.s32.totalorder %s90, %s91
    %p102 = scmp.eq.s32.totalorder %s14, 0
    %p103 = por %p101, %p102
    %p104 = scmp.ne.s32.totalorder %s90, %s91
    %p105 = scmp.eq.s32.totalorder %s15, 1
    %p106 = por %p104, %p105
    %p108 = scmp.ne.s32.totalorder %s91, %s107
    %p109 = scmp.eq.s32.totalorder %s15, 0
    %p110 = por %p108, %p109
    %p111 = scmp.le.s32.totalorder 1, %s9
    %p112 = scmp.lt.s32.totalorder %s9, 3
    %p113 = pnand %p111, %p112
    %p114 = pneg %p113
    // Predicated region
    $region9: #{residual_block.1} parent=5 // pred_check
      _
    $region10: #{residual_block.1} parent=5 // pred_check_branch
      %116 = sbr.rel (%p113) target = $region12
    $region11: #{residual_block.1} parent=5 // pred_region
      %s117 = ssub.s32 %s9, 1
      // Predicated region
      $region13: #{residual_block.1} parent=11 // pred_check
        %p118 = pneg %p56
      $region14: #{residual_block.1} parent=11 // pred_check_branch
        %120 = sbr.rel (%p118) target = $region16
      $region15: #{residual_block.1} parent=11 // pred_region
        _
      $region16: #{residual_block.1} parent=11 // pred_fallthru
        _
      // Predicated region
      $region17: #{residual_block.1} parent=11 // pred_check
        %p121 = pneg %p77
      $region18: #{residual_block.1} parent=11 // pred_check_branch
        %123 = sbr.rel (%p121) target = $region20
      $region19: #{residual_block.1} parent=11 // pred_region
        _
      $region20: #{residual_block.1} parent=11 // pred_fallthru
        _
    $region12: #{residual_block.1} parent=5 // pred_fallthru
      _
    %p124 = scmp.lt.s32.totalorder %s9, 2
    // Predicated region
    $region21: #{residual_block.1} parent=5 // pred_check
      %p125 = pneg %p124
    $region22: #{residual_block.1} parent=5 // pred_check_branch
      %127 = sbr.rel (%p125) target = $region24
    $region23: #{residual_block.1} parent=5 // pred_region
      // Predicated region
      $region25: #{residual_block.1} parent=23 // pred_check
        %p128 = pneg %p29
      $region26: #{residual_block.1} parent=23 // pred_check_branch
        %130 = sbr.rel (%p128) target = $region28
      $region27: #{residual_block.1} parent=23 // pred_region
        %p131 = scmp.lt.s32.totalorder %s9, 1
        %s132 = scalar_select %p131, %s9, 1
        %s133 = smul.addr %s132, 32
        %s134 = smul.addr %s133, 8
        %s135 = scalar_lea.vmem %s0, %s134
      $region28: #{residual_block.1} parent=23 // pred_fallthru
        _
    $region24: #{residual_block.1} parent=5 // pred_fallthru
      _
    %p136 = scmp.le.s32.totalorder 1, %s9
    %p137 = scmp.lt.s32.totalorder %s9, 3
    %p138 = pnand %p136, %p137
    %p139 = pneg %p138
    // Predicated region
    $region29: #{residual_block.1} parent=5 // pred_check
      _
    $region30: #{residual_block.1} parent=5 // pred_check_branch
      %141 = sbr.rel (%p138) target = $region32
    $region31: #{residual_block.1} parent=5 // pred_region
      %s142 = ssub.s32 %s9, 1
      %p143 = scmp.lt.s32.totalorder %s14, 1
      %s144 = scalar_select %p143, %s14, 1
      %s145 = smul.addr %s144, 32
      %s146 = smul.addr %s145, 8
      %s147 = scalar_lea.vmem %s0, %s146
      %p148 = pneg %p35
      %p149 = pneg %p32
      %p150 = pneg %p56
      %p151 = pneg %p53
      %p152 = pneg %p77
      %p153 = pneg %p74
      %p154 = pneg %p103
      %p155 = pneg %p100
      %p156 = scmp.lt.s32.totalorder %s14, 1
      %s157 = scalar_select %p156, %s14, 1
      %s158 = smul.addr %s157, 32
      %s159 = smul.addr %s158, 8
      %s160 = scalar_lea.vmem %s3, %s159
      %p161 = scmp.lt.s32.totalorder %s14, 1
      %s162 = scalar_select %p161, %s14, 1
      %s163 = smul.addr %s162, 32
      %s164 = smul.addr %s163, 8
      %s165 = scalar_lea.vmem %s0, %s164
      %p166 = scmp.lt.s32.totalorder %s14, 1
      %s167 = scalar_select %p166, %s14, 1
      %s168 = smul.addr %s167, 32
      %s169 = smul.addr %s168, 8
      %s170 = scalar_lea.vmem %s3, %s169
      %v171 = vld [vmem:[%s165] sm:$0xff]
      %v172 = vld [vmem:[%s165 + $0x8] sm:$0xff]
      %v173 = vld [vmem:[%s165 + $0x10] sm:$0xff]
      %v174 = vld [vmem:[%s165 + $0x18] sm:$0xff]
      %v175 = vld [vmem:[%s165 + $0x20] sm:$0xff]
      %v176 = vld [vmem:[%s165 + $0x28] sm:$0xff]
      %v177 = vld [vmem:[%s165 + $0x30] sm:$0xff]
      %v178 = vld [vmem:[%s165 + $0x38] sm:$0xff]
      %v179 = vld [vmem:[%s165 + $0x40] sm:$0xff]
      %v180 = vld [vmem:[%s165 + $0x48] sm:$0xff]
      %v181 = vld [vmem:[%s165 + $0x50] sm:$0xff]
      %v182 = vld [vmem:[%s165 + $0x58] sm:$0xff]
      %v183 = vld [vmem:[%s165 + $0x60] sm:$0xff]
      %v184 = vld [vmem:[%s165 + $0x68] sm:$0xff]
      %v185 = vld [vmem:[%s165 + $0x70] sm:$0xff]
      %v186 = vld [vmem:[%s165 + $0x78] sm:$0xff]
      %v187 = vld [vmem:[%s165 + $0x80] sm:$0xff]
      %v188 = vld [vmem:[%s165 + $0x88] sm:$0xff]
      %v189 = vld [vmem:[%s165 + $0x90] sm:$0xff]
      %v190 = vld [vmem:[%s165 + $0x98] sm:$0xff]
      %v191 = vld [vmem:[%s165 + $0xa0] sm:$0xff]
      %v192 = vld [vmem:[%s165 + $0xa8] sm:$0xff]
      %v193 = vld [vmem:[%s165 + $0xb0] sm:$0xff]
      %v194 = vld [vmem:[%s165 + $0xb8] sm:$0xff]
      %v195 = vld [vmem:[%s165 + $0xc0] sm:$0xff]
      %v196 = vld [vmem:[%s165 + $0xc8] sm:$0xff]
      %v197 = vld [vmem:[%s165 + $0xd0] sm:$0xff]
      %v198 = vld [vmem:[%s165 + $0xd8] sm:$0xff]
      %v199 = vld [vmem:[%s165 + $0xe0] sm:$0xff]
      %v200 = vld [vmem:[%s165 + $0xe8] sm:$0xff]
      %v201 = vld [vmem:[%s165 + $0xf0] sm:$0xff]
      %v202 = vld [vmem:[%s165 + $0xf8] sm:$0xff]
      %s203 = scalar_lea.vmem [#allocation2], 24
      %vm204 = vcmask 31744
      %205 = vst.msk [vmem:[%s203 + $0x1] sm:$0xff] %vm204, %v171
      %206 = vst.msk [vmem:[%s203 + $0x9] sm:$0xff] %vm204, %v172
      %207 = vst.msk [vmem:[%s203 + $0x19] sm:$0xff] %vm204, %v173
      %208 = vst.msk [vmem:[%s203 + $0x21] sm:$0xff] %vm204, %v174
      %209 = vst.msk [vmem:[%s203 + $0x31] sm:$0xff] %vm204, %v175
      %210 = vst.msk [vmem:[%s203 + $0x39] sm:$0xff] %vm204, %v176
      %211 = vst.msk [vmem:[%s203 + $0x49] sm:$0xff] %vm204, %v177
      %212 = vst.msk [vmem:[%s203 + $0x51] sm:$0xff] %vm204, %v178
      %213 = vst.msk [vmem:[%s203 + $0x61] sm:$0xff] %vm204, %v179
      %214 = vst.msk [vmem:[%s203 + $0x69] sm:$0xff] %vm204, %v180
      %215 = vst.msk [vmem:[%s203 + $0x79] sm:$0xff] %vm204, %v181
      %216 = vst.msk [vmem:[%s203 + $0x81] sm:$0xff] %vm204, %v182
      %217 = vst.msk [vmem:[%s203 + $0x91] sm:$0xff] %vm204, %v183
      %218 = vst.msk [vmem:[%s203 + $0x99] sm:$0xff] %vm204, %v184
      %219 = vst.msk [vmem:[%s203 + $0xa9] sm:$0xff] %vm204, %v185
      %220 = vst.msk [vmem:[%s203 + $0xb1] sm:$0xff] %vm204, %v186
      %221 = vst.msk [vmem:[%s203 + $0xc1] sm:$0xff] %vm204, %v187
      %222 = vst.msk [vmem:[%s203 + $0xc9] sm:$0xff] %vm204, %v188
      %223 = vst.msk [vmem:[%s203 + $0xd9] sm:$0xff] %vm204, %v189
      %224 = vst.msk [vmem:[%s203 + $0xe1] sm:$0xff] %vm204, %v190
      %225 = vst.msk [vmem:[%s203 + $0xf1] sm:$0xff] %vm204, %v191
      %226 = vst.msk [vmem:[%s203 + $0xf9] sm:$0xff] %vm204, %v192
      %227 = vst.msk [vmem:[%s203 + $0x109] sm:$0xff] %vm204, %v193
      %228 = vst.msk [vmem:[%s203 + $0x111] sm:$0xff] %vm204, %v194
      %229 = vst.msk [vmem:[%s203 + $0x121] sm:$0xff] %vm204, %v195
      %230 = vst.msk [vmem:[%s203 + $0x129] sm:$0xff] %vm204, %v196
      %231 = vst.msk [vmem:[%s203 + $0x139] sm:$0xff] %vm204, %v197
      %232 = vst.msk [vmem:[%s203 + $0x141] sm:$0xff] %vm204, %v198
      %233 = vst.msk [vmem:[%s203 + $0x151] sm:$0xff] %vm204, %v199
      %234 = vst.msk [vmem:[%s203 + $0x159] sm:$0xff] %vm204, %v200
      %235 = vst.msk [vmem:[%s203 + $0x169] sm:$0xff] %vm204, %v201
      %236 = vst.msk [vmem:[%s203 + $0x171] sm:$0xff] %vm204, %v202
      %237 = vst.msk [vmem:[#allocation2 + $0x1] sm:$0xff] %vm204, %v173
      %238 = vst.msk [vmem:[#allocation2 + $0x9] sm:$0xff] %vm204, %v174
      %s239 = scalar_lea.vmem [#allocation2], 408
      %240 = vst.msk [vmem:[%s239 + $0x1] sm:$0xff] %vm204, %v199
      %241 = vst.msk [vmem:[%s239 + $0x9] sm:$0xff] %vm204, %v200
      %v242 = vld [vmem:[#allocation2 + $0x2] sm:$0x1]
      %v243 = vld [vmem:[#allocation2 + $0x1a] sm:$0x1]
      %v244 = vld [vmem:[#allocation2 + $0x32] sm:$0x1]
      %v245 = vld [vmem:[#allocation2 + $0x4a] sm:$0x1]
      %v246 = vld [vmem:[#allocation2 + $0x62] sm:$0x1]
      %v247 = vld [vmem:[#allocation2 + $0x7a] sm:$0x1]
      %v248 = vld [vmem:[#allocation2 + $0x92] sm:$0x1]
      %v249 = vld [vmem:[#allocation2 + $0xaa] sm:$0x1]
      %v250 = vld [vmem:[#allocation2 + $0xc2] sm:$0x1]
      %v251 = vld [vmem:[#allocation2 + $0xda] sm:$0x1]
      %v252 = vld [vmem:[#allocation2 + $0xf2] sm:$0x1]
      %v253 = vld [vmem:[#allocation2 + $0x10a] sm:$0x1]
      %v254 = vld [vmem:[#allocation2 + $0x122] sm:$0x1]
      %v255 = vld [vmem:[#allocation2 + $0x13a] sm:$0x1]
      %v256 = vld [vmem:[#allocation2 + $0x152] sm:$0x1]
      %v257 = vld [vmem:[#allocation2 + $0x16a] sm:$0x1]
      %v258 = vld [vmem:[#allocation2 + $0x182] sm:$0x1]
      %v259 = vld [vmem:[#allocation2 + $0x19a] sm:$0x1]
      %vm260 = vcmask 24576
      %261 = vst.msk [vmem:[#allocation2] sm:$0x1] %vm260, %v242
      %262 = vst.msk [vmem:[#allocation2 + $0x18] sm:$0x1] %vm260, %v243
      %263 = vst.msk [vmem:[#allocation2 + $0x30] sm:$0x1] %vm260, %v244
      %264 = vst.msk [vmem:[#allocation2 + $0x48] sm:$0x1] %vm260, %v245
      %265 = vst.msk [vmem:[#allocation2 + $0x60] sm:$0x1] %vm260, %v246
      %266 = vst.msk [vmem:[#allocation2 + $0x78] sm:$0x1] %vm260, %v247
      %267 = vst.msk [vmem:[#allocation2 + $0x90] sm:$0x1] %vm260, %v248
      %268 = vst.msk [vmem:[#allocation2 + $0xa8] sm:$0x1] %vm260, %v249
      %269 = vst.msk [vmem:[#allocation2 + $0xc0] sm:$0x1] %vm260, %v250
      %270 = vst.msk [vmem:[#allocation2 + $0xd8] sm:$0x1] %vm260, %v251
      %271 = vst.msk [vmem:[#allocation2 + $0xf0] sm:$0x1] %vm260, %v252
      %272 = vst.msk [vmem:[#allocation2 + $0x108] sm:$0x1] %vm260, %v253
      %273 = vst.msk [vmem:[#allocation2 + $0x120] sm:$0x1] %vm260, %v254
      %274 = vst.msk [vmem:[#allocation2 + $0x138] sm:$0x1] %vm260, %v255
      %275 = vst.msk [vmem:[#allocation2 + $0x150] sm:$0x1] %vm260, %v256
      %276 = vst.msk [vmem:[#allocation2 + $0x168] sm:$0x1] %vm260, %v257
      %277 = vst.msk [vmem:[#allocation2 + $0x180] sm:$0x1] %vm260, %v258
      %278 = vst.msk [vmem:[#allocation2 + $0x198] sm:$0x1] %vm260, %v259
      %v279 = vld [vmem:[#allocation2 + $0xf] sm:$0x1]
      %v280 = vld [vmem:[#allocation2 + $0x27] sm:$0x1]
      %v281 = vld [vmem:[#allocation2 + $0x3f] sm:$0x1]
      %v282 = vld [vmem:[#allocation2 + $0x57] sm:$0x1]
      %v283 = vld [vmem:[#allocation2 + $0x6f] sm:$0x1]
      %v284 = vld [vmem:[#allocation2 + $0x87] sm:$0x1]
      %v285 = vld [vmem:[#allocation2 + $0x9f] sm:$0x1]
      %v286 = vld [vmem:[#allocation2 + $0xb7] sm:$0x1]
      %v287 = vld [vmem:[#allocation2 + $0xcf] sm:$0x1]
      %v288 = vld [vmem:[#allocation2 + $0xe7] sm:$0x1]
      %v289 = vld [vmem:[#allocation2 + $0xff] sm:$0x1]
      %v290 = vld [vmem:[#allocation2 + $0x117] sm:$0x1]
      %v291 = vld [vmem:[#allocation2 + $0x12f] sm:$0x1]
      %v292 = vld [vmem:[#allocation2 + $0x147] sm:$0x1]
      %v293 = vld [vmem:[#allocation2 + $0x15f] sm:$0x1]
      %v294 = vld [vmem:[#allocation2 + $0x177] sm:$0x1]
      %v295 = vld [vmem:[#allocation2 + $0x18f] sm:$0x1]
      %v296 = vld [vmem:[#allocation2 + $0x1a7] sm:$0x1]
      %297 = vst.msk [vmem:[#allocation2 + $0x11] sm:$0x1] %vm260, %v279
      %298 = vst.msk [vmem:[#allocation2 + $0x29] sm:$0x1] %vm260, %v280
      %299 = vst.msk [vmem:[#allocation2 + $0x41] sm:$0x1] %vm260, %v281
      %300 = vst.msk [vmem:[#allocation2 + $0x59] sm:$0x1] %vm260, %v282
      %301 = vst.msk [vmem:[#allocation2 + $0x71] sm:$0x1] %vm260, %v283
      %302 = vst.msk [vmem:[#allocation2 + $0x89] sm:$0x1] %vm260, %v284
      %303 = vst.msk [vmem:[#allocation2 + $0xa1] sm:$0x1] %vm260, %v285
      %304 = vst.msk [vmem:[#allocation2 + $0xb9] sm:$0x1] %vm260, %v286
      %305 = vst.msk [vmem:[#allocation2 + $0xd1] sm:$0x1] %vm260, %v287
      %306 = vst.msk [vmem:[#allocation2 + $0xe9] sm:$0x1] %vm260, %v288
      %307 = vst.msk [vmem:[#allocation2 + $0x101] sm:$0x1] %vm260, %v289
      %308 = vst.msk [vmem:[#allocation2 + $0x119] sm:$0x1] %vm260, %v290
      %309 = vst.msk [vmem:[#allocation2 + $0x131] sm:$0x1] %vm260, %v291
      %310 = vst.msk [vmem:[#allocation2 + $0x149] sm:$0x1] %vm260, %v292
      %311 = vst.msk [vmem:[#allocation2 + $0x161] sm:$0x1] %vm260, %v293
      %312 = vst.msk [vmem:[#allocation2 + $0x179] sm:$0x1] %vm260, %v294
      %313 = vst.msk [vmem:[#allocation2 + $0x191] sm:$0x1] %vm260, %v295
      %314 = vst.msk [vmem:[#allocation2 + $0x1a9] sm:$0x1] %vm260, %v296
      %v315 = vld [vmem:[#allocation2] sm:$0xff]
      %v316 = vld [vmem:[#allocation2 + $0x8] sm:$0xff]
      %v317 = vld [vmem:[#allocation2 + $0x10] sm:$0x3]
      %v318 = vld [vmem:[#allocation2 + $0x18] sm:$0xff]
      %v319 = vld [vmem:[#allocation2 + $0x20] sm:$0xff]
      %v320 = vld [vmem:[#allocation2 + $0x28] sm:$0x3]
      %v321 = vld [vmem:[#allocation2 + $0x30] sm:$0xff]
      %v322 = vld [vmem:[#allocation2 + $0x38] sm:$0xff]
      %v323 = vld [vmem:[#allocation2 + $0x40] sm:$0x3]
      %v324 = vld [vmem:[#allocation2 + $0x48] sm:$0xff]
      %v325 = vld [vmem:[#allocation2 + $0x50] sm:$0xff]
      %v326 = vld [vmem:[#allocation2 + $0x58] sm:$0x3]
      %v327 = vld [vmem:[#allocation2 + $0x60] sm:$0xff]
      %v328 = vld [vmem:[#allocation2 + $0x68] sm:$0xff]
      %v329 = vld [vmem:[#allocation2 + $0x70] sm:$0x3]
      %v330 = vld [vmem:[#allocation2 + $0x78] sm:$0xff]
      %v331 = vld [vmem:[#allocation2 + $0x80] sm:$0xff]
      %v332 = vld [vmem:[#allocation2 + $0x88] sm:$0x3]
      %v333 = vld [vmem:[#allocation2 + $0x90] sm:$0xff]
      %v334 = vld [vmem:[#allocation2 + $0x98] sm:$0xff]
      %v335 = vld [vmem:[#allocation2 + $0xa0] sm:$0x3]
      %v336 = vld [vmem:[#allocation2 + $0xa8] sm:$0xff]
      %v337 = vld [vmem:[#allocation2 + $0xb0] sm:$0xff]
      %v338 = vld [vmem:[#allocation2 + $0xb8] sm:$0x3]
      %v339 = vld [vmem:[#allocation2 + $0xc0] sm:$0xff]
      %v340 = vld [vmem:[#allocation2 + $0xc8] sm:$0xff]
      %v341 = vld [vmem:[#allocation2 + $0xd0] sm:$0x3]
      %v342 = vld [vmem:[#allocation2 + $0xd8] sm:$0xff]
      %v343 = vld [vmem:[#allocation2 + $0xe0] sm:$0xff]
      %v344 = vld [vmem:[#allocation2 + $0xe8] sm:$0x3]
      %v345 = vld [vmem:[#allocation2 + $0xf0] sm:$0xff]
      %v346 = vld [vmem:[#allocation2 + $0xf8] sm:$0xff]
      %v347 = vld [vmem:[#allocation2 + $0x100] sm:$0x3]
      %v348 = vld [vmem:[#allocation2 + $0x108] sm:$0xff]
      %v349 = vld [vmem:[#allocation2 + $0x110] sm:$0xff]
      %v350 = vld [vmem:[#allocation2 + $0x118] sm:$0x3]
      %v351 = vld [vmem:[#allocation2 + $0x120] sm:$0xff]
      %v352 = vld [vmem:[#allocation2 + $0x128] sm:$0xff]
      %v353 = vld [vmem:[#allocation2 + $0x130] sm:$0x3]
      %v354 = vld [vmem:[#allocation2 + $0x138] sm:$0xff]
      %v355 = vld [vmem:[#allocation2 + $0x140] sm:$0xff]
      %v356 = vld [vmem:[#allocation2 + $0x148] sm:$0x3]
      %v357 = vld [vmem:[#allocation2 + $0x150] sm:$0xff]
      %v358 = vld [vmem:[#allocation2 + $0x158] sm:$0xff]
      %v359 = vld [vmem:[#allocation2 + $0x160] sm:$0x3]
      %v360 = vld [vmem:[#allocation2 + $0x168] sm:$0xff]
      %v361 = vld [vmem:[#allocation2 + $0x170] sm:$0xff]
      %v362 = vld [vmem:[#allocation2 + $0x178] sm:$0x3]
      %v363 = vld [vmem:[#allocation2 + $0x180] sm:$0xff]
      %v364 = vld [vmem:[#allocation2 + $0x188] sm:$0xff]
      %v365 = vld [vmem:[#allocation2 + $0x190] sm:$0x3]
      %v366 = vld [vmem:[#allocation2 + $0x198] sm:$0xff]
      %v367 = vld [vmem:[#allocation2 + $0x1a0] sm:$0xff]
      %v368 = vld [vmem:[#allocation2 + $0x1a8] sm:$0x3]
      %vm423 = vcmask 1046528
      %v424 = vrot.slane %v315, 1
      %v425 = vrot.slane %v316, 1
      %v426 = vsel %vm423, %v424, %v425
      %v427 = vrot.slane %v317, 1
      %v428 = vsel %vm423, %v425, %v427
      %v429 = vrot.slane %v318, 1
      %v430 = vrot.slane %v319, 1
      %v431 = vsel %vm423, %v429, %v430
      %v432 = vrot.slane %v320, 1
      %v433 = vsel %vm423, %v430, %v432
      %v434 = vrot.slane %v321, 1
      %v435 = vrot.slane %v322, 1
      %v436 = vsel %vm423, %v434, %v435
      %v437 = vrot.slane %v323, 1
      %v438 = vsel %vm423, %v435, %v437
      %v439 = vrot.slane %v324, 1
      %v440 = vrot.slane %v325, 1
      %v441 = vsel %vm423, %v439, %v440
      %v442 = vrot.slane %v326, 1
      %v443 = vsel %vm423, %v440, %v442
      %v444 = vrot.slane %v327, 1
      %v445 = vrot.slane %v328, 1
      %v446 = vsel %vm423, %v444, %v445
      %v447 = vrot.slane %v329, 1
      %v448 = vsel %vm423, %v445, %v447
      %v449 = vrot.slane %v330, 1
      %v450 = vrot.slane %v331, 1
      %v451 = vsel %vm423, %v449, %v450
      %v452 = vrot.slane %v332, 1
      %v453 = vsel %vm423, %v450, %v452
      %v454 = vrot.slane %v333, 1
      %v455 = vrot.slane %v334, 1
      %v456 = vsel %vm423, %v454, %v455
      %v457 = vrot.slane %v335, 1
      %v458 = vsel %vm423, %v455, %v457
      %v459 = vrot.slane %v336, 1
      %v460 = vrot.slane %v337, 1
      %v461 = vsel %vm423, %v459, %v460
      %v462 = vrot.slane %v338, 1
      %v463 = vsel %vm423, %v460, %v462
      %v464 = vrot.slane %v339, 1
      %v465 = vrot.slane %v340, 1
      %v466 = vsel %vm423, %v464, %v465
      %v467 = vrot.slane %v341, 1
      %v468 = vsel %vm423, %v465, %v467
      %v469 = vrot.slane %v342, 1
      %v470 = vrot.slane %v343, 1
      %v471 = vsel %vm423, %v469, %v470
      %v472 = vrot.slane %v344, 1
      %v473 = vsel %vm423, %v470, %v472
      %v474 = vrot.slane %v345, 1
      %v475 = vrot.slane %v346, 1
      %v476 = vsel %vm423, %v474, %v475
      %v477 = vrot.slane %v347, 1
      %v478 = vsel %vm423, %v475, %v477
      %v479 = vrot.slane %v348, 1
      %v480 = vrot.slane %v349, 1
      %v481 = vsel %vm423, %v479, %v480
      %v482 = vrot.slane %v350, 1
      %v483 = vsel %vm423, %v480, %v482
      %v484 = vrot.slane %v351, 1
      %v485 = vrot.slane %v352, 1
      %v486 = vsel %vm423, %v484, %v485
      %v487 = vrot.slane %v353, 1
      %v488 = vsel %vm423, %v485, %v487
      %v489 = vrot.slane %v354, 1
      %v490 = vrot.slane %v355, 1
      %v491 = vsel %vm423, %v489, %v490
      %v492 = vrot.slane %v356, 1
      %v493 = vsel %vm423, %v490, %v492
      %v494 = vrot.slane %v357, 1
      %v495 = vrot.slane %v358, 1
      %v496 = vsel %vm423, %v494, %v495
      %v497 = vrot.slane %v359, 1
      %v498 = vsel %vm423, %v495, %v497
      %v499 = vrot.slane %v360, 1
      %v500 = vrot.slane %v361, 1
      %v501 = vsel %vm423, %v499, %v500
      %v502 = vrot.slane %v362, 1
      %v503 = vsel %vm423, %v500, %v502
      %v504 = vrot.slane %v363, 1
      %v505 = vrot.slane %v364, 1
      %v506 = vsel %vm423, %v504, %v505
      %v507 = vrot.slane %v365, 1
      %v508 = vsel %vm423, %v505, %v507
      %v509 = vrot.slane %v366, 1
      %v510 = vrot.slane %v367, 1
      %v511 = vsel %vm423, %v509, %v510
      %v512 = vrot.slane %v368, 1
      %v513 = vsel %vm423, %v510, %v512
      %514 = vrot.lane.b32.xlu0 %v426, 4
      %v515 = vpop.permute.xlu0 %514
      %516 = vrot.lane.b32.xlu0 %v428, 4
      %v517 = vpop.permute.xlu0 %516
      %518 = vrot.lane.b32.xlu0 %v431, 4
      %v519 = vpop.permute.xlu0 %518
      %520 = vrot.lane.b32.xlu0 %v433, 4
      %v521 = vpop.permute.xlu0 %520
      %522 = vrot.lane.b32.xlu0 %v436, 4
      %v523 = vpop.permute.xlu0 %522
      %524 = vrot.lane.b32.xlu0 %v438, 4
      %v525 = vpop.permute.xlu0 %524
      %526 = vrot.lane.b32.xlu0 %v441, 4
      %v527 = vpop.permute.xlu0 %526
      %528 = vrot.lane.b32.xlu0 %v443, 4
      %v529 = vpop.permute.xlu0 %528
      %530 = vrot.lane.b32.xlu0 %v446, 4
      %v531 = vpop.permute.xlu0 %530
      %532 = vrot.lane.b32.xlu0 %v448, 4
      %v533 = vpop.permute.xlu0 %532
      %534 = vrot.lane.b32.xlu0 %v451, 4
      %v535 = vpop.permute.xlu0 %534
      %536 = vrot.lane.b32.xlu0 %v453, 4
      %v537 = vpop.permute.xlu0 %536
      %538 = vrot.lane.b32.xlu0 %v456, 4
      %v539 = vpop.permute.xlu0 %538
      %540 = vrot.lane.b32.xlu0 %v458, 4
      %v541 = vpop.permute.xlu0 %540
      %542 = vrot.lane.b32.xlu0 %v461, 4
      %v543 = vpop.permute.xlu0 %542
      %544 = vrot.lane.b32.xlu0 %v463, 4
      %v545 = vpop.permute.xlu0 %544
      %546 = vrot.lane.b32.xlu0 %v466, 4
      %v547 = vpop.permute.xlu0 %546
      %548 = vrot.lane.b32.xlu0 %v468, 4
      %v549 = vpop.permute.xlu0 %548
      %550 = vrot.lane.b32.xlu0 %v471, 4
      %v551 = vpop.permute.xlu0 %550
      %552 = vrot.lane.b32.xlu0 %v473, 4
      %v553 = vpop.permute.xlu0 %552
      %554 = vrot.lane.b32.xlu0 %v476, 4
      %v555 = vpop.permute.xlu0 %554
      %556 = vrot.lane.b32.xlu0 %v478, 4
      %v557 = vpop.permute.xlu0 %556
      %558 = vrot.lane.b32.xlu0 %v481, 4
      %v559 = vpop.permute.xlu0 %558
      %560 = vrot.lane.b32.xlu0 %v483, 4
      %v561 = vpop.permute.xlu0 %560
      %562 = vrot.lane.b32.xlu0 %v486, 4
      %v563 = vpop.permute.xlu0 %562
      %564 = vrot.lane.b32.xlu0 %v488, 4
      %v565 = vpop.permute.xlu0 %564
      %566 = vrot.lane.b32.xlu0 %v491, 4
      %v567 = vpop.permute.xlu0 %566
      %568 = vrot.lane.b32.xlu0 %v493, 4
      %v569 = vpop.permute.xlu0 %568
      %570 = vrot.lane.b32.xlu0 %v496, 4
      %v571 = vpop.permute.xlu0 %570
      %572 = vrot.lane.b32.xlu0 %v498, 4
      %v573 = vpop.permute.xlu0 %572
      %574 = vrot.lane.b32.xlu0 %v501, 4
      %v575 = vpop.permute.xlu0 %574
      %576 = vrot.lane.b32.xlu0 %v503, 4
      %v577 = vpop.permute.xlu0 %576
      %578 = vrot.lane.b32.xlu0 %v506, 4
      %v579 = vpop.permute.xlu0 %578
      %580 = vrot.lane.b32.xlu0 %v508, 4
      %v581 = vpop.permute.xlu0 %580
      %582 = vrot.lane.b32.xlu0 %v511, 4
      %v583 = vpop.permute.xlu0 %582
      %584 = vrot.lane.b32.xlu0 %v513, 4
      %v585 = vpop.permute.xlu0 %584
      %vm622 = vcmask 1045504
      %v623 = vrot.slane %v315, 2
      %v624 = vrot.slane %v316, 2
      %v625 = vsel %vm622, %v623, %v624
      %v626 = vrot.slane %v317, 2
      %v627 = vsel %vm622, %v624, %v626
      %v628 = vrot.slane %v318, 2
      %v629 = vrot.slane %v319, 2
      %v630 = vsel %vm622, %v628, %v629
      %v631 = vrot.slane %v320, 2
      %v632 = vsel %vm622, %v629, %v631
      %v633 = vrot.slane %v321, 2
      %v634 = vrot.slane %v322, 2
      %v635 = vsel %vm622, %v633, %v634
      %v636 = vrot.slane %v323, 2
      %v637 = vsel %vm622, %v634, %v636
      %v638 = vrot.slane %v324, 2
      %v639 = vrot.slane %v325, 2
      %v640 = vsel %vm622, %v638, %v639
      %v641 = vrot.slane %v326, 2
      %v642 = vsel %vm622, %v639, %v641
      %v643 = vrot.slane %v327, 2
      %v644 = vrot.slane %v328, 2
      %v645 = vsel %vm622, %v643, %v644
      %v646 = vrot.slane %v329, 2
      %v647 = vsel %vm622, %v644, %v646
      %v648 = vrot.slane %v330, 2
      %v649 = vrot.slane %v331, 2
      %v650 = vsel %vm622, %v648, %v649
      %v651 = vrot.slane %v332, 2
      %v652 = vsel %vm622, %v649, %v651
      %v653 = vrot.slane %v333, 2
      %v654 = vrot.slane %v334, 2
      %v655 = vsel %vm622, %v653, %v654
      %v656 = vrot.slane %v335, 2
      %v657 = vsel %vm622, %v654, %v656
      %v658 = vrot.slane %v336, 2
      %v659 = vrot.slane %v337, 2
      %v660 = vsel %vm622, %v658, %v659
      %v661 = vrot.slane %v338, 2
      %v662 = vsel %vm622, %v659, %v661
      %v663 = vrot.slane %v339, 2
      %v664 = vrot.slane %v340, 2
      %v665 = vsel %vm622, %v663, %v664
      %v666 = vrot.slane %v341, 2
      %v667 = vsel %vm622, %v664, %v666
      %v668 = vrot.slane %v342, 2
      %v669 = vrot.slane %v343, 2
      %v670 = vsel %vm622, %v668, %v669
      %v671 = vrot.slane %v344, 2
      %v672 = vsel %vm622, %v669, %v671
      %v673 = vrot.slane %v345, 2
      %v674 = vrot.slane %v346, 2
      %v675 = vsel %vm622, %v673, %v674
      %v676 = vrot.slane %v347, 2
      %v677 = vsel %vm622, %v674, %v676
      %v678 = vrot.slane %v348, 2
      %v679 = vrot.slane %v349, 2
      %v680 = vsel %vm622, %v678, %v679
      %v681 = vrot.slane %v350, 2
      %v682 = vsel %vm622, %v679, %v681
      %v683 = vrot.slane %v351, 2
      %v684 = vrot.slane %v352, 2
      %v685 = vsel %vm622, %v683, %v684
      %v686 = vrot.slane %v353, 2
      %v687 = vsel %vm622, %v684, %v686
      %v688 = vrot.slane %v354, 2
      %v689 = vrot.slane %v355, 2
      %v690 = vsel %vm622, %v688, %v689
      %v691 = vrot.slane %v356, 2
      %v692 = vsel %vm622, %v689, %v691
      %v693 = vrot.slane %v357, 2
      %v694 = vrot.slane %v358, 2
      %v695 = vsel %vm622, %v693, %v694
      %v696 = vrot.slane %v359, 2
      %v697 = vsel %vm622, %v694, %v696
      %v698 = vrot.slane %v360, 2
      %v699 = vrot.slane %v361, 2
      %v700 = vsel %vm622, %v698, %v699
      %v701 = vrot.slane %v362, 2
      %v702 = vsel %vm622, %v699, %v701
      %v703 = vrot.slane %v363, 2
      %v704 = vrot.slane %v364, 2
      %v705 = vsel %vm622, %v703, %v704
      %v706 = vrot.slane %v365, 2
      %v707 = vsel %vm622, %v704, %v706
      %v708 = vrot.slane %v366, 2
      %v709 = vrot.slane %v367, 2
      %v710 = vsel %vm622, %v708, %v709
      %v711 = vrot.slane %v368, 2
      %v712 = vsel %vm622, %v709, %v711
      %713 = vrot.lane.b32.xlu0 %v625, 8
      %v714 = vpop.permute.xlu0 %713
      %715 = vrot.lane.b32.xlu0 %v627, 8
      %v716 = vpop.permute.xlu0 %715
      %717 = vrot.lane.b32.xlu0 %v630, 8
      %v718 = vpop.permute.xlu0 %717
      %719 = vrot.lane.b32.xlu0 %v632, 8
      %v720 = vpop.permute.xlu0 %719
      %721 = vrot.lane.b32.xlu0 %v635, 8
      %v722 = vpop.permute.xlu0 %721
      %723 = vrot.lane.b32.xlu0 %v637, 8
      %v724 = vpop.permute.xlu0 %723
      %725 = vrot.lane.b32.xlu0 %v640, 8
      %v726 = vpop.permute.xlu0 %725
      %727 = vrot.lane.b32.xlu0 %v642, 8
      %v728 = vpop.permute.xlu0 %727
      %729 = vrot.lane.b32.xlu0 %v645, 8
      %v730 = vpop.permute.xlu0 %729
      %731 = vrot.lane.b32.xlu0 %v647, 8
      %v732 = vpop.permute.xlu0 %731
      %733 = vrot.lane.b32.xlu0 %v650, 8
      %v734 = vpop.permute.xlu0 %733
      %735 = vrot.lane.b32.xlu0 %v652, 8
      %v736 = vpop.permute.xlu0 %735
      %737 = vrot.lane.b32.xlu0 %v655, 8
      %v738 = vpop.permute.xlu0 %737
      %739 = vrot.lane.b32.xlu0 %v657, 8
      %v740 = vpop.permute.xlu0 %739
      %741 = vrot.lane.b32.xlu0 %v660, 8
      %v742 = vpop.permute.xlu0 %741
      %743 = vrot.lane.b32.xlu0 %v662, 8
      %v744 = vpop.permute.xlu0 %743
      %745 = vrot.lane.b32.xlu0 %v665, 8
      %v746 = vpop.permute.xlu0 %745
      %747 = vrot.lane.b32.xlu0 %v667, 8
      %v748 = vpop.permute.xlu0 %747
      %749 = vrot.lane.b32.xlu0 %v670, 8
      %v750 = vpop.permute.xlu0 %749
      %751 = vrot.lane.b32.xlu0 %v672, 8
      %v752 = vpop.permute.xlu0 %751
      %753 = vrot.lane.b32.xlu0 %v675, 8
      %v754 = vpop.permute.xlu0 %753
      %755 = vrot.lane.b32.xlu0 %v677, 8
      %v756 = vpop.permute.xlu0 %755
      %757 = vrot.lane.b32.xlu0 %v680, 8
      %v758 = vpop.permute.xlu0 %757
      %759 = vrot.lane.b32.xlu0 %v682, 8
      %v760 = vpop.permute.xlu0 %759
      %761 = vrot.lane.b32.xlu0 %v685, 8
      %v762 = vpop.permute.xlu0 %761
      %763 = vrot.lane.b32.xlu0 %v687, 8
      %v764 = vpop.permute.xlu0 %763
      %765 = vrot.lane.b32.xlu0 %v690, 8
      %v766 = vpop.permute.xlu0 %765
      %767 = vrot.lane.b32.xlu0 %v692, 8
      %v768 = vpop.permute.xlu0 %767
      %769 = vrot.lane.b32.xlu0 %v695, 8
      %v770 = vpop.permute.xlu0 %769
      %771 = vrot.lane.b32.xlu0 %v697, 8
      %v772 = vpop.permute.xlu0 %771
      %773 = vrot.lane.b32.xlu0 %v700, 8
      %v774 = vpop.permute.xlu0 %773
      %775 = vrot.lane.b32.xlu0 %v702, 8
      %v776 = vpop.permute.xlu0 %775
      %777 = vrot.lane.b32.xlu0 %v705, 8
      %v778 = vpop.permute.xlu0 %777
      %779 = vrot.lane.b32.xlu0 %v707, 8
      %v780 = vpop.permute.xlu0 %779
      %781 = vrot.lane.b32.xlu0 %v710, 8
      %v782 = vpop.permute.xlu0 %781
      %783 = vrot.lane.b32.xlu0 %v712, 8
      %v784 = vpop.permute.xlu0 %783
      %v821 = vsel %vm204, %v315, %v515
      %v822 = vsel %vm204, %v316, %v517
      %v823 = vsel %vm204, %v318, %v519
      %v824 = vsel %vm204, %v319, %v521
      %v825 = vsel %vm204, %v321, %v523
      %v826 = vsel %vm204, %v322, %v525
      %v827 = vsel %vm204, %v324, %v527
      %v828 = vsel %vm204, %v325, %v529
      %v829 = vsel %vm204, %v327, %v531
      %v830 = vsel %vm204, %v328, %v533
      %v831 = vsel %vm204, %v330, %v535
      %v832 = vsel %vm204, %v331, %v537
      %v833 = vsel %vm204, %v333, %v539
      %v834 = vsel %vm204, %v334, %v541
      %v835 = vsel %vm204, %v336, %v543
      %v836 = vsel %vm204, %v337, %v545
      %v837 = vsel %vm204, %v339, %v547
      %v838 = vsel %vm204, %v340, %v549
      %v839 = vsel %vm204, %v342, %v551
      %v840 = vsel %vm204, %v343, %v553
      %v841 = vsel %vm204, %v345, %v555
      %v842 = vsel %vm204, %v346, %v557
      %v843 = vsel %vm204, %v348, %v559
      %v844 = vsel %vm204, %v349, %v561
      %v845 = vsel %vm204, %v351, %v563
      %v846 = vsel %vm204, %v352, %v565
      %v847 = vsel %vm204, %v354, %v567
      %v848 = vsel %vm204, %v355, %v569
      %v849 = vsel %vm204, %v357, %v571
      %v850 = vsel %vm204, %v358, %v573
      %v851 = vsel %vm204, %v360, %v575
      %v852 = vsel %vm204, %v361, %v577
      %v853 = vsel %vm204, %v363, %v579
      %v854 = vsel %vm204, %v364, %v581
      %v855 = vsel %vm204, %v366, %v583
      %v856 = vsel %vm204, %v367, %v585
      %vm857 = vcmask 64512
      %v858 = vsel %vm857, %v821, %v714
      %v859 = vsel %vm857, %v822, %v716
      %v860 = vsel %vm857, %v823, %v718
      %v861 = vsel %vm857, %v824, %v720
      %v862 = vsel %vm857, %v825, %v722
      %v863 = vsel %vm857, %v826, %v724
      %v864 = vsel %vm857, %v827, %v726
      %v865 = vsel %vm857, %v828, %v728
      %v866 = vsel %vm857, %v829, %v730
      %v867 = vsel %vm857, %v830, %v732
      %v868 = vsel %vm857, %v831, %v734
      %v869 = vsel %vm857, %v832, %v736
      %v870 = vsel %vm857, %v833, %v738
      %v871 = vsel %vm857, %v834, %v740
      %v872 = vsel %vm857, %v835, %v742
      %v873 = vsel %vm857, %v836, %v744
      %v874 = vsel %vm857, %v837, %v746
      %v875 = vsel %vm857, %v838, %v748
      %v876 = vsel %vm857, %v839, %v750
      %v877 = vsel %vm857, %v840, %v752
      %v878 = vsel %vm857, %v841, %v754
      %v879 = vsel %vm857, %v842, %v756
      %v880 = vsel %vm857, %v843, %v758
      %v881 = vsel %vm857, %v844, %v760
      %v882 = vsel %vm857, %v845, %v762
      %v883 = vsel %vm857, %v846, %v764
      %v884 = vsel %vm857, %v847, %v766
      %v885 = vsel %vm857, %v848, %v768
      %v886 = vsel %vm857, %v849, %v770
      %v887 = vsel %vm857, %v850, %v772
      %v888 = vsel %vm857, %v851, %v774
      %v889 = vsel %vm857, %v852, %v776
      %v890 = vsel %vm857, %v853, %v778
      %v891 = vsel %vm857, %v854, %v780
      %v892 = vsel %vm857, %v855, %v782
      %v893 = vsel %vm857, %v856, %v784
      %v894 = vld [vmem:[%s1] sm:$0xff]
      %v895 = vld [vmem:[%s1 + $0x8] sm:$0xf]
      %s896 = scalar_lea.vmem %s1, 16
      %v897 = vld [vmem:[%s896] sm:$0xff]
      %v898 = vld [vmem:[%s896 + $0x8] sm:$0xf]
      %vm899 = vcmask 97280
      %v901 = vsel %vm899, %v860, 0
      %v904 = vsel %vm899, %v861, 0
      %v907 = vsel %vm899, %v862, 0
      %v910 = vsel %vm899, %v863, 0
      %v913 = vsel %vm899, %v864, 0
      %v916 = vsel %vm899, %v865, 0
      %v919 = vsel %vm899, %v866, 0
      %v922 = vsel %vm899, %v867, 0
      %v925 = vsel %vm899, %v868, 0
      %v928 = vsel %vm899, %v869, 0
      %v931 = vsel %vm899, %v870, 0
      %v934 = vsel %vm899, %v871, 0
      %v937 = vsel %vm899, %v872, 0
      %v940 = vsel %vm899, %v873, 0
      %v943 = vsel %vm899, %v874, 0
      %v946 = vsel %vm899, %v875, 0
      %v949 = vsel %vm899, %v876, 0
      %v952 = vsel %vm899, %v877, 0
      %v955 = vsel %vm899, %v878, 0
      %v958 = vsel %vm899, %v879, 0
      %v961 = vsel %vm899, %v880, 0
      %v964 = vsel %vm899, %v881, 0
      %v967 = vsel %vm899, %v882, 0
      %v970 = vsel %vm899, %v883, 0
      %v973 = vsel %vm899, %v884, 0
      %v976 = vsel %vm899, %v885, 0
      %v979 = vsel %vm899, %v886, 0
      %v982 = vsel %vm899, %v887, 0
      %v985 = vsel %vm899, %v888, 0
      %v988 = vsel %vm899, %v889, 0
      %v991 = vsel %vm899, %v890, 0
      %v994 = vsel %vm899, %v891, 0
      %vm996 = vcmask 1043456
      %v998 = vsel %vm996, %v898, 0
      %1000 = vmatprep.subr.mxu0 0.0
      %1001 = vmatpush1.msra.mxu0 0.0
      %1002 = vmatprep.subr.mxu0 0.0
      %1003 = vmatpush1.msra.mxu0 0.0
      %1004 = vmatprep.subr.mxu0 0.0
      %1005 = vmatpush1.msra.mxu0 0.0
      %1006 = vmatprep.subr.mxu0 0.0
      %1007 = vmatpush1.msra.mxu0 0.0
      %1008 = vmatprep.subr.mxu0 0.0
      %1009 = vmatpush1.msra.mxu0 0.0
      %1010 = vmatprep.subr.mxu0 0.0
      %1011 = vmatpush1.msra.mxu0 0.0
      %1012 = vmatprep.subr.mxu0 0.0
      %1013 = vmatpush1.msra.mxu0 0.0
      %1014 = vmatprep.subr.mxu0 0.0
      %1015 = vmatpush1.msra.mxu0 0.0
      %1016 = vmatprep.subr.mxu0 0.0
      %1017 = vmatpush1.msra.mxu0 0.0
      %1018 = vmatprep.subr.mxu0 0.0
      %1019 = vmatpush1.msra.mxu0 0.0
      %1020 = vmatprep.subr.mxu0 0.0
      %1021 = vmatpush1.msra.mxu0 0.0
      %1022 = vmatprep.subr.mxu0 0.0
      %1023 = vmatpush1.msra.mxu0 0.0
      %1024 = vmatprep.subr.mxu0 0.0
      %1025 = vmatpush1.msra.mxu0 0.0
      %1026 = vmatprep.subr.mxu0 0.0
      %1027 = vmatpush1.msra.mxu0 0.0
      %1028 = vmatprep.subr.mxu0 0.0
      %1029 = vmatpush1.msra.mxu0 %v998
      %1030 = vmatprep.subr.mxu0 0.0
      %1031 = vmatpush1.msra.mxu0 %v897
      %1032 = vmatprep.subr.mxu0 0.0
      %1033 = vmatpush2.msra.mxu0 0.0
      %1034 = vmatprep.subr.mxu0 0.0
      %1035 = vmatpush2.msra.mxu0 0.0
      %1036 = vmatprep.subr.mxu0 0.0
      %1037 = vmatpush2.msra.mxu0 0.0
      %1038 = vmatprep.subr.mxu0 0.0
      %1039 = vmatpush2.msra.mxu0 0.0
      %1040 = vmatprep.subr.mxu0 0.0
      %1041 = vmatpush2.msra.mxu0 0.0
      %1042 = vmatprep.subr.mxu0 0.0
      %1043 = vmatpush2.msra.mxu0 0.0
      %1044 = vmatprep.subr.mxu0 0.0
      %1045 = vmatpush2.msra.mxu0 0.0
      %1046 = vmatprep.subr.mxu0 0.0
      %1047 = vmatpush2.msra.mxu0 0.0
      %1048 = vmatprep.subr.mxu0 0.0
      %1049 = vmatpush2.msra.mxu0 0.0
      %1050 = vmatprep.subr.mxu0 0.0
      %1051 = vmatpush2.msra.mxu0 0.0
      %1052 = vmatprep.subr.mxu0 0.0
      %1053 = vmatpush2.msra.mxu0 0.0
      %1054 = vmatprep.subr.mxu0 0.0
      %1055 = vmatpush2.msra.mxu0 0.0
      %1056 = vmatprep.subr.mxu0 0.0
      %1057 = vmatpush2.msra.mxu0 0.0
      %1058 = vmatprep.subr.mxu0 0.0
      %1059 = vmatpush2.msra.mxu0 0.0
      %1060 = vmatprep.subr.mxu0 0.0
      %1061 = vmatpush2.msra.mxu0 0.0
      %1062 = vmatprep.subr.mxu0 0.0
      %1063 = vmatpush2.msra.mxu0 0.0
      %1064 = vmatprep.mubr.f32.mxu0 0.0
      %1065 = vmatmul.mubr.f32.gmra.mxu0 %v901
      %v1066 = vpop.f32.mrf.mxu0
      %v1067 = vadd.f32 0.0, %v1066
      %v1068 = vpop.f32.mrf.mxu0
      %1069 = vmatprep.mubr.f32.mxu0 0.0
      %1070 = vmatmul.mubr.f32.gmra.mxu0 %v904
      %v1071 = vpop.f32.mrf.mxu0
      %v1072 = vadd.f32 0.0, %v1071
      %v1073 = vpop.f32.mrf.mxu0
      %1074 = vmatprep.mubr.f32.mxu0 0.0
      %1075 = vmatmul.mubr.f32.gmra.mxu0 %v907
      %v1076 = vpop.f32.mrf.mxu0
      %v1077 = vadd.f32 0.0, %v1076
      %v1078 = vpop.f32.mrf.mxu0
      %1079 = vmatprep.mubr.f32.mxu0 0.0
      %1080 = vmatmul.mubr.f32.gmra.mxu0 %v910
      %v1081 = vpop.f32.mrf.mxu0
      %v1082 = vadd.f32 0.0, %v1081
      %v1083 = vpop.f32.mrf.mxu0
      %1084 = vmatprep.mubr.f32.mxu0 0.0
      %1085 = vmatmul.mubr.f32.gmra.mxu0 %v913
      %v1086 = vpop.f32.mrf.mxu0
      %v1087 = vadd.f32 0.0, %v1086
      %v1088 = vpop.f32.mrf.mxu0
      %1089 = vmatprep.mubr.f32.mxu0 0.0
      %1090 = vmatmul.mubr.f32.gmra.mxu0 %v916
      %v1091 = vpop.f32.mrf.mxu0
      %v1092 = vadd.f32 0.0, %v1091
      %v1093 = vpop.f32.mrf.mxu0
      %1094 = vmatprep.mubr.f32.mxu0 0.0
      %1095 = vmatmul.mubr.f32.gmra.mxu0 %v919
      %v1096 = vpop.f32.mrf.mxu0
      %v1097 = vadd.f32 0.0, %v1096
      %v1098 = vpop.f32.mrf.mxu0
      %1099 = vmatprep.mubr.f32.mxu0 0.0
      %1100 = vmatmul.mubr.f32.gmra.mxu0 %v922
      %v1101 = vpop.f32.mrf.mxu0
      %v1102 = vadd.f32 0.0, %v1101
      %v1103 = vpop.f32.mrf.mxu0
      %1104 = vmatprep.mubr.f32.mxu0 0.0
      %1105 = vmatmul.mubr.f32.gmra.mxu0 %v925
      %v1106 = vpop.f32.mrf.mxu0
      %v1107 = vadd.f32 0.0, %v1106
      %v1108 = vpop.f32.mrf.mxu0
      %1109 = vmatprep.mubr.f32.mxu0 0.0
      %1110 = vmatmul.mubr.f32.gmra.mxu0 %v928
      %v1111 = vpop.f32.mrf.mxu0
      %v1112 = vadd.f32 0.0, %v1111
      %v1113 = vpop.f32.mrf.mxu0
      %1114 = vmatprep.mubr.f32.mxu0 0.0
      %1115 = vmatmul.mubr.f32.gmra.mxu0 %v931
      %v1116 = vpop.f32.mrf.mxu0
      %v1117 = vadd.f32 0.0, %v1116
      %v1118 = vpop.f32.mrf.mxu0
      %1119 = vmatprep.mubr.f32.mxu0 0.0
      %1120 = vmatmul.mubr.f32.gmra.mxu0 %v934
      %v1121 = vpop.f32.mrf.mxu0
      %v1122 = vadd.f32 0.0, %v1121
      %v1123 = vpop.f32.mrf.mxu0
      %1124 = vmatprep.mubr.f32.mxu0 0.0
      %1125 = vmatmul.mubr.f32.gmra.mxu0 %v937
      %v1126 = vpop.f32.mrf.mxu0
      %v1127 = vadd.f32 0.0, %v1126
      %v1128 = vpop.f32.mrf.mxu0
      %1129 = vmatprep.mubr.f32.mxu0 0.0
      %1130 = vmatmul.mubr.f32.gmra.mxu0 %v940
      %v1131 = vpop.f32.mrf.mxu0
      %v1132 = vadd.f32 0.0, %v1131
      %v1133 = vpop.f32.mrf.mxu0
      %1134 = vmatprep.mubr.f32.mxu0 0.0
      %1135 = vmatmul.mubr.f32.gmra.mxu0 %v943
      %v1136 = vpop.f32.mrf.mxu0
      %v1137 = vadd.f32 0.0, %v1136
      %v1138 = vpop.f32.mrf.mxu0
      %1139 = vmatprep.mubr.f32.mxu0 0.0
      %1140 = vmatmul.mubr.f32.gmra.mxu0 %v946
      %v1141 = vpop.f32.mrf.mxu0
      %v1142 = vadd.f32 0.0, %v1141
      %v1143 = vpop.f32.mrf.mxu0
      %1144 = vmatprep.mubr.f32.mxu0 0.0
      %1145 = vmatmul.mubr.f32.gmra.mxu0 %v949
      %v1146 = vpop.f32.mrf.mxu0
      %v1147 = vadd.f32 0.0, %v1146
      %v1148 = vpop.f32.mrf.mxu0
      %1149 = vmatprep.mubr.f32.mxu0 0.0
      %1150 = vmatmul.mubr.f32.gmra.mxu0 %v952
      %v1151 = vpop.f32.mrf.mxu0
      %v1152 = vadd.f32 0.0, %v1151
      %v1153 = vpop.f32.mrf.mxu0
      %1154 = vmatprep.mubr.f32.mxu0 0.0
      %1155 = vmatmul.mubr.f32.gmra.mxu0 %v955
      %v1156 = vpop.f32.mrf.mxu0
      %v1157 = vadd.f32 0.0, %v1156
      %v1158 = vpop.f32.mrf.mxu0
      %1159 = vmatprep.mubr.f32.mxu0 0.0
      %1160 = vmatmul.mubr.f32.gmra.mxu0 %v958
      %v1161 = vpop.f32.mrf.mxu0
      %v1162 = vadd.f32 0.0, %v1161
      %v1163 = vpop.f32.mrf.mxu0
      %1164 = vmatprep.mubr.f32.mxu0 0.0
      %1165 = vmatmul.mubr.f32.gmra.mxu0 %v961
      %v1166 = vpop.f32.mrf.mxu0
      %v1167 = vadd.f32 0.0, %v1166
      %v1168 = vpop.f32.mrf.mxu0
      %1169 = vmatprep.mubr.f32.mxu0 0.0
      %1170 = vmatmul.mubr.f32.gmra.mxu0 %v964
      %v1171 = vpop.f32.mrf.mxu0
      %v1172 = vadd.f32 0.0, %v1171
      %v1173 = vpop.f32.mrf.mxu0
      %1174 = vmatprep.mubr.f32.mxu0 0.0
      %1175 = vmatmul.mubr.f32.gmra.mxu0 %v967
      %v1176 = vpop.f32.mrf.mxu0
      %v1177 = vadd.f32 0.0, %v1176
      %v1178 = vpop.f32.mrf.mxu0
      %1179 = vmatprep.mubr.f32.mxu0 0.0
      %1180 = vmatmul.mubr.f32.gmra.mxu0 %v970
      %v1181 = vpop.f32.mrf.mxu0
      %v1182 = vadd.f32 0.0, %v1181
      %v1183 = vpop.f32.mrf.mxu0
      %1184 = vmatprep.mubr.f32.mxu0 0.0
      %1185 = vmatmul.mubr.f32.gmra.mxu0 %v973
      %v1186 = vpop.f32.mrf.mxu0
      %v1187 = vadd.f32 0.0, %v1186
      %v1188 = vpop.f32.mrf.mxu0
      %1189 = vmatprep.mubr.f32.mxu0 0.0
      %1190 = vmatmul.mubr.f32.gmra.mxu0 %v976
      %v1191 = vpop.f32.mrf.mxu0
      %v1192 = vadd.f32 0.0, %v1191
      %v1193 = vpop.f32.mrf.mxu0
      %1194 = vmatprep.mubr.f32.mxu0 0.0
      %1195 = vmatmul.mubr.f32.gmra.mxu0 %v979
      %v1196 = vpop.f32.mrf.mxu0
      %v1197 = vadd.f32 0.0, %v1196
      %v1198 = vpop.f32.mrf.mxu0
      %1199 = vmatprep.mubr.f32.mxu0 0.0
      %1200 = vmatmul.mubr.f32.gmra.mxu0 %v982
      %v1201 = vpop.f32.mrf.mxu0
      %v1202 = vadd.f32 0.0, %v1201
      %v1203 = vpop.f32.mrf.mxu0
      %1204 = vmatprep.mubr.f32.mxu0 0.0
      %1205 = vmatmul.mubr.f32.gmra.mxu0 %v985
      %v1206 = vpop.f32.mrf.mxu0
      %v1207 = vadd.f32 0.0, %v1206
      %v1208 = vpop.f32.mrf.mxu0
      %1209 = vmatprep.mubr.f32.mxu0 0.0
      %1210 = vmatmul.mubr.f32.gmra.mxu0 %v988
      %v1211 = vpop.f32.mrf.mxu0
      %v1212 = vadd.f32 0.0, %v1211
      %v1213 = vpop.f32.mrf.mxu0
      %1214 = vmatprep.mubr.f32.mxu0 0.0
      %1215 = vmatmul.mubr.f32.gmra.mxu0 %v991
      %v1216 = vpop.f32.mrf.mxu0
      %v1217 = vadd.f32 0.0, %v1216
      %v1218 = vpop.f32.mrf.mxu0
      %1219 = vmatprep.mubr.f32.mxu0 0.0
      %1220 = vmatmul.mubr.f32.gmra.mxu0 %v994
      %v1221 = vpop.f32.mrf.mxu0
      %v1222 = vadd.f32 0.0, %v1221
      %v1223 = vpop.f32.mrf.mxu0
      %1224 = vdwg.mxu0
      %v1226 = vsel %vm899, %v858, 0
      %v1229 = vsel %vm899, %v859, 0
      %v1232 = vsel %vm996, %v895, 0
      %1234 = vmatprep.subr.mxu0 0.0
      %1235 = vmatpush1.msra.mxu0 0.0
      %1236 = vmatprep.subr.mxu0 0.0
      %1237 = vmatpush1.msra.mxu0 0.0
      %1238 = vmatprep.subr.mxu0 0.0
      %1239 = vmatpush1.msra.mxu0 0.0
      %1240 = vmatprep.subr.mxu0 0.0
      %1241 = vmatpush1.msra.mxu0 0.0
      %1242 = vmatprep.subr.mxu0 0.0
      %1243 = vmatpush1.msra.mxu0 0.0
      %1244 = vmatprep.subr.mxu0 0.0
      %1245 = vmatpush1.msra.mxu0 0.0
      %1246 = vmatprep.subr.mxu0 0.0
      %1247 = vmatpush1.msra.mxu0 0.0
      %1248 = vmatprep.subr.mxu0 0.0
      %1249 = vmatpush1.msra.mxu0 0.0
      %1250 = vmatprep.subr.mxu0 0.0
      %1251 = vmatpush1.msra.mxu0 0.0
      %1252 = vmatprep.subr.mxu0 0.0
      %1253 = vmatpush1.msra.mxu0 0.0
      %1254 = vmatprep.subr.mxu0 0.0
      %1255 = vmatpush1.msra.mxu0 0.0
      %1256 = vmatprep.subr.mxu0 0.0
      %1257 = vmatpush1.msra.mxu0 0.0
      %1258 = vmatprep.subr.mxu0 0.0
      %1259 = vmatpush1.msra.mxu0 0.0
      %1260 = vmatprep.subr.mxu0 0.0
      %1261 = vmatpush1.msra.mxu0 0.0
      %1262 = vmatprep.subr.mxu0 0.0
      %1263 = vmatpush1.msra.mxu0 %v1232
      %1264 = vmatprep.subr.mxu0 0.0
      %1265 = vmatpush1.msra.mxu0 %v894
      %1266 = vmatprep.subr.mxu0 0.0
      %1267 = vmatpush2.msra.mxu0 0.0
      %1268 = vmatprep.subr.mxu0 0.0
      %1269 = vmatpush2.msra.mxu0 0.0
      %1270 = vmatprep.subr.mxu0 0.0
      %1271 = vmatpush2.msra.mxu0 0.0
      %1272 = vmatprep.subr.mxu0 0.0
      %1273 = vmatpush2.msra.mxu0 0.0
      %1274 = vmatprep.subr.mxu0 0.0
      %1275 = vmatpush2.msra.mxu0 0.0
      %1276 = vmatprep.subr.mxu0 0.0
      %1277 = vmatpush2.msra.mxu0 0.0
      %1278 = vmatprep.subr.mxu0 0.0
      %1279 = vmatpush2.msra.mxu0 0.0
      %1280 = vmatprep.subr.mxu0 0.0
      %1281 = vmatpush2.msra.mxu0 0.0
      %1282 = vmatprep.subr.mxu0 0.0
      %1283 = vmatpush2.msra.mxu0 0.0
      %1284 = vmatprep.subr.mxu0 0.0
      %1285 = vmatpush2.msra.mxu0 0.0
      %1286 = vmatprep.subr.mxu0 0.0
      %1287 = vmatpush2.msra.mxu0 0.0
      %1288 = vmatprep.subr.mxu0 0.0
      %1289 = vmatpush2.msra.mxu0 0.0
      %1290 = vmatprep.subr.mxu0 0.0
      %1291 = vmatpush2.msra.mxu0 0.0
      %1292 = vmatprep.subr.mxu0 0.0
      %1293 = vmatpush2.msra.mxu0 0.0
      %1294 = vmatprep.subr.mxu0 0.0
      %1295 = vmatpush2.msra.mxu0 0.0
      %1296 = vmatprep.subr.mxu0 0.0
      %1297 = vmatpush2.msra.mxu0 0.0
      %1298 = vmatprep.mubr.f32.mxu0 0.0
      %1299 = vmatmul.mubr.f32.gmra.mxu0 %v1226
      %v1300 = vpop.f32.mrf.mxu0
      %v1301 = vadd.f32 %v1067, %v1300
      %v1302 = vpop.f32.mrf.mxu0
      %1303 = vmatprep.mubr.f32.mxu0 0.0
      %1304 = vmatmul.mubr.f32.gmra.mxu0 %v1229
      %v1305 = vpop.f32.mrf.mxu0
      %v1306 = vadd.f32 %v1072, %v1305
      %v1307 = vpop.f32.mrf.mxu0
      %1308 = vmatprep.mubr.f32.mxu0 0.0
      %1309 = vmatmul.mubr.f32.gmra.mxu0 %v901
      %v1310 = vpop.f32.mrf.mxu0
      %v1311 = vadd.f32 %v1077, %v1310
      %v1312 = vpop.f32.mrf.mxu0
      %1313 = vmatprep.mubr.f32.mxu0 0.0
      %1314 = vmatmul.mubr.f32.gmra.mxu0 %v904
      %v1315 = vpop.f32.mrf.mxu0
      %v1316 = vadd.f32 %v1082, %v1315
      %v1317 = vpop.f32.mrf.mxu0
      %1318 = vmatprep.mubr.f32.mxu0 0.0
      %1319 = vmatmul.mubr.f32.gmra.mxu0 %v907
      %v1320 = vpop.f32.mrf.mxu0
      %v1321 = vadd.f32 %v1087, %v1320
      %v1322 = vpop.f32.mrf.mxu0
      %1323 = vmatprep.mubr.f32.mxu0 0.0
      %1324 = vmatmul.mubr.f32.gmra.mxu0 %v910
      %v1325 = vpop.f32.mrf.mxu0
      %v1326 = vadd.f32 %v1092, %v1325
      %v1327 = vpop.f32.mrf.mxu0
      %1328 = vmatprep.mubr.f32.mxu0 0.0
      %1329 = vmatmul.mubr.f32.gmra.mxu0 %v913
      %v1330 = vpop.f32.mrf.mxu0
      %v1331 = vadd.f32 %v1097, %v1330
      %v1332 = vpop.f32.mrf.mxu0
      %1333 = vmatprep.mubr.f32.mxu0 0.0
      %1334 = vmatmul.mubr.f32.gmra.mxu0 %v916
      %v1335 = vpop.f32.mrf.mxu0
      %v1336 = vadd.f32 %v1102, %v1335
      %v1337 = vpop.f32.mrf.mxu0
      %1338 = vmatprep.mubr.f32.mxu0 0.0
      %1339 = vmatmul.mubr.f32.gmra.mxu0 %v919
      %v1340 = vpop.f32.mrf.mxu0
      %v1341 = vadd.f32 %v1107, %v1340
      %v1342 = vpop.f32.mrf.mxu0
      %1343 = vmatprep.mubr.f32.mxu0 0.0
      %1344 = vmatmul.mubr.f32.gmra.mxu0 %v922
      %v1345 = vpop.f32.mrf.mxu0
      %v1346 = vadd.f32 %v1112, %v1345
      %v1347 = vpop.f32.mrf.mxu0
      %1348 = vmatprep.mubr.f32.mxu0 0.0
      %1349 = vmatmul.mubr.f32.gmra.mxu0 %v925
      %v1350 = vpop.f32.mrf.mxu0
      %v1351 = vadd.f32 %v1117, %v1350
      %v1352 = vpop.f32.mrf.mxu0
      %1353 = vmatprep.mubr.f32.mxu0 0.0
      %1354 = vmatmul.mubr.f32.gmra.mxu0 %v928
      %v1355 = vpop.f32.mrf.mxu0
      %v1356 = vadd.f32 %v1122, %v1355
      %v1357 = vpop.f32.mrf.mxu0
      %1358 = vmatprep.mubr.f32.mxu0 0.0
      %1359 = vmatmul.mubr.f32.gmra.mxu0 %v931
      %v1360 = vpop.f32.mrf.mxu0
      %v1361 = vadd.f32 %v1127, %v1360
      %v1362 = vpop.f32.mrf.mxu0
      %1363 = vmatprep.mubr.f32.mxu0 0.0
      %1364 = vmatmul.mubr.f32.gmra.mxu0 %v934
      %v1365 = vpop.f32.mrf.mxu0
      %v1366 = vadd.f32 %v1132, %v1365
      %v1367 = vpop.f32.mrf.mxu0
      %1368 = vmatprep.mubr.f32.mxu0 0.0
      %1369 = vmatmul.mubr.f32.gmra.mxu0 %v937
      %v1370 = vpop.f32.mrf.mxu0
      %v1371 = vadd.f32 %v1137, %v1370
      %v1372 = vpop.f32.mrf.mxu0
      %1373 = vmatprep.mubr.f32.mxu0 0.0
      %1374 = vmatmul.mubr.f32.gmra.mxu0 %v940
      %v1375 = vpop.f32.mrf.mxu0
      %v1376 = vadd.f32 %v1142, %v1375
      %v1377 = vpop.f32.mrf.mxu0
      %1378 = vmatprep.mubr.f32.mxu0 0.0
      %1379 = vmatmul.mubr.f32.gmra.mxu0 %v943
      %v1380 = vpop.f32.mrf.mxu0
      %v1381 = vadd.f32 %v1147, %v1380
      %v1382 = vpop.f32.mrf.mxu0
      %1383 = vmatprep.mubr.f32.mxu0 0.0
      %1384 = vmatmul.mubr.f32.gmra.mxu0 %v946
      %v1385 = vpop.f32.mrf.mxu0
      %v1386 = vadd.f32 %v1152, %v1385
      %v1387 = vpop.f32.mrf.mxu0
      %1388 = vmatprep.mubr.f32.mxu0 0.0
      %1389 = vmatmul.mubr.f32.gmra.mxu0 %v949
      %v1390 = vpop.f32.mrf.mxu0
      %v1391 = vadd.f32 %v1157, %v1390
      %v1392 = vpop.f32.mrf.mxu0
      %1393 = vmatprep.mubr.f32.mxu0 0.0
      %1394 = vmatmul.mubr.f32.gmra.mxu0 %v952
      %v1395 = vpop.f32.mrf.mxu0
      %v1396 = vadd.f32 %v1162, %v1395
      %v1397 = vpop.f32.mrf.mxu0
      %1398 = vmatprep.mubr.f32.mxu0 0.0
      %1399 = vmatmul.mubr.f32.gmra.mxu0 %v955
      %v1400 = vpop.f32.mrf.mxu0
      %v1401 = vadd.f32 %v1167, %v1400
      %v1402 = vpop.f32.mrf.mxu0
      %1403 = vmatprep.mubr.f32.mxu0 0.0
      %1404 = vmatmul.mubr.f32.gmra.mxu0 %v958
      %v1405 = vpop.f32.mrf.mxu0
      %v1406 = vadd.f32 %v1172, %v1405
      %v1407 = vpop.f32.mrf.mxu0
      %1408 = vmatprep.mubr.f32.mxu0 0.0
      %1409 = vmatmul.mubr.f32.gmra.mxu0 %v961
      %v1410 = vpop.f32.mrf.mxu0
      %v1411 = vadd.f32 %v1177, %v1410
      %v1412 = vpop.f32.mrf.mxu0
      %1413 = vmatprep.mubr.f32.mxu0 0.0
      %1414 = vmatmul.mubr.f32.gmra.mxu0 %v964
      %v1415 = vpop.f32.mrf.mxu0
      %v1416 = vadd.f32 %v1182, %v1415
      %v1417 = vpop.f32.mrf.mxu0
      %1418 = vmatprep.mubr.f32.mxu0 0.0
      %1419 = vmatmul.mubr.f32.gmra.mxu0 %v967
      %v1420 = vpop.f32.mrf.mxu0
      %v1421 = vadd.f32 %v1187, %v1420
      %v1422 = vpop.f32.mrf.mxu0
      %1423 = vmatprep.mubr.f32.mxu0 0.0
      %1424 = vmatmul.mubr.f32.gmra.mxu0 %v970
      %v1425 = vpop.f32.mrf.mxu0
      %v1426 = vadd.f32 %v1192, %v1425
      %v1427 = vpop.f32.mrf.mxu0
      %1428 = vmatprep.mubr.f32.mxu0 0.0
      %1429 = vmatmul.mubr.f32.gmra.mxu0 %v973
      %v1430 = vpop.f32.mrf.mxu0
      %v1431 = vadd.f32 %v1197, %v1430
      %v1432 = vpop.f32.mrf.mxu0
      %1433 = vmatprep.mubr.f32.mxu0 0.0
      %1434 = vmatmul.mubr.f32.gmra.mxu0 %v976
      %v1435 = vpop.f32.mrf.mxu0
      %v1436 = vadd.f32 %v1202, %v1435
      %v1437 = vpop.f32.mrf.mxu0
      %1438 = vmatprep.mubr.f32.mxu0 0.0
      %1439 = vmatmul.mubr.f32.gmra.mxu0 %v979
      %v1440 = vpop.f32.mrf.mxu0
      %v1441 = vadd.f32 %v1207, %v1440
      %v1442 = vpop.f32.mrf.mxu0
      %1443 = vmatprep.mubr.f32.mxu0 0.0
      %1444 = vmatmul.mubr.f32.gmra.mxu0 %v982
      %v1445 = vpop.f32.mrf.mxu0
      %v1446 = vadd.f32 %v1212, %v1445
      %v1447 = vpop.f32.mrf.mxu0
      %1448 = vmatprep.mubr.f32.mxu0 0.0
      %1449 = vmatmul.mubr.f32.gmra.mxu0 %v985
      %v1450 = vpop.f32.mrf.mxu0
      %v1451 = vadd.f32 %v1217, %v1450
      %v1452 = vpop.f32.mrf.mxu0
      %1453 = vmatprep.mubr.f32.mxu0 0.0
      %1454 = vmatmul.mubr.f32.gmra.mxu0 %v988
      %v1455 = vpop.f32.mrf.mxu0
      %v1456 = vadd.f32 %v1222, %v1455
      %v1457 = vpop.f32.mrf.mxu0
      %1458 = vdwg.mxu0
      %s1459 = scalar_lea.vmem %s1, 32
      %v1460 = vld [vmem:[%s1459] sm:$0xff]
      %v1461 = vld [vmem:[%s1459 + $0x8] sm:$0xf]
      %v1463 = vsel %vm899, %v892, 0
      %v1466 = vsel %vm899, %v893, 0
      %v1469 = vsel %vm996, %v1461, 0
      %1471 = vmatprep.subr.mxu0 0.0
      %1472 = vmatpush1.msra.mxu0 0.0
      %1473 = vmatprep.subr.mxu0 0.0
      %1474 = vmatpush1.msra.mxu0 0.0
      %1475 = vmatprep.subr.mxu0 0.0
      %1476 = vmatpush1.msra.mxu0 0.0
      %1477 = vmatprep.subr.mxu0 0.0
      %1478 = vmatpush1.msra.mxu0 0.0
      %1479 = vmatprep.subr.mxu0 0.0
      %1480 = vmatpush1.msra.mxu0 0.0
      %1481 = vmatprep.subr.mxu0 0.0
      %1482 = vmatpush1.msra.mxu0 0.0
      %1483 = vmatprep.subr.mxu0 0.0
      %1484 = vmatpush1.msra.mxu0 0.0
      %1485 = vmatprep.subr.mxu0 0.0
      %1486 = vmatpush1.msra.mxu0 0.0
      %1487 = vmatprep.subr.mxu0 0.0
      %1488 = vmatpush1.msra.mxu0 0.0
      %1489 = vmatprep.subr.mxu0 0.0
      %1490 = vmatpush1.msra.mxu0 0.0
      %1491 = vmatprep.subr.mxu0 0.0
      %1492 = vmatpush1.msra.mxu0 0.0
      %1493 = vmatprep.subr.mxu0 0.0
      %1494 = vmatpush1.msra.mxu0 0.0
      %1495 = vmatprep.subr.mxu0 0.0
      %1496 = vmatpush1.msra.mxu0 0.0
      %1497 = vmatprep.subr.mxu0 0.0
      %1498 = vmatpush1.msra.mxu0 0.0
      %1499 = vmatprep.subr.mxu0 0.0
      %1500 = vmatpush1.msra.mxu0 %v1469
      %1501 = vmatprep.subr.mxu0 0.0
      %1502 = vmatpush1.msra.mxu0 %v1460
      %1503 = vmatprep.subr.mxu0 0.0
      %1504 = vmatpush2.msra.mxu0 0.0
      %1505 = vmatprep.subr.mxu0 0.0
      %1506 = vmatpush2.msra.mxu0 0.0
      %1507 = vmatprep.subr.mxu0 0.0
      %1508 = vmatpush2.msra.mxu0 0.0
      %1509 = vmatprep.subr.mxu0 0.0
      %1510 = vmatpush2.msra.mxu0 0.0
      %1511 = vmatprep.subr.mxu0 0.0
      %1512 = vmatpush2.msra.mxu0 0.0
      %1513 = vmatprep.subr.mxu0 0.0
      %1514 = vmatpush2.msra.mxu0 0.0
      %1515 = vmatprep.subr.mxu0 0.0
      %1516 = vmatpush2.msra.mxu0 0.0
      %1517 = vmatprep.subr.mxu0 0.0
      %1518 = vmatpush2.msra.mxu0 0.0
      %1519 = vmatprep.subr.mxu0 0.0
      %1520 = vmatpush2.msra.mxu0 0.0
      %1521 = vmatprep.subr.mxu0 0.0
      %1522 = vmatpush2.msra.mxu0 0.0
      %1523 = vmatprep.subr.mxu0 0.0
      %1524 = vmatpush2.msra.mxu0 0.0
      %1525 = vmatprep.subr.mxu0 0.0
      %1526 = vmatpush2.msra.mxu0 0.0
      %1527 = vmatprep.subr.mxu0 0.0
      %1528 = vmatpush2.msra.mxu0 0.0
      %1529 = vmatprep.subr.mxu0 0.0
      %1530 = vmatpush2.msra.mxu0 0.0
      %1531 = vmatprep.subr.mxu0 0.0
      %1532 = vmatpush2.msra.mxu0 0.0
      %1533 = vmatprep.subr.mxu0 0.0
      %1534 = vmatpush2.msra.mxu0 0.0
      %1535 = vmatprep.mubr.f32.mxu0 0.0
      %1536 = vmatmul.mubr.f32.gmra.mxu0 %v907
      %v1537 = vpop.f32.mrf.mxu0
      %v1538 = vadd.f32 0.0, %v1537
      %v1539 = vpop.f32.mrf.mxu0
      %1540 = vmatprep.mubr.f32.mxu0 0.0
      %1541 = vmatmul.mubr.f32.gmra.mxu0 %v910
      %v1542 = vpop.f32.mrf.mxu0
      %v1543 = vadd.f32 0.0, %v1542
      %v1544 = vpop.f32.mrf.mxu0
      %1545 = vmatprep.mubr.f32.mxu0 0.0
      %1546 = vmatmul.mubr.f32.gmra.mxu0 %v913
      %v1547 = vpop.f32.mrf.mxu0
      %v1548 = vadd.f32 0.0, %v1547
      %v1549 = vpop.f32.mrf.mxu0
      %1550 = vmatprep.mubr.f32.mxu0 0.0
      %1551 = vmatmul.mubr.f32.gmra.mxu0 %v916
      %v1552 = vpop.f32.mrf.mxu0
      %v1553 = vadd.f32 0.0, %v1552
      %v1554 = vpop.f32.mrf.mxu0
      %1555 = vmatprep.mubr.f32.mxu0 0.0
      %1556 = vmatmul.mubr.f32.gmra.mxu0 %v919
      %v1557 = vpop.f32.mrf.mxu0
      %v1558 = vadd.f32 0.0, %v1557
      %v1559 = vpop.f32.mrf.mxu0
      %1560 = vmatprep.mubr.f32.mxu0 0.0
      %1561 = vmatmul.mubr.f32.gmra.mxu0 %v922
      %v1562 = vpop.f32.mrf.mxu0
      %v1563 = vadd.f32 0.0, %v1562
      %v1564 = vpop.f32.mrf.mxu0
      %1565 = vmatprep.mubr.f32.mxu0 0.0
      %1566 = vmatmul.mubr.f32.gmra.mxu0 %v925
      %v1567 = vpop.f32.mrf.mxu0
      %v1568 = vadd.f32 0.0, %v1567
      %v1569 = vpop.f32.mrf.mxu0
      %1570 = vmatprep.mubr.f32.mxu0 0.0
      %1571 = vmatmul.mubr.f32.gmra.mxu0 %v928
      %v1572 = vpop.f32.mrf.mxu0
      %v1573 = vadd.f32 0.0, %v1572
      %v1574 = vpop.f32.mrf.mxu0
      %1575 = vmatprep.mubr.f32.mxu0 0.0
      %1576 = vmatmul.mubr.f32.gmra.mxu0 %v931
      %v1577 = vpop.f32.mrf.mxu0
      %v1578 = vadd.f32 0.0, %v1577
      %v1579 = vpop.f32.mrf.mxu0
      %1580 = vmatprep.mubr.f32.mxu0 0.0
      %1581 = vmatmul.mubr.f32.gmra.mxu0 %v934
      %v1582 = vpop.f32.mrf.mxu0
      %v1583 = vadd.f32 0.0, %v1582
      %v1584 = vpop.f32.mrf.mxu0
      %1585 = vmatprep.mubr.f32.mxu0 0.0
      %1586 = vmatmul.mubr.f32.gmra.mxu0 %v937
      %v1587 = vpop.f32.mrf.mxu0
      %v1588 = vadd.f32 0.0, %v1587
      %v1589 = vpop.f32.mrf.mxu0
      %1590 = vmatprep.mubr.f32.mxu0 0.0
      %1591 = vmatmul.mubr.f32.gmra.mxu0 %v940
      %v1592 = vpop.f32.mrf.mxu0
      %v1593 = vadd.f32 0.0, %v1592
      %v1594 = vpop.f32.mrf.mxu0
      %1595 = vmatprep.mubr.f32.mxu0 0.0
      %1596 = vmatmul.mubr.f32.gmra.mxu0 %v943
      %v1597 = vpop.f32.mrf.mxu0
      %v1598 = vadd.f32 0.0, %v1597
      %v1599 = vpop.f32.mrf.mxu0
      %1600 = vmatprep.mubr.f32.mxu0 0.0
      %1601 = vmatmul.mubr.f32.gmra.mxu0 %v946
      %v1602 = vpop.f32.mrf.mxu0
      %v1603 = vadd.f32 0.0, %v1602
      %v1604 = vpop.f32.mrf.mxu0
      %1605 = vmatprep.mubr.f32.mxu0 0.0
      %1606 = vmatmul.mubr.f32.gmra.mxu0 %v949
      %v1607 = vpop.f32.mrf.mxu0
      %v1608 = vadd.f32 0.0, %v1607
      %v1609 = vpop.f32.mrf.mxu0
      %1610 = vmatprep.mubr.f32.mxu0 0.0
      %1611 = vmatmul.mubr.f32.gmra.mxu0 %v952
      %v1612 = vpop.f32.mrf.mxu0
      %v1613 = vadd.f32 0.0, %v1612
      %v1614 = vpop.f32.mrf.mxu0
      %1615 = vmatprep.mubr.f32.mxu0 0.0
      %1616 = vmatmul.mubr.f32.gmra.mxu0 %v955
      %v1617 = vpop.f32.mrf.mxu0
      %v1618 = vadd.f32 0.0, %v1617
      %v1619 = vpop.f32.mrf.mxu0
      %1620 = vmatprep.mubr.f32.mxu0 0.0
      %1621 = vmatmul.mubr.f32.gmra.mxu0 %v958
      %v1622 = vpop.f32.mrf.mxu0
      %v1623 = vadd.f32 0.0, %v1622
      %v1624 = vpop.f32.mrf.mxu0
      %1625 = vmatprep.mubr.f32.mxu0 0.0
      %1626 = vmatmul.mubr.f32.gmra.mxu0 %v961
      %v1627 = vpop.f32.mrf.mxu0
      %v1628 = vadd.f32 0.0, %v1627
      %v1629 = vpop.f32.mrf.mxu0
      %1630 = vmatprep.mubr.f32.mxu0 0.0
      %1631 = vmatmul.mubr.f32.gmra.mxu0 %v964
      %v1632 = vpop.f32.mrf.mxu0
      %v1633 = vadd.f32 0.0, %v1632
      %v1634 = vpop.f32.mrf.mxu0
      %1635 = vmatprep.mubr.f32.mxu0 0.0
      %1636 = vmatmul.mubr.f32.gmra.mxu0 %v967
      %v1637 = vpop.f32.mrf.mxu0
      %v1638 = vadd.f32 0.0, %v1637
      %v1639 = vpop.f32.mrf.mxu0
      %1640 = vmatprep.mubr.f32.mxu0 0.0
      %1641 = vmatmul.mubr.f32.gmra.mxu0 %v970
      %v1642 = vpop.f32.mrf.mxu0
      %v1643 = vadd.f32 0.0, %v1642
      %v1644 = vpop.f32.mrf.mxu0
      %1645 = vmatprep.mubr.f32.mxu0 0.0
      %1646 = vmatmul.mubr.f32.gmra.mxu0 %v973
      %v1647 = vpop.f32.mrf.mxu0
      %v1648 = vadd.f32 0.0, %v1647
      %v1649 = vpop.f32.mrf.mxu0
      %1650 = vmatprep.mubr.f32.mxu0 0.0
      %1651 = vmatmul.mubr.f32.gmra.mxu0 %v976
      %v1652 = vpop.f32.mrf.mxu0
      %v1653 = vadd.f32 0.0, %v1652
      %v1654 = vpop.f32.mrf.mxu0
      %1655 = vmatprep.mubr.f32.mxu0 0.0
      %1656 = vmatmul.mubr.f32.gmra.mxu0 %v979
      %v1657 = vpop.f32.mrf.mxu0
      %v1658 = vadd.f32 0.0, %v1657
      %v1659 = vpop.f32.mrf.mxu0
      %1660 = vmatprep.mubr.f32.mxu0 0.0
      %1661 = vmatmul.mubr.f32.gmra.mxu0 %v982
      %v1662 = vpop.f32.mrf.mxu0
      %v1663 = vadd.f32 0.0, %v1662
      %v1664 = vpop.f32.mrf.mxu0
      %1665 = vmatprep.mubr.f32.mxu0 0.0
      %1666 = vmatmul.mubr.f32.gmra.mxu0 %v985
      %v1667 = vpop.f32.mrf.mxu0
      %v1668 = vadd.f32 0.0, %v1667
      %v1669 = vpop.f32.mrf.mxu0
      %1670 = vmatprep.mubr.f32.mxu0 0.0
      %1671 = vmatmul.mubr.f32.gmra.mxu0 %v988
      %v1672 = vpop.f32.mrf.mxu0
      %v1673 = vadd.f32 0.0, %v1672
      %v1674 = vpop.f32.mrf.mxu0
      %1675 = vmatprep.mubr.f32.mxu0 0.0
      %1676 = vmatmul.mubr.f32.gmra.mxu0 %v991
      %v1677 = vpop.f32.mrf.mxu0
      %v1678 = vadd.f32 0.0, %v1677
      %v1679 = vpop.f32.mrf.mxu0
      %1680 = vmatprep.mubr.f32.mxu0 0.0
      %1681 = vmatmul.mubr.f32.gmra.mxu0 %v994
      %v1682 = vpop.f32.mrf.mxu0
      %v1683 = vadd.f32 0.0, %v1682
      %v1684 = vpop.f32.mrf.mxu0
      %1685 = vmatprep.mubr.f32.mxu0 0.0
      %1686 = vmatmul.mubr.f32.gmra.mxu0 %v1463
      %v1687 = vpop.f32.mrf.mxu0
      %v1688 = vadd.f32 0.0, %v1687
      %v1689 = vpop.f32.mrf.mxu0
      %1690 = vmatprep.mubr.f32.mxu0 0.0
      %1691 = vmatmul.mubr.f32.gmra.mxu0 %v1466
      %v1692 = vpop.f32.mrf.mxu0
      %v1693 = vadd.f32 0.0, %v1692
      %v1694 = vpop.f32.mrf.mxu0
      %1695 = vdwg.mxu0
      %v1696 = vadd.f32 %v1301, %v1538
      %v1697 = vadd.f32 %v1306, %v1543
      %v1698 = vadd.f32 %v1311, %v1548
      %v1699 = vadd.f32 %v1316, %v1553
      %v1700 = vadd.f32 %v1321, %v1558
      %v1701 = vadd.f32 %v1326, %v1563
      %v1702 = vadd.f32 %v1331, %v1568
      %v1703 = vadd.f32 %v1336, %v1573
      %v1704 = vadd.f32 %v1341, %v1578
      %v1705 = vadd.f32 %v1346, %v1583
      %v1706 = vadd.f32 %v1351, %v1588
      %v1707 = vadd.f32 %v1356, %v1593
      %v1708 = vadd.f32 %v1361, %v1598
      %v1709 = vadd.f32 %v1366, %v1603
      %v1710 = vadd.f32 %v1371, %v1608
      %v1711 = vadd.f32 %v1376, %v1613
      %v1712 = vadd.f32 %v1381, %v1618
      %v1713 = vadd.f32 %v1386, %v1623
      %v1714 = vadd.f32 %v1391, %v1628
      %v1715 = vadd.f32 %v1396, %v1633
      %v1716 = vadd.f32 %v1401, %v1638
      %v1717 = vadd.f32 %v1406, %v1643
      %v1718 = vadd.f32 %v1411, %v1648
      %v1719 = vadd.f32 %v1416, %v1653
      %v1720 = vadd.f32 %v1421, %v1658
      %v1721 = vadd.f32 %v1426, %v1663
      %v1722 = vadd.f32 %v1431, %v1668
      %v1723 = vadd.f32 %v1436, %v1673
      %v1724 = vadd.f32 %v1441, %v1678
      %v1725 = vadd.f32 %v1446, %v1683
      %v1726 = vadd.f32 %v1451, %v1688
      %v1727 = vadd.f32 %v1456, %v1693
      %v1728 = vsel %vm204, %v1696, 0.0
      %v1729 = vsel %vm204, %v1697, 0.0
      %v1730 = vadd.f32 %v1728, %v1729
      %v1731 = vsel %vm204, %v1698, 0.0
      %v1732 = vadd.f32 %v1730, %v1731
      %v1733 = vsel %vm204, %v1699, 0.0
      %v1734 = vadd.f32 %v1732, %v1733
      %v1735 = vsel %vm204, %v1700, 0.0
      %v1736 = vadd.f32 %v1734, %v1735
      %v1737 = vsel %vm204, %v1701, 0.0
      %v1738 = vadd.f32 %v1736, %v1737
      %v1739 = vsel %vm204, %v1702, 0.0
      %v1740 = vadd.f32 %v1738, %v1739
      %v1741 = vsel %vm204, %v1703, 0.0
      %v1742 = vadd.f32 %v1740, %v1741
      %v1743 = vsel %vm204, %v1704, 0.0
      %v1744 = vadd.f32 %v1742, %v1743
      %v1745 = vsel %vm204, %v1705, 0.0
      %v1746 = vadd.f32 %v1744, %v1745
      %v1747 = vsel %vm204, %v1706, 0.0
      %v1748 = vadd.f32 %v1746, %v1747
      %v1749 = vsel %vm204, %v1707, 0.0
      %v1750 = vadd.f32 %v1748, %v1749
      %v1751 = vsel %vm204, %v1708, 0.0
      %v1752 = vadd.f32 %v1750, %v1751
      %v1753 = vsel %vm204, %v1709, 0.0
      %v1754 = vadd.f32 %v1752, %v1753
      %v1755 = vsel %vm204, %v1710, 0.0
      %v1756 = vadd.f32 %v1754, %v1755
      %v1757 = vsel %vm204, %v1711, 0.0
      %v1758 = vadd.f32 %v1756, %v1757
      %v1759 = vsel %vm204, %v1712, 0.0
      %v1760 = vadd.f32 %v1758, %v1759
      %v1761 = vsel %vm204, %v1713, 0.0
      %v1762 = vadd.f32 %v1760, %v1761
      %v1763 = vsel %vm204, %v1714, 0.0
      %v1764 = vadd.f32 %v1762, %v1763
      %v1765 = vsel %vm204, %v1715, 0.0
      %v1766 = vadd.f32 %v1764, %v1765
      %v1767 = vsel %vm204, %v1716, 0.0
      %v1768 = vadd.f32 %v1766, %v1767
      %v1769 = vsel %vm204, %v1717, 0.0
      %v1770 = vadd.f32 %v1768, %v1769
      %v1771 = vsel %vm204, %v1718, 0.0
      %v1772 = vadd.f32 %v1770, %v1771
      %v1773 = vsel %vm204, %v1719, 0.0
      %v1774 = vadd.f32 %v1772, %v1773
      %v1775 = vsel %vm204, %v1720, 0.0
      %v1776 = vadd.f32 %v1774, %v1775
      %v1777 = vsel %vm204, %v1721, 0.0
      %v1778 = vadd.f32 %v1776, %v1777
      %v1779 = vsel %vm204, %v1722, 0.0
      %v1780 = vadd.f32 %v1778, %v1779
      %v1781 = vsel %vm204, %v1723, 0.0
      %v1782 = vadd.f32 %v1780, %v1781
      %v1783 = vsel %vm204, %v1724, 0.0
      %v1784 = vadd.f32 %v1782, %v1783
      %v1785 = vsel %vm204, %v1725, 0.0
      %v1786 = vadd.f32 %v1784, %v1785
      %v1787 = vsel %vm204, %v1726, 0.0
      %v1788 = vadd.f32 %v1786, %v1787
      %v1789 = vsel %vm204, %v1727, 0.0
      %v1790 = vadd.f32 %v1788, %v1789
      %v1791 = vrot.slane %v1790, 4
      %v1792 = vadd.f32 %v1790, %v1791
      %v1793 = vrot.slane %v1792, 2
      %v1794 = vadd.f32 %v1792, %v1793
      %v1795 = vrot.slane %v1794, 1
      %v1796 = vadd.f32 %v1794, %v1795
      %v1797 = vmul.f32 %v1696, %v1696
      %v1798 = vmul.f32 %v1697, %v1697
      %v1799 = vmul.f32 %v1698, %v1698
      %v1800 = vmul.f32 %v1699, %v1699
      %v1801 = vmul.f32 %v1700, %v1700
      %v1802 = vmul.f32 %v1701, %v1701
      %v1803 = vmul.f32 %v1702, %v1702
      %v1804 = vmul.f32 %v1703, %v1703
      %v1805 = vmul.f32 %v1704, %v1704
      %v1806 = vmul.f32 %v1705, %v1705
      %v1807 = vmul.f32 %v1706, %v1706
      %v1808 = vmul.f32 %v1707, %v1707
      %v1809 = vmul.f32 %v1708, %v1708
      %v1810 = vmul.f32 %v1709, %v1709
      %v1811 = vmul.f32 %v1710, %v1710
      %v1812 = vmul.f32 %v1711, %v1711
      %v1813 = vmul.f32 %v1712, %v1712
      %v1814 = vmul.f32 %v1713, %v1713
      %v1815 = vmul.f32 %v1714, %v1714
      %v1816 = vmul.f32 %v1715, %v1715
      %v1817 = vmul.f32 %v1716, %v1716
      %v1818 = vmul.f32 %v1717, %v1717
      %v1819 = vmul.f32 %v1718, %v1718
      %v1820 = vmul.f32 %v1719, %v1719
      %v1821 = vmul.f32 %v1720, %v1720
      %v1822 = vmul.f32 %v1721, %v1721
      %v1823 = vmul.f32 %v1722, %v1722
      %v1824 = vmul.f32 %v1723, %v1723
      %v1825 = vmul.f32 %v1724, %v1724
      %v1826 = vmul.f32 %v1725, %v1725
      %v1827 = vmul.f32 %v1726, %v1726
      %v1828 = vmul.f32 %v1727, %v1727
      %v1829 = vsel %vm204, %v1797, 0.0
      %v1830 = vsel %vm204, %v1798, 0.0
      %v1831 = vadd.f32 %v1829, %v1830
      %v1832 = vsel %vm204, %v1799, 0.0
      %v1833 = vadd.f32 %v1831, %v1832
      %v1834 = vsel %vm204, %v1800, 0.0
      %v1835 = vadd.f32 %v1833, %v1834
      %v1836 = vsel %vm204, %v1801, 0.0
      %v1837 = vadd.f32 %v1835, %v1836
      %v1838 = vsel %vm204, %v1802, 0.0
      %v1839 = vadd.f32 %v1837, %v1838
      %v1840 = vsel %vm204, %v1803, 0.0
      %v1841 = vadd.f32 %v1839, %v1840
      %v1842 = vsel %vm204, %v1804, 0.0
      %v1843 = vadd.f32 %v1841, %v1842
      %v1844 = vsel %vm204, %v1805, 0.0
      %v1845 = vadd.f32 %v1843, %v1844
      %v1846 = vsel %vm204, %v1806, 0.0
      %v1847 = vadd.f32 %v1845, %v1846
      %v1848 = vsel %vm204, %v1807, 0.0
      %v1849 = vadd.f32 %v1847, %v1848
      %v1850 = vsel %vm204, %v1808, 0.0
      %v1851 = vadd.f32 %v1849, %v1850
      %v1852 = vsel %vm204, %v1809, 0.0
      %v1853 = vadd.f32 %v1851, %v1852
      %v1854 = vsel %vm204, %v1810, 0.0
      %v1855 = vadd.f32 %v1853, %v1854
      %v1856 = vsel %vm204, %v1811, 0.0
      %v1857 = vadd.f32 %v1855, %v1856
      %v1858 = vsel %vm204, %v1812, 0.0
      %v1859 = vadd.f32 %v1857, %v1858
      %v1860 = vsel %vm204, %v1813, 0.0
      %v1861 = vadd.f32 %v1859, %v1860
      %v1862 = vsel %vm204, %v1814, 0.0
      %v1863 = vadd.f32 %v1861, %v1862
      %v1864 = vsel %vm204, %v1815, 0.0
      %v1865 = vadd.f32 %v1863, %v1864
      %v1866 = vsel %vm204, %v1816, 0.0
      %v1867 = vadd.f32 %v1865, %v1866
      %v1868 = vsel %vm204, %v1817, 0.0
      %v1869 = vadd.f32 %v1867, %v1868
      %v1870 = vsel %vm204, %v1818, 0.0
      %v1871 = vadd.f32 %v1869, %v1870
      %v1872 = vsel %vm204, %v1819, 0.0
      %v1873 = vadd.f32 %v1871, %v1872
      %v1874 = vsel %vm204, %v1820, 0.0
      %v1875 = vadd.f32 %v1873, %v1874
      %v1876 = vsel %vm204, %v1821, 0.0
      %v1877 = vadd.f32 %v1875, %v1876
      %v1878 = vsel %vm204, %v1822, 0.0
      %v1879 = vadd.f32 %v1877, %v1878
      %v1880 = vsel %vm204, %v1823, 0.0
      %v1881 = vadd.f32 %v1879, %v1880
      %v1882 = vsel %vm204, %v1824, 0.0
      %v1883 = vadd.f32 %v1881, %v1882
      %v1884 = vsel %vm204, %v1825, 0.0
      %v1885 = vadd.f32 %v1883, %v1884
      %v1886 = vsel %vm204, %v1826, 0.0
      %v1887 = vadd.f32 %v1885, %v1886
      %v1888 = vsel %vm204, %v1827, 0.0
      %v1889 = vadd.f32 %v1887, %v1888
      %v1890 = vsel %vm204, %v1828, 0.0
      %v1891 = vadd.f32 %v1889, %v1890
      %v1892 = vrot.slane %v1891, 4
      %v1893 = vadd.f32 %v1891, %v1892
      %v1894 = vrot.slane %v1893, 2
      %v1895 = vadd.f32 %v1893, %v1894
      %v1896 = vrot.slane %v1895, 1
      %v1897 = vadd.f32 %v1895, %v1896
      %v1898 = vmul.f32 %v1796, 0.00390625
      %v1899 = vmul.f32 %v1897, 0.00390625
      %v1900 = vmul.f32 %v1898, %v1898
      %v1901 = vsub.f32 %v1899, %v1900
      %v1902 = vmax.f32 %v1901, 0.0
      %v1903 = vsub.f32 %v1696, %v1898
      %v1904 = vsub.f32 %v1697, %v1898
      %v1905 = vsub.f32 %v1698, %v1898
      %v1906 = vsub.f32 %v1699, %v1898
      %v1907 = vsub.f32 %v1700, %v1898
      %v1908 = vsub.f32 %v1701, %v1898
      %v1909 = vsub.f32 %v1702, %v1898
      %v1910 = vsub.f32 %v1703, %v1898
      %v1911 = vsub.f32 %v1704, %v1898
      %v1912 = vsub.f32 %v1705, %v1898
      %v1913 = vsub.f32 %v1706, %v1898
      %v1914 = vsub.f32 %v1707, %v1898
      %v1915 = vsub.f32 %v1708, %v1898
      %v1916 = vsub.f32 %v1709, %v1898
      %v1917 = vsub.f32 %v1710, %v1898
      %v1918 = vsub.f32 %v1711, %v1898
      %v1919 = vsub.f32 %v1712, %v1898
      %v1920 = vsub.f32 %v1713, %v1898
      %v1921 = vsub.f32 %v1714, %v1898
      %v1922 = vsub.f32 %v1715, %v1898
      %v1923 = vsub.f32 %v1716, %v1898
      %v1924 = vsub.f32 %v1717, %v1898
      %v1925 = vsub.f32 %v1718, %v1898
      %v1926 = vsub.f32 %v1719, %v1898
      %v1927 = vsub.f32 %v1720, %v1898
      %v1928 = vsub.f32 %v1721, %v1898
      %v1929 = vsub.f32 %v1722, %v1898
      %v1930 = vsub.f32 %v1723, %v1898
      %v1931 = vsub.f32 %v1724, %v1898
      %v1932 = vsub.f32 %v1725, %v1898
      %v1933 = vsub.f32 %v1726, %v1898
      %v1934 = vsub.f32 %v1727, %v1898
      %v1935 = vadd.f32 %v1902, 1e-05
      %v1936 = vrsqrt.pop %v1935
      %v1937 = vmul.f32 %v1903, %v1936
      %v1938 = vmul.f32 %v1904, %v1936
      %v1939 = vmul.f32 %v1905, %v1936
      %v1940 = vmul.f32 %v1906, %v1936
      %v1941 = vmul.f32 %v1907, %v1936
      %v1942 = vmul.f32 %v1908, %v1936
      %v1943 = vmul.f32 %v1909, %v1936
      %v1944 = vmul.f32 %v1910, %v1936
      %v1945 = vmul.f32 %v1911, %v1936
      %v1946 = vmul.f32 %v1912, %v1936
      %v1947 = vmul.f32 %v1913, %v1936
      %v1948 = vmul.f32 %v1914, %v1936
      %v1949 = vmul.f32 %v1915, %v1936
      %v1950 = vmul.f32 %v1916, %v1936
      %v1951 = vmul.f32 %v1917, %v1936
      %v1952 = vmul.f32 %v1918, %v1936
      %v1953 = vmul.f32 %v1919, %v1936
      %v1954 = vmul.f32 %v1920, %v1936
      %v1955 = vmul.f32 %v1921, %v1936
      %v1956 = vmul.f32 %v1922, %v1936
      %v1957 = vmul.f32 %v1923, %v1936
      %v1958 = vmul.f32 %v1924, %v1936
      %v1959 = vmul.f32 %v1925, %v1936
      %v1960 = vmul.f32 %v1926, %v1936
      %v1961 = vmul.f32 %v1927, %v1936
      %v1962 = vmul.f32 %v1928, %v1936
      %v1963 = vmul.f32 %v1929, %v1936
      %v1964 = vmul.f32 %v1930, %v1936
      %v1965 = vmul.f32 %v1931, %v1936
      %v1966 = vmul.f32 %v1932, %v1936
      %v1967 = vmul.f32 %v1933, %v1936
      %v1968 = vmul.f32 %v1934, %v1936
      %v1969 = vmax.f32 %v1937, 0.0
      %v1970 = vmax.f32 %v1938, 0.0
      %v1971 = vmax.f32 %v1939, 0.0
      %v1972 = vmax.f32 %v1940, 0.0
      %v1973 = vmax.f32 %v1941, 0.0
      %v1974 = vmax.f32 %v1942, 0.0
      %v1975 = vmax.f32 %v1943, 0.0
      %v1976 = vmax.f32 %v1944, 0.0
      %v1977 = vmax.f32 %v1945, 0.0
      %v1978 = vmax.f32 %v1946, 0.0
      %v1979 = vmax.f32 %v1947, 0.0
      %v1980 = vmax.f32 %v1948, 0.0
      %v1981 = vmax.f32 %v1949, 0.0
      %v1982 = vmax.f32 %v1950, 0.0
      %v1983 = vmax.f32 %v1951, 0.0
      %v1984 = vmax.f32 %v1952, 0.0
      %v1985 = vmax.f32 %v1953, 0.0
      %v1986 = vmax.f32 %v1954, 0.0
      %v1987 = vmax.f32 %v1955, 0.0
      %v1988 = vmax.f32 %v1956, 0.0
      %v1989 = vmax.f32 %v1957, 0.0
      %v1990 = vmax.f32 %v1958, 0.0
      %v1991 = vmax.f32 %v1959, 0.0
      %v1992 = vmax.f32 %v1960, 0.0
      %v1993 = vmax.f32 %v1961, 0.0
      %v1994 = vmax.f32 %v1962, 0.0
      %v1995 = vmax.f32 %v1963, 0.0
      %v1996 = vmax.f32 %v1964, 0.0
      %v1997 = vmax.f32 %v1965, 0.0
      %v1998 = vmax.f32 %v1966, 0.0
      %v1999 = vmax.f32 %v1967, 0.0
      %v2000 = vmax.f32 %v1968, 0.0
      %2001 = vst.msk [vmem:[%s203 + $0x1] sm:$0xff] %vm204, %v1969
      %2002 = vst.msk [vmem:[%s203 + $0x9] sm:$0xff] %vm204, %v1970
      %2003 = vst.msk [vmem:[%s203 + $0x19] sm:$0xff] %vm204, %v1971
      %2004 = vst.msk [vmem:[%s203 + $0x21] sm:$0xff] %vm204, %v1972
      %2005 = vst.msk [vmem:[%s203 + $0x31] sm:$0xff] %vm204, %v1973
      %2006 = vst.msk [vmem:[%s203 + $0x39] sm:$0xff] %vm204, %v1974
      %2007 = vst.msk [vmem:[%s203 + $0x49] sm:$0xff] %vm204, %v1975
      %2008 = vst.msk [vmem:[%s203 + $0x51] sm:$0xff] %vm204, %v1976
      %2009 = vst.msk [vmem:[%s203 + $0x61] sm:$0xff] %vm204, %v1977
      %2010 = vst.msk [vmem:[%s203 + $0x69] sm:$0xff] %vm204, %v1978
      %2011 = vst.msk [vmem:[%s203 + $0x79] sm:$0xff] %vm204, %v1979
      %2012 = vst.msk [vmem:[%s203 + $0x81] sm:$0xff] %vm204, %v1980
      %2013 = vst.msk [vmem:[%s203 + $0x91] sm:$0xff] %vm204, %v1981
      %2014 = vst.msk [vmem:[%s203 + $0x99] sm:$0xff] %vm204, %v1982
      %2015 = vst.msk [vmem:[%s203 + $0xa9] sm:$0xff] %vm204, %v1983
      %2016 = vst.msk [vmem:[%s203 + $0xb1] sm:$0xff] %vm204, %v1984
      %2017 = vst.msk [vmem:[%s203 + $0xc1] sm:$0xff] %vm204, %v1985
      %2018 = vst.msk [vmem:[%s203 + $0xc9] sm:$0xff] %vm204, %v1986
      %2019 = vst.msk [vmem:[%s203 + $0xd9] sm:$0xff] %vm204, %v1987
      %2020 = vst.msk [vmem:[%s203 + $0xe1] sm:$0xff] %vm204, %v1988
      %2021 = vst.msk [vmem:[%s203 + $0xf1] sm:$0xff] %vm204, %v1989
      %2022 = vst.msk [vmem:[%s203 + $0xf9] sm:$0xff] %vm204, %v1990
      %2023 = vst.msk [vmem:[%s203 + $0x109] sm:$0xff] %vm204, %v1991
      %2024 = vst.msk [vmem:[%s203 + $0x111] sm:$0xff] %vm204, %v1992
      %2025 = vst.msk [vmem:[%s203 + $0x121] sm:$0xff] %vm204, %v1993
      %2026 = vst.msk [vmem:[%s203 + $0x129] sm:$0xff] %vm204, %v1994
      %2027 = vst.msk [vmem:[%s203 + $0x139] sm:$0xff] %vm204, %v1995
      %2028 = vst.msk [vmem:[%s203 + $0x141] sm:$0xff] %vm204, %v1996
      %2029 = vst.msk [vmem:[%s203 + $0x151] sm:$0xff] %vm204, %v1997
      %2030 = vst.msk [vmem:[%s203 + $0x159] sm:$0xff] %vm204, %v1998
      %2031 = vst.msk [vmem:[%s203 + $0x169] sm:$0xff] %vm204, %v1999
      %2032 = vst.msk [vmem:[%s203 + $0x171] sm:$0xff] %vm204, %v2000
      %2033 = vst.msk [vmem:[#allocation2 + $0x1] sm:$0xff] %vm204, %v1971
      %2034 = vst.msk [vmem:[#allocation2 + $0x9] sm:$0xff] %vm204, %v1972
      %2035 = vst.msk [vmem:[%s239 + $0x1] sm:$0xff] %vm204, %v1997
      %2036 = vst.msk [vmem:[%s239 + $0x9] sm:$0xff] %vm204, %v1998
      %v2037 = vld [vmem:[#allocation2 + $0x2] sm:$0x1]
      %v2038 = vld [vmem:[#allocation2 + $0x1a] sm:$0x1]
      %v2039 = vld [vmem:[#allocation2 + $0x32] sm:$0x1]
      %v2040 = vld [vmem:[#allocation2 + $0x4a] sm:$0x1]
      %v2041 = vld [vmem:[#allocation2 + $0x62] sm:$0x1]
      %v2042 = vld [vmem:[#allocation2 + $0x7a] sm:$0x1]
      %v2043 = vld [vmem:[#allocation2 + $0x92] sm:$0x1]
      %v2044 = vld [vmem:[#allocation2 + $0xaa] sm:$0x1]
      %v2045 = vld [vmem:[#allocation2 + $0xc2] sm:$0x1]
      %v2046 = vld [vmem:[#allocation2 + $0xda] sm:$0x1]
      %v2047 = vld [vmem:[#allocation2 + $0xf2] sm:$0x1]
      %v2048 = vld [vmem:[#allocation2 + $0x10a] sm:$0x1]
      %v2049 = vld [vmem:[#allocation2 + $0x122] sm:$0x1]
      %v2050 = vld [vmem:[#allocation2 + $0x13a] sm:$0x1]
      %v2051 = vld [vmem:[#allocation2 + $0x152] sm:$0x1]
      %v2052 = vld [vmem:[#allocation2 + $0x16a] sm:$0x1]
      %v2053 = vld [vmem:[#allocation2 + $0x182] sm:$0x1]
      %v2054 = vld [vmem:[#allocation2 + $0x19a] sm:$0x1]
      %2055 = vst.msk [vmem:[#allocation2] sm:$0x1] %vm260, %v2037
      %2056 = vst.msk [vmem:[#allocation2 + $0x18] sm:$0x1] %vm260, %v2038
      %2057 = vst.msk [vmem:[#allocation2 + $0x30] sm:$0x1] %vm260, %v2039
      %2058 = vst.msk [vmem:[#allocation2 + $0x48] sm:$0x1] %vm260, %v2040
      %2059 = vst.msk [vmem:[#allocation2 + $0x60] sm:$0x1] %vm260, %v2041
      %2060 = vst.msk [vmem:[#allocation2 + $0x78] sm:$0x1] %vm260, %v2042
      %2061 = vst.msk [vmem:[#allocation2 + $0x90] sm:$0x1] %vm260, %v2043
      %2062 = vst.msk [vmem:[#allocation2 + $0xa8] sm:$0x1] %vm260, %v2044
      %2063 = vst.msk [vmem:[#allocation2 + $0xc0] sm:$0x1] %vm260, %v2045
      %2064 = vst.msk [vmem:[#allocation2 + $0xd8] sm:$0x1] %vm260, %v2046
      %2065 = vst.msk [vmem:[#allocation2 + $0xf0] sm:$0x1] %vm260, %v2047
      %2066 = vst.msk [vmem:[#allocation2 + $0x108] sm:$0x1] %vm260, %v2048
      %2067 = vst.msk [vmem:[#allocation2 + $0x120] sm:$0x1] %vm260, %v2049
      %2068 = vst.msk [vmem:[#allocation2 + $0x138] sm:$0x1] %vm260, %v2050
      %2069 = vst.msk [vmem:[#allocation2 + $0x150] sm:$0x1] %vm260, %v2051
      %2070 = vst.msk [vmem:[#allocation2 + $0x168] sm:$0x1] %vm260, %v2052
      %2071 = vst.msk [vmem:[#allocation2 + $0x180] sm:$0x1] %vm260, %v2053
      %2072 = vst.msk [vmem:[#allocation2 + $0x198] sm:$0x1] %vm260, %v2054
      %v2073 = vld [vmem:[#allocation2 + $0xf] sm:$0x1]
      %v2074 = vld [vmem:[#allocation2 + $0x27] sm:$0x1]
      %v2075 = vld [vmem:[#allocation2 + $0x3f] sm:$0x1]
      %v2076 = vld [vmem:[#allocation2 + $0x57] sm:$0x1]
      %v2077 = vld [vmem:[#allocation2 + $0x6f] sm:$0x1]
      %v2078 = vld [vmem:[#allocation2 + $0x87] sm:$0x1]
      %v2079 = vld [vmem:[#allocation2 + $0x9f] sm:$0x1]
      %v2080 = vld [vmem:[#allocation2 + $0xb7] sm:$0x1]
      %v2081 = vld [vmem:[#allocation2 + $0xcf] sm:$0x1]
      %v2082 = vld [vmem:[#allocation2 + $0xe7] sm:$0x1]
      %v2083 = vld [vmem:[#allocation2 + $0xff] sm:$0x1]
      %v2084 = vld [vmem:[#allocation2 + $0x117] sm:$0x1]
      %v2085 = vld [vmem:[#allocation2 + $0x12f] sm:$0x1]
      %v2086 = vld [vmem:[#allocation2 + $0x147] sm:$0x1]
      %v2087 = vld [vmem:[#allocation2 + $0x15f] sm:$0x1]
      %v2088 = vld [vmem:[#allocation2 + $0x177] sm:$0x1]
      %v2089 = vld [vmem:[#allocation2 + $0x18f] sm:$0x1]
      %v2090 = vld [vmem:[#allocation2 + $0x1a7] sm:$0x1]
      %2091 = vst.msk [vmem:[#allocation2 + $0x11] sm:$0x1] %vm260, %v2073
      %2092 = vst.msk [vmem:[#allocation2 + $0x29] sm:$0x1] %vm260, %v2074
      %2093 = vst.msk [vmem:[#allocation2 + $0x41] sm:$0x1] %vm260, %v2075
      %2094 = vst.msk [vmem:[#allocation2 + $0x59] sm:$0x1] %vm260, %v2076
      %2095 = vst.msk [vmem:[#allocation2 + $0x71] sm:$0x1] %vm260, %v2077
      %2096 = vst.msk [vmem:[#allocation2 + $0x89] sm:$0x1] %vm260, %v2078
      %2097 = vst.msk [vmem:[#allocation2 + $0xa1] sm:$0x1] %vm260, %v2079
      %2098 = vst.msk [vmem:[#allocation2 + $0xb9] sm:$0x1] %vm260, %v2080
      %2099 = vst.msk [vmem:[#allocation2 + $0xd1] sm:$0x1] %vm260, %v2081
      %2100 = vst.msk [vmem:[#allocation2 + $0xe9] sm:$0x1] %vm260, %v2082
      %2101 = vst.msk [vmem:[#allocation2 + $0x101] sm:$0x1] %vm260, %v2083
      %2102 = vst.msk [vmem:[#allocation2 + $0x119] sm:$0x1] %vm260, %v2084
      %2103 = vst.msk [vmem:[#allocation2 + $0x131] sm:$0x1] %vm260, %v2085
      %2104 = vst.msk [vmem:[#allocation2 + $0x149] sm:$0x1] %vm260, %v2086
      %2105 = vst.msk [vmem:[#allocation2 + $0x161] sm:$0x1] %vm260, %v2087
      %2106 = vst.msk [vmem:[#allocation2 + $0x179] sm:$0x1] %vm260, %v2088
      %2107 = vst.msk [vmem:[#allocation2 + $0x191] sm:$0x1] %vm260, %v2089
      %2108 = vst.msk [vmem:[#allocation2 + $0x1a9] sm:$0x1] %vm260, %v2090
      %v2109 = vld [vmem:[#allocation2] sm:$0xff]
      %v2110 = vld [vmem:[#allocation2 + $0x8] sm:$0xff]
      %v2111 = vld [vmem:[#allocation2 + $0x10] sm:$0x3]
      %v2112 = vld [vmem:[#allocation2 + $0x18] sm:$0xff]
      %v2113 = vld [vmem:[#allocation2 + $0x20] sm:$0xff]
      %v2114 = vld [vmem:[#allocation2 + $0x28] sm:$0x3]
      %v2115 = vld [vmem:[#allocation2 + $0x30] sm:$0xff]
      %v2116 = vld [vmem:[#allocation2 + $0x38] sm:$0xff]
      %v2117 = vld [vmem:[#allocation2 + $0x40] sm:$0x3]
      %v2118 = vld [vmem:[#allocation2 + $0x48] sm:$0xff]
      %v2119 = vld [vmem:[#allocation2 + $0x50] sm:$0xff]
      %v2120 = vld [vmem:[#allocation2 + $0x58] sm:$0x3]
      %v2121 = vld [vmem:[#allocation2 + $0x60] sm:$0xff]
      %v2122 = vld [vmem:[#allocation2 + $0x68] sm:$0xff]
      %v2123 = vld [vmem:[#allocation2 + $0x70] sm:$0x3]
      %v2124 = vld [vmem:[#allocation2 + $0x78] sm:$0xff]
      %v2125 = vld [vmem:[#allocation2 + $0x80] sm:$0xff]
      %v2126 = vld [vmem:[#allocation2 + $0x88] sm:$0x3]
      %v2127 = vld [vmem:[#allocation2 + $0x90] sm:$0xff]
      %v2128 = vld [vmem:[#allocation2 + $0x98] sm:$0xff]
      %v2129 = vld [vmem:[#allocation2 + $0xa0] sm:$0x3]
      %v2130 = vld [vmem:[#allocation2 + $0xa8] sm:$0xff]
      %v2131 = vld [vmem:[#allocation2 + $0xb0] sm:$0xff]
      %v2132 = vld [vmem:[#allocation2 + $0xb8] sm:$0x3]
      %v2133 = vld [vmem:[#allocation2 + $0xc0] sm:$0xff]
      %v2134 = vld [vmem:[#allocation2 + $0xc8] sm:$0xff]
      %v2135 = vld [vmem:[#allocation2 + $0xd0] sm:$0x3]
      %v2136 = vld [vmem:[#allocation2 + $0xd8] sm:$0xff]
      %v2137 = vld [vmem:[#allocation2 + $0xe0] sm:$0xff]
      %v2138 = vld [vmem:[#allocation2 + $0xe8] sm:$0x3]
      %v2139 = vld [vmem:[#allocation2 + $0xf0] sm:$0xff]
      %v2140 = vld [vmem:[#allocation2 + $0xf8] sm:$0xff]
      %v2141 = vld [vmem:[#allocation2 + $0x100] sm:$0x3]
      %v2142 = vld [vmem:[#allocation2 + $0x108] sm:$0xff]
      %v2143 = vld [vmem:[#allocation2 + $0x110] sm:$0xff]
      %v2144 = vld [vmem:[#allocation2 + $0x118] sm:$0x3]
      %v2145 = vld [vmem:[#allocation2 + $0x120] sm:$0xff]
      %v2146 = vld [vmem:[#allocation2 + $0x128] sm:$0xff]
      %v2147 = vld [vmem:[#allocation2 + $0x130] sm:$0x3]
      %v2148 = vld [vmem:[#allocation2 + $0x138] sm:$0xff]
      %v2149 = vld [vmem:[#allocation2 + $0x140] sm:$0xff]
      %v2150 = vld [vmem:[#allocation2 + $0x148] sm:$0x3]
      %v2151 = vld [vmem:[#allocation2 + $0x150] sm:$0xff]
      %v2152 = vld [vmem:[#allocation2 + $0x158] sm:$0xff]
      %v2153 = vld [vmem:[#allocation2 + $0x160] sm:$0x3]
      %v2154 = vld [vmem:[#allocation2 + $0x168] sm:$0xff]
      %v2155 = vld [vmem:[#allocation2 + $0x170] sm:$0xff]
      %v2156 = vld [vmem:[#allocation2 + $0x178] sm:$0x3]
      %v2157 = vld [vmem:[#allocation2 + $0x180] sm:$0xff]
      %v2158 = vld [vmem:[#allocation2 + $0x188] sm:$0xff]
      %v2159 = vld [vmem:[#allocation2 + $0x190] sm:$0x3]
      %v2160 = vld [vmem:[#allocation2 + $0x198] sm:$0xff]
      %v2161 = vld [vmem:[#allocation2 + $0x1a0] sm:$0xff]
      %v2162 = vld [vmem:[#allocation2 + $0x1a8] sm:$0x3]
      %v2217 = vrot.slane %v2109, 1
      %v2218 = vrot.slane %v2110, 1
      %v2219 = vsel %vm423, %v2217, %v2218
      %v2220 = vrot.slane %v2111, 1
      %v2221 = vsel %vm423, %v2218, %v2220
      %v2222 = vrot.slane %v2112, 1
      %v2223 = vrot.slane %v2113, 1
      %v2224 = vsel %vm423, %v2222, %v2223
      %v2225 = vrot.slane %v2114, 1
      %v2226 = vsel %vm423, %v2223, %v2225
      %v2227 = vrot.slane %v2115, 1
      %v2228 = vrot.slane %v2116, 1
      %v2229 = vsel %vm423, %v2227, %v2228
      %v2230 = vrot.slane %v2117, 1
      %v2231 = vsel %vm423, %v2228, %v2230
      %v2232 = vrot.slane %v2118, 1
      %v2233 = vrot.slane %v2119, 1
      %v2234 = vsel %vm423, %v2232, %v2233
      %v2235 = vrot.slane %v2120, 1
      %v2236 = vsel %vm423, %v2233, %v2235
      %v2237 = vrot.slane %v2121, 1
      %v2238 = vrot.slane %v2122, 1
      %v2239 = vsel %vm423, %v2237, %v2238
      %v2240 = vrot.slane %v2123, 1
      %v2241 = vsel %vm423, %v2238, %v2240
      %v2242 = vrot.slane %v2124, 1
      %v2243 = vrot.slane %v2125, 1
      %v2244 = vsel %vm423, %v2242, %v2243
      %v2245 = vrot.slane %v2126, 1
      %v2246 = vsel %vm423, %v2243, %v2245
      %v2247 = vrot.slane %v2127, 1
      %v2248 = vrot.slane %v2128, 1
      %v2249 = vsel %vm423, %v2247, %v2248
      %v2250 = vrot.slane %v2129, 1
      %v2251 = vsel %vm423, %v2248, %v2250
      %v2252 = vrot.slane %v2130, 1
      %v2253 = vrot.slane %v2131, 1
      %v2254 = vsel %vm423, %v2252, %v2253
      %v2255 = vrot.slane %v2132, 1
      %v2256 = vsel %vm423, %v2253, %v2255
      %v2257 = vrot.slane %v2133, 1
      %v2258 = vrot.slane %v2134, 1
      %v2259 = vsel %vm423, %v2257, %v2258
      %v2260 = vrot.slane %v2135, 1
      %v2261 = vsel %vm423, %v2258, %v2260
      %v2262 = vrot.slane %v2136, 1
      %v2263 = vrot.slane %v2137, 1
      %v2264 = vsel %vm423, %v2262, %v2263
      %v2265 = vrot.slane %v2138, 1
      %v2266 = vsel %vm423, %v2263, %v2265
      %v2267 = vrot.slane %v2139, 1
      %v2268 = vrot.slane %v2140, 1
      %v2269 = vsel %vm423, %v2267, %v2268
      %v2270 = vrot.slane %v2141, 1
      %v2271 = vsel %vm423, %v2268, %v2270
      %v2272 = vrot.slane %v2142, 1
      %v2273 = vrot.slane %v2143, 1
      %v2274 = vsel %vm423, %v2272, %v2273
      %v2275 = vrot.slane %v2144, 1
      %v2276 = vsel %vm423, %v2273, %v2275
      %v2277 = vrot.slane %v2145, 1
      %v2278 = vrot.slane %v2146, 1
      %v2279 = vsel %vm423, %v2277, %v2278
      %v2280 = vrot.slane %v2147, 1
      %v2281 = vsel %vm423, %v2278, %v2280
      %v2282 = vrot.slane %v2148, 1
      %v2283 = vrot.slane %v2149, 1
      %v2284 = vsel %vm423, %v2282, %v2283
      %v2285 = vrot.slane %v2150, 1
      %v2286 = vsel %vm423, %v2283, %v2285
      %v2287 = vrot.slane %v2151, 1
      %v2288 = vrot.slane %v2152, 1
      %v2289 = vsel %vm423, %v2287, %v2288
      %v2290 = vrot.slane %v2153, 1
      %v2291 = vsel %vm423, %v2288, %v2290
      %v2292 = vrot.slane %v2154, 1
      %v2293 = vrot.slane %v2155, 1
      %v2294 = vsel %vm423, %v2292, %v2293
      %v2295 = vrot.slane %v2156, 1
      %v2296 = vsel %vm423, %v2293, %v2295
      %v2297 = vrot.slane %v2157, 1
      %v2298 = vrot.slane %v2158, 1
      %v2299 = vsel %vm423, %v2297, %v2298
      %v2300 = vrot.slane %v2159, 1
      %v2301 = vsel %vm423, %v2298, %v2300
      %v2302 = vrot.slane %v2160, 1
      %v2303 = vrot.slane %v2161, 1
      %v2304 = vsel %vm423, %v2302, %v2303
      %v2305 = vrot.slane %v2162, 1
      %v2306 = vsel %vm423, %v2303, %v2305
      %2307 = vrot.lane.b32.xlu0 %v2219, 4
      %v2308 = vpop.permute.xlu0 %2307
      %2309 = vrot.lane.b32.xlu0 %v2221, 4
      %v2310 = vpop.permute.xlu0 %2309
      %2311 = vrot.lane.b32.xlu0 %v2224, 4
      %v2312 = vpop.permute.xlu0 %2311
      %2313 = vrot.lane.b32.xlu0 %v2226, 4
      %v2314 = vpop.permute.xlu0 %2313
      %2315 = vrot.lane.b32.xlu0 %v2229, 4
      %v2316 = vpop.permute.xlu0 %2315
      %2317 = vrot.lane.b32.xlu0 %v2231, 4
      %v2318 = vpop.permute.xlu0 %2317
      %2319 = vrot.lane.b32.xlu0 %v2234, 4
      %v2320 = vpop.permute.xlu0 %2319
      %2321 = vrot.lane.b32.xlu0 %v2236, 4
      %v2322 = vpop.permute.xlu0 %2321
      %2323 = vrot.lane.b32.xlu0 %v2239, 4
      %v2324 = vpop.permute.xlu0 %2323
      %2325 = vrot.lane.b32.xlu0 %v2241, 4
      %v2326 = vpop.permute.xlu0 %2325
      %2327 = vrot.lane.b32.xlu0 %v2244, 4
      %v2328 = vpop.permute.xlu0 %2327
      %2329 = vrot.lane.b32.xlu0 %v2246, 4
      %v2330 = vpop.permute.xlu0 %2329
      %2331 = vrot.lane.b32.xlu0 %v2249, 4
      %v2332 = vpop.permute.xlu0 %2331
      %2333 = vrot.lane.b32.xlu0 %v2251, 4
      %v2334 = vpop.permute.xlu0 %2333
      %2335 = vrot.lane.b32.xlu0 %v2254, 4
      %v2336 = vpop.permute.xlu0 %2335
      %2337 = vrot.lane.b32.xlu0 %v2256, 4
      %v2338 = vpop.permute.xlu0 %2337
      %2339 = vrot.lane.b32.xlu0 %v2259, 4
      %v2340 = vpop.permute.xlu0 %2339
      %2341 = vrot.lane.b32.xlu0 %v2261, 4
      %v2342 = vpop.permute.xlu0 %2341
      %2343 = vrot.lane.b32.xlu0 %v2264, 4
      %v2344 = vpop.permute.xlu0 %2343
      %2345 = vrot.lane.b32.xlu0 %v2266, 4
      %v2346 = vpop.permute.xlu0 %2345
      %2347 = vrot.lane.b32.xlu0 %v2269, 4
      %v2348 = vpop.permute.xlu0 %2347
      %2349 = vrot.lane.b32.xlu0 %v2271, 4
      %v2350 = vpop.permute.xlu0 %2349
      %2351 = vrot.lane.b32.xlu0 %v2274, 4
      %v2352 = vpop.permute.xlu0 %2351
      %2353 = vrot.lane.b32.xlu0 %v2276, 4
      %v2354 = vpop.permute.xlu0 %2353
      %2355 = vrot.lane.b32.xlu0 %v2279, 4
      %v2356 = vpop.permute.xlu0 %2355
      %2357 = vrot.lane.b32.xlu0 %v2281, 4
      %v2358 = vpop.permute.xlu0 %2357
      %2359 = vrot.lane.b32.xlu0 %v2284, 4
      %v2360 = vpop.permute.xlu0 %2359
      %2361 = vrot.lane.b32.xlu0 %v2286, 4
      %v2362 = vpop.permute.xlu0 %2361
      %2363 = vrot.lane.b32.xlu0 %v2289, 4
      %v2364 = vpop.permute.xlu0 %2363
      %2365 = vrot.lane.b32.xlu0 %v2291, 4
      %v2366 = vpop.permute.xlu0 %2365
      %2367 = vrot.lane.b32.xlu0 %v2294, 4
      %v2368 = vpop.permute.xlu0 %2367
      %2369 = vrot.lane.b32.xlu0 %v2296, 4
      %v2370 = vpop.permute.xlu0 %2369
      %2371 = vrot.lane.b32.xlu0 %v2299, 4
      %v2372 = vpop.permute.xlu0 %2371
      %2373 = vrot.lane.b32.xlu0 %v2301, 4
      %v2374 = vpop.permute.xlu0 %2373
      %2375 = vrot.lane.b32.xlu0 %v2304, 4
      %v2376 = vpop.permute.xlu0 %2375
      %2377 = vrot.lane.b32.xlu0 %v2306, 4
      %v2378 = vpop.permute.xlu0 %2377
      %v2415 = vrot.slane %v2109, 2
      %v2416 = vrot.slane %v2110, 2
      %v2417 = vsel %vm622, %v2415, %v2416
      %v2418 = vrot.slane %v2111, 2
      %v2419 = vsel %vm622, %v2416, %v2418
      %v2420 = vrot.slane %v2112, 2
      %v2421 = vrot.slane %v2113, 2
      %v2422 = vsel %vm622, %v2420, %v2421
      %v2423 = vrot.slane %v2114, 2
      %v2424 = vsel %vm622, %v2421, %v2423
      %v2425 = vrot.slane %v2115, 2
      %v2426 = vrot.slane %v2116, 2
      %v2427 = vsel %vm622, %v2425, %v2426
      %v2428 = vrot.slane %v2117, 2
      %v2429 = vsel %vm622, %v2426, %v2428
      %v2430 = vrot.slane %v2118, 2
      %v2431 = vrot.slane %v2119, 2
      %v2432 = vsel %vm622, %v2430, %v2431
      %v2433 = vrot.slane %v2120, 2
      %v2434 = vsel %vm622, %v2431, %v2433
      %v2435 = vrot.slane %v2121, 2
      %v2436 = vrot.slane %v2122, 2
      %v2437 = vsel %vm622, %v2435, %v2436
      %v2438 = vrot.slane %v2123, 2
      %v2439 = vsel %vm622, %v2436, %v2438
      %v2440 = vrot.slane %v2124, 2
      %v2441 = vrot.slane %v2125, 2
      %v2442 = vsel %vm622, %v2440, %v2441
      %v2443 = vrot.slane %v2126, 2
      %v2444 = vsel %vm622, %v2441, %v2443
      %v2445 = vrot.slane %v2127, 2
      %v2446 = vrot.slane %v2128, 2
      %v2447 = vsel %vm622, %v2445, %v2446
      %v2448 = vrot.slane %v2129, 2
      %v2449 = vsel %vm622, %v2446, %v2448
      %v2450 = vrot.slane %v2130, 2
      %v2451 = vrot.slane %v2131, 2
      %v2452 = vsel %vm622, %v2450, %v2451
      %v2453 = vrot.slane %v2132, 2
      %v2454 = vsel %vm622, %v2451, %v2453
      %v2455 = vrot.slane %v2133, 2
      %v2456 = vrot.slane %v2134, 2
      %v2457 = vsel %vm622, %v2455, %v2456
      %v2458 = vrot.slane %v2135, 2
      %v2459 = vsel %vm622, %v2456, %v2458
      %v2460 = vrot.slane %v2136, 2
      %v2461 = vrot.slane %v2137, 2
      %v2462 = vsel %vm622, %v2460, %v2461
      %v2463 = vrot.slane %v2138, 2
      %v2464 = vsel %vm622, %v2461, %v2463
      %v2465 = vrot.slane %v2139, 2
      %v2466 = vrot.slane %v2140, 2
      %v2467 = vsel %vm622, %v2465, %v2466
      %v2468 = vrot.slane %v2141, 2
      %v2469 = vsel %vm622, %v2466, %v2468
      %v2470 = vrot.slane %v2142, 2
      %v2471 = vrot.slane %v2143, 2
      %v2472 = vsel %vm622, %v2470, %v2471
      %v2473 = vrot.slane %v2144, 2
      %v2474 = vsel %vm622, %v2471, %v2473
      %v2475 = vrot.slane %v2145, 2
      %v2476 = vrot.slane %v2146, 2
      %v2477 = vsel %vm622, %v2475, %v2476
      %v2478 = vrot.slane %v2147, 2
      %v2479 = vsel %vm622, %v2476, %v2478
      %v2480 = vrot.slane %v2148, 2
      %v2481 = vrot.slane %v2149, 2
      %v2482 = vsel %vm622, %v2480, %v2481
      %v2483 = vrot.slane %v2150, 2
      %v2484 = vsel %vm622, %v2481, %v2483
      %v2485 = vrot.slane %v2151, 2
      %v2486 = vrot.slane %v2152, 2
      %v2487 = vsel %vm622, %v2485, %v2486
      %v2488 = vrot.slane %v2153, 2
      %v2489 = vsel %vm622, %v2486, %v2488
      %v2490 = vrot.slane %v2154, 2
      %v2491 = vrot.slane %v2155, 2
      %v2492 = vsel %vm622, %v2490, %v2491
      %v2493 = vrot.slane %v2156, 2
      %v2494 = vsel %vm622, %v2491, %v2493
      %v2495 = vrot.slane %v2157, 2
      %v2496 = vrot.slane %v2158, 2
      %v2497 = vsel %vm622, %v2495, %v2496
      %v2498 = vrot.slane %v2159, 2
      %v2499 = vsel %vm622, %v2496, %v2498
      %v2500 = vrot.slane %v2160, 2
      %v2501 = vrot.slane %v2161, 2
      %v2502 = vsel %vm622, %v2500, %v2501
      %v2503 = vrot.slane %v2162, 2
      %v2504 = vsel %vm622, %v2501, %v2503
      %2505 = vrot.lane.b32.xlu0 %v2417, 8
      %v2506 = vpop.permute.xlu0 %2505
      %2507 = vrot.lane.b32.xlu0 %v2419, 8
      %v2508 = vpop.permute.xlu0 %2507
      %2509 = vrot.lane.b32.xlu0 %v2422, 8
      %v2510 = vpop.permute.xlu0 %2509
      %2511 = vrot.lane.b32.xlu0 %v2424, 8
      %v2512 = vpop.permute.xlu0 %2511
      %2513 = vrot.lane.b32.xlu0 %v2427, 8
      %v2514 = vpop.permute.xlu0 %2513
      %2515 = vrot.lane.b32.xlu0 %v2429, 8
      %v2516 = vpop.permute.xlu0 %2515
      %2517 = vrot.lane.b32.xlu0 %v2432, 8
      %v2518 = vpop.permute.xlu0 %2517
      %2519 = vrot.lane.b32.xlu0 %v2434, 8
      %v2520 = vpop.permute.xlu0 %2519
      %2521 = vrot.lane.b32.xlu0 %v2437, 8
      %v2522 = vpop.permute.xlu0 %2521
      %2523 = vrot.lane.b32.xlu0 %v2439, 8
      %v2524 = vpop.permute.xlu0 %2523
      %2525 = vrot.lane.b32.xlu0 %v2442, 8
      %v2526 = vpop.permute.xlu0 %2525
      %2527 = vrot.lane.b32.xlu0 %v2444, 8
      %v2528 = vpop.permute.xlu0 %2527
      %2529 = vrot.lane.b32.xlu0 %v2447, 8
      %v2530 = vpop.permute.xlu0 %2529
      %2531 = vrot.lane.b32.xlu0 %v2449, 8
      %v2532 = vpop.permute.xlu0 %2531
      %2533 = vrot.lane.b32.xlu0 %v2452, 8
      %v2534 = vpop.permute.xlu0 %2533
      %2535 = vrot.lane.b32.xlu0 %v2454, 8
      %v2536 = vpop.permute.xlu0 %2535
      %2537 = vrot.lane.b32.xlu0 %v2457, 8
      %v2538 = vpop.permute.xlu0 %2537
      %2539 = vrot.lane.b32.xlu0 %v2459, 8
      %v2540 = vpop.permute.xlu0 %2539
      %2541 = vrot.lane.b32.xlu0 %v2462, 8
      %v2542 = vpop.permute.xlu0 %2541
      %2543 = vrot.lane.b32.xlu0 %v2464, 8
      %v2544 = vpop.permute.xlu0 %2543
      %2545 = vrot.lane.b32.xlu0 %v2467, 8
      %v2546 = vpop.permute.xlu0 %2545
      %2547 = vrot.lane.b32.xlu0 %v2469, 8
      %v2548 = vpop.permute.xlu0 %2547
      %2549 = vrot.lane.b32.xlu0 %v2472, 8
      %v2550 = vpop.permute.xlu0 %2549
      %2551 = vrot.lane.b32.xlu0 %v2474, 8
      %v2552 = vpop.permute.xlu0 %2551
      %2553 = vrot.lane.b32.xlu0 %v2477, 8
      %v2554 = vpop.permute.xlu0 %2553
      %2555 = vrot.lane.b32.xlu0 %v2479, 8
      %v2556 = vpop.permute.xlu0 %2555
      %2557 = vrot.lane.b32.xlu0 %v2482, 8
      %v2558 = vpop.permute.xlu0 %2557
      %2559 = vrot.lane.b32.xlu0 %v2484, 8
      %v2560 = vpop.permute.xlu0 %2559
      %2561 = vrot.lane.b32.xlu0 %v2487, 8
      %v2562 = vpop.permute.xlu0 %2561
      %2563 = vrot.lane.b32.xlu0 %v2489, 8
      %v2564 = vpop.permute.xlu0 %2563
      %2565 = vrot.lane.b32.xlu0 %v2492, 8
      %v2566 = vpop.permute.xlu0 %2565
      %2567 = vrot.lane.b32.xlu0 %v2494, 8
      %v2568 = vpop.permute.xlu0 %2567
      %2569 = vrot.lane.b32.xlu0 %v2497, 8
      %v2570 = vpop.permute.xlu0 %2569
      %2571 = vrot.lane.b32.xlu0 %v2499, 8
      %v2572 = vpop.permute.xlu0 %2571
      %2573 = vrot.lane.b32.xlu0 %v2502, 8
      %v2574 = vpop.permute.xlu0 %2573
      %2575 = vrot.lane.b32.xlu0 %v2504, 8
      %v2576 = vpop.permute.xlu0 %2575
      %v2613 = vsel %vm204, %v2109, %v2308
      %v2614 = vsel %vm204, %v2110, %v2310
      %v2615 = vsel %vm204, %v2112, %v2312
      %v2616 = vsel %vm204, %v2113, %v2314
      %v2617 = vsel %vm204, %v2115, %v2316
      %v2618 = vsel %vm204, %v2116, %v2318
      %v2619 = vsel %vm204, %v2118, %v2320
      %v2620 = vsel %vm204, %v2119, %v2322
      %v2621 = vsel %vm204, %v2121, %v2324
      %v2622 = vsel %vm204, %v2122, %v2326
      %v2623 = vsel %vm204, %v2124, %v2328
      %v2624 = vsel %vm204, %v2125, %v2330
      %v2625 = vsel %vm204, %v2127, %v2332
      %v2626 = vsel %vm204, %v2128, %v2334
      %v2627 = vsel %vm204, %v2130, %v2336
      %v2628 = vsel %vm204, %v2131, %v2338
      %v2629 = vsel %vm204, %v2133, %v2340
      %v2630 = vsel %vm204, %v2134, %v2342
      %v2631 = vsel %vm204, %v2136, %v2344
      %v2632 = vsel %vm204, %v2137, %v2346
      %v2633 = vsel %vm204, %v2139, %v2348
      %v2634 = vsel %vm204, %v2140, %v2350
      %v2635 = vsel %vm204, %v2142, %v2352
      %v2636 = vsel %vm204, %v2143, %v2354
      %v2637 = vsel %vm204, %v2145, %v2356
      %v2638 = vsel %vm204, %v2146, %v2358
      %v2639 = vsel %vm204, %v2148, %v2360
      %v2640 = vsel %vm204, %v2149, %v2362
      %v2641 = vsel %vm204, %v2151, %v2364
      %v2642 = vsel %vm204, %v2152, %v2366
      %v2643 = vsel %vm204, %v2154, %v2368
      %v2644 = vsel %vm204, %v2155, %v2370
      %v2645 = vsel %vm204, %v2157, %v2372
      %v2646 = vsel %vm204, %v2158, %v2374
      %v2647 = vsel %vm204, %v2160, %v2376
      %v2648 = vsel %vm204, %v2161, %v2378
      %v2649 = vsel %vm857, %v2613, %v2506
      %v2650 = vsel %vm857, %v2614, %v2508
      %v2651 = vsel %vm857, %v2615, %v2510
      %v2652 = vsel %vm857, %v2616, %v2512
      %v2653 = vsel %vm857, %v2617, %v2514
      %v2654 = vsel %vm857, %v2618, %v2516
      %v2655 = vsel %vm857, %v2619, %v2518
      %v2656 = vsel %vm857, %v2620, %v2520
      %v2657 = vsel %vm857, %v2621, %v2522
      %v2658 = vsel %vm857, %v2622, %v2524
      %v2659 = vsel %vm857, %v2623, %v2526
      %v2660 = vsel %vm857, %v2624, %v2528
      %v2661 = vsel %vm857, %v2625, %v2530
      %v2662 = vsel %vm857, %v2626, %v2532
      %v2663 = vsel %vm857, %v2627, %v2534
      %v2664 = vsel %vm857, %v2628, %v2536
      %v2665 = vsel %vm857, %v2629, %v2538
      %v2666 = vsel %vm857, %v2630, %v2540
      %v2667 = vsel %vm857, %v2631, %v2542
      %v2668 = vsel %vm857, %v2632, %v2544
      %v2669 = vsel %vm857, %v2633, %v2546
      %v2670 = vsel %vm857, %v2634, %v2548
      %v2671 = vsel %vm857, %v2635, %v2550
      %v2672 = vsel %vm857, %v2636, %v2552
      %v2673 = vsel %vm857, %v2637, %v2554
      %v2674 = vsel %vm857, %v2638, %v2556
      %v2675 = vsel %vm857, %v2639, %v2558
      %v2676 = vsel %vm857, %v2640, %v2560
      %v2677 = vsel %vm857, %v2641, %v2562
      %v2678 = vsel %vm857, %v2642, %v2564
      %v2679 = vsel %vm857, %v2643, %v2566
      %v2680 = vsel %vm857, %v2644, %v2568
      %v2681 = vsel %vm857, %v2645, %v2570
      %v2682 = vsel %vm857, %v2646, %v2572
      %v2683 = vsel %vm857, %v2647, %v2574
      %v2684 = vsel %vm857, %v2648, %v2576
      %v2685 = vld [vmem:[%s2] sm:$0xff]
      %v2686 = vld [vmem:[%s2 + $0x8] sm:$0xf]
      %s2687 = scalar_lea.vmem %s2, 16
      %v2688 = vld [vmem:[%s2687] sm:$0xff]
      %v2689 = vld [vmem:[%s2687 + $0x8] sm:$0xf]
      %v2691 = vsel %vm899, %v2651, 0
      %v2694 = vsel %vm899, %v2652, 0
      %v2697 = vsel %vm899, %v2653, 0
      %v2700 = vsel %vm899, %v2654, 0
      %v2703 = vsel %vm899, %v2655, 0
      %v2706 = vsel %vm899, %v2656, 0
      %v2709 = vsel %vm899, %v2657, 0
      %v2712 = vsel %vm899, %v2658, 0
      %v2715 = vsel %vm899, %v2659, 0
      %v2718 = vsel %vm899, %v2660, 0
      %v2721 = vsel %vm899, %v2661, 0
      %v2724 = vsel %vm899, %v2662, 0
      %v2727 = vsel %vm899, %v2663, 0
      %v2730 = vsel %vm899, %v2664, 0
      %v2733 = vsel %vm899, %v2665, 0
      %v2736 = vsel %vm899, %v2666, 0
      %v2739 = vsel %vm899, %v2667, 0
      %v2742 = vsel %vm899, %v2668, 0
      %v2745 = vsel %vm899, %v2669, 0
      %v2748 = vsel %vm899, %v2670, 0
      %v2751 = vsel %vm899, %v2671, 0
      %v2754 = vsel %vm899, %v2672, 0
      %v2757 = vsel %vm899, %v2673, 0
      %v2760 = vsel %vm899, %v2674, 0
      %v2763 = vsel %vm899, %v2675, 0
      %v2766 = vsel %vm899, %v2676, 0
      %v2769 = vsel %vm899, %v2677, 0
      %v2772 = vsel %vm899, %v2678, 0
      %v2775 = vsel %vm899, %v2679, 0
      %v2778 = vsel %vm899, %v2680, 0
      %v2781 = vsel %vm899, %v2681, 0
      %v2784 = vsel %vm899, %v2682, 0
      %v2787 = vsel %vm996, %v2689, 0
      %2789 = vmatprep.subr.mxu0 0.0
      %2790 = vmatpush1.msra.mxu0 0.0
      %2791 = vmatprep.subr.mxu0 0.0
      %2792 = vmatpush1.msra.mxu0 0.0
      %2793 = vmatprep.subr.mxu0 0.0
      %2794 = vmatpush1.msra.mxu0 0.0
      %2795 = vmatprep.subr.mxu0 0.0
      %2796 = vmatpush1.msra.mxu0 0.0
      %2797 = vmatprep.subr.mxu0 0.0
      %2798 = vmatpush1.msra.mxu0 0.0
      %2799 = vmatprep.subr.mxu0 0.0
      %2800 = vmatpush1.msra.mxu0 0.0
      %2801 = vmatprep.subr.mxu0 0.0
      %2802 = vmatpush1.msra.mxu0 0.0
      %2803 = vmatprep.subr.mxu0 0.0
      %2804 = vmatpush1.msra.mxu0 0.0
      %2805 = vmatprep.subr.mxu0 0.0
      %2806 = vmatpush1.msra.mxu0 0.0
      %2807 = vmatprep.subr.mxu0 0.0
      %2808 = vmatpush1.msra.mxu0 0.0
      %2809 = vmatprep.subr.mxu0 0.0
      %2810 = vmatpush1.msra.mxu0 0.0
      %2811 = vmatprep.subr.mxu0 0.0
      %2812 = vmatpush1.msra.mxu0 0.0
      %2813 = vmatprep.subr.mxu0 0.0
      %2814 = vmatpush1.msra.mxu0 0.0
      %2815 = vmatprep.subr.mxu0 0.0
      %2816 = vmatpush1.msra.mxu0 0.0
      %2817 = vmatprep.subr.mxu0 0.0
      %2818 = vmatpush1.msra.mxu0 %v2787
      %2819 = vmatprep.subr.mxu0 0.0
      %2820 = vmatpush1.msra.mxu0 %v2688
      %2821 = vmatprep.subr.mxu0 0.0
      %2822 = vmatpush2.msra.mxu0 0.0
      %2823 = vmatprep.subr.mxu0 0.0
      %2824 = vmatpush2.msra.mxu0 0.0
      %2825 = vmatprep.subr.mxu0 0.0
      %2826 = vmatpush2.msra.mxu0 0.0
      %2827 = vmatprep.subr.mxu0 0.0
      %2828 = vmatpush2.msra.mxu0 0.0
      %2829 = vmatprep.subr.mxu0 0.0
      %2830 = vmatpush2.msra.mxu0 0.0
      %2831 = vmatprep.subr.mxu0 0.0
      %2832 = vmatpush2.msra.mxu0 0.0
      %2833 = vmatprep.subr.mxu0 0.0
      %2834 = vmatpush2.msra.mxu0 0.0
      %2835 = vmatprep.subr.mxu0 0.0
      %2836 = vmatpush2.msra.mxu0 0.0
      %2837 = vmatprep.subr.mxu0 0.0
      %2838 = vmatpush2.msra.mxu0 0.0
      %2839 = vmatprep.subr.mxu0 0.0
      %2840 = vmatpush2.msra.mxu0 0.0
      %2841 = vmatprep.subr.mxu0 0.0
      %2842 = vmatpush2.msra.mxu0 0.0
      %2843 = vmatprep.subr.mxu0 0.0
      %2844 = vmatpush2.msra.mxu0 0.0
      %2845 = vmatprep.subr.mxu0 0.0
      %2846 = vmatpush2.msra.mxu0 0.0
      %2847 = vmatprep.subr.mxu0 0.0
      %2848 = vmatpush2.msra.mxu0 0.0
      %2849 = vmatprep.subr.mxu0 0.0
      %2850 = vmatpush2.msra.mxu0 0.0
      %2851 = vmatprep.subr.mxu0 0.0
      %2852 = vmatpush2.msra.mxu0 0.0
      %2853 = vmatprep.mubr.f32.mxu0 0.0
      %2854 = vmatmul.mubr.f32.gmra.mxu0 %v2691
      %v2855 = vpop.f32.mrf.mxu0
      %v2856 = vadd.f32 0.0, %v2855
      %v2857 = vpop.f32.mrf.mxu0
      %2858 = vmatprep.mubr.f32.mxu0 0.0
      %2859 = vmatmul.mubr.f32.gmra.mxu0 %v2694
      %v2860 = vpop.f32.mrf.mxu0
      %v2861 = vadd.f32 0.0, %v2860
      %v2862 = vpop.f32.mrf.mxu0
      %2863 = vmatprep.mubr.f32.mxu0 0.0
      %2864 = vmatmul.mubr.f32.gmra.mxu0 %v2697
      %v2865 = vpop.f32.mrf.mxu0
      %v2866 = vadd.f32 0.0, %v2865
      %v2867 = vpop.f32.mrf.mxu0
      %2868 = vmatprep.mubr.f32.mxu0 0.0
      %2869 = vmatmul.mubr.f32.gmra.mxu0 %v2700
      %v2870 = vpop.f32.mrf.mxu0
      %v2871 = vadd.f32 0.0, %v2870
      %v2872 = vpop.f32.mrf.mxu0
      %2873 = vmatprep.mubr.f32.mxu0 0.0
      %2874 = vmatmul.mubr.f32.gmra.mxu0 %v2703
      %v2875 = vpop.f32.mrf.mxu0
      %v2876 = vadd.f32 0.0, %v2875
      %v2877 = vpop.f32.mrf.mxu0
      %2878 = vmatprep.mubr.f32.mxu0 0.0
      %2879 = vmatmul.mubr.f32.gmra.mxu0 %v2706
      %v2880 = vpop.f32.mrf.mxu0
      %v2881 = vadd.f32 0.0, %v2880
      %v2882 = vpop.f32.mrf.mxu0
      %2883 = vmatprep.mubr.f32.mxu0 0.0
      %2884 = vmatmul.mubr.f32.gmra.mxu0 %v2709
      %v2885 = vpop.f32.mrf.mxu0
      %v2886 = vadd.f32 0.0, %v2885
      %v2887 = vpop.f32.mrf.mxu0
      %2888 = vmatprep.mubr.f32.mxu0 0.0
      %2889 = vmatmul.mubr.f32.gmra.mxu0 %v2712
      %v2890 = vpop.f32.mrf.mxu0
      %v2891 = vadd.f32 0.0, %v2890
      %v2892 = vpop.f32.mrf.mxu0
      %2893 = vmatprep.mubr.f32.mxu0 0.0
      %2894 = vmatmul.mubr.f32.gmra.mxu0 %v2715
      %v2895 = vpop.f32.mrf.mxu0
      %v2896 = vadd.f32 0.0, %v2895
      %v2897 = vpop.f32.mrf.mxu0
      %2898 = vmatprep.mubr.f32.mxu0 0.0
      %2899 = vmatmul.mubr.f32.gmra.mxu0 %v2718
      %v2900 = vpop.f32.mrf.mxu0
      %v2901 = vadd.f32 0.0, %v2900
      %v2902 = vpop.f32.mrf.mxu0
      %2903 = vmatprep.mubr.f32.mxu0 0.0
      %2904 = vmatmul.mubr.f32.gmra.mxu0 %v2721
      %v2905 = vpop.f32.mrf.mxu0
      %v2906 = vadd.f32 0.0, %v2905
      %v2907 = vpop.f32.mrf.mxu0
      %2908 = vmatprep.mubr.f32.mxu0 0.0
      %2909 = vmatmul.mubr.f32.gmra.mxu0 %v2724
      %v2910 = vpop.f32.mrf.mxu0
      %v2911 = vadd.f32 0.0, %v2910
      %v2912 = vpop.f32.mrf.mxu0
      %2913 = vmatprep.mubr.f32.mxu0 0.0
      %2914 = vmatmul.mubr.f32.gmra.mxu0 %v2727
      %v2915 = vpop.f32.mrf.mxu0
      %v2916 = vadd.f32 0.0, %v2915
      %v2917 = vpop.f32.mrf.mxu0
      %2918 = vmatprep.mubr.f32.mxu0 0.0
      %2919 = vmatmul.mubr.f32.gmra.mxu0 %v2730
      %v2920 = vpop.f32.mrf.mxu0
      %v2921 = vadd.f32 0.0, %v2920
      %v2922 = vpop.f32.mrf.mxu0
      %2923 = vmatprep.mubr.f32.mxu0 0.0
      %2924 = vmatmul.mubr.f32.gmra.mxu0 %v2733
      %v2925 = vpop.f32.mrf.mxu0
      %v2926 = vadd.f32 0.0, %v2925
      %v2927 = vpop.f32.mrf.mxu0
      %2928 = vmatprep.mubr.f32.mxu0 0.0
      %2929 = vmatmul.mubr.f32.gmra.mxu0 %v2736
      %v2930 = vpop.f32.mrf.mxu0
      %v2931 = vadd.f32 0.0, %v2930
      %v2932 = vpop.f32.mrf.mxu0
      %2933 = vmatprep.mubr.f32.mxu0 0.0
      %2934 = vmatmul.mubr.f32.gmra.mxu0 %v2739
      %v2935 = vpop.f32.mrf.mxu0
      %v2936 = vadd.f32 0.0, %v2935
      %v2937 = vpop.f32.mrf.mxu0
      %2938 = vmatprep.mubr.f32.mxu0 0.0
      %2939 = vmatmul.mubr.f32.gmra.mxu0 %v2742
      %v2940 = vpop.f32.mrf.mxu0
      %v2941 = vadd.f32 0.0, %v2940
      %v2942 = vpop.f32.mrf.mxu0
      %2943 = vmatprep.mubr.f32.mxu0 0.0
      %2944 = vmatmul.mubr.f32.gmra.mxu0 %v2745
      %v2945 = vpop.f32.mrf.mxu0
      %v2946 = vadd.f32 0.0, %v2945
      %v2947 = vpop.f32.mrf.mxu0
      %2948 = vmatprep.mubr.f32.mxu0 0.0
      %2949 = vmatmul.mubr.f32.gmra.mxu0 %v2748
      %v2950 = vpop.f32.mrf.mxu0
      %v2951 = vadd.f32 0.0, %v2950
      %v2952 = vpop.f32.mrf.mxu0
      %2953 = vmatprep.mubr.f32.mxu0 0.0
      %2954 = vmatmul.mubr.f32.gmra.mxu0 %v2751
      %v2955 = vpop.f32.mrf.mxu0
      %v2956 = vadd.f32 0.0, %v2955
      %v2957 = vpop.f32.mrf.mxu0
      %2958 = vmatprep.mubr.f32.mxu0 0.0
      %2959 = vmatmul.mubr.f32.gmra.mxu0 %v2754
      %v2960 = vpop.f32.mrf.mxu0
      %v2961 = vadd.f32 0.0, %v2960
      %v2962 = vpop.f32.mrf.mxu0
      %2963 = vmatprep.mubr.f32.mxu0 0.0
      %2964 = vmatmul.mubr.f32.gmra.mxu0 %v2757
      %v2965 = vpop.f32.mrf.mxu0
      %v2966 = vadd.f32 0.0, %v2965
      %v2967 = vpop.f32.mrf.mxu0
      %2968 = vmatprep.mubr.f32.mxu0 0.0
      %2969 = vmatmul.mubr.f32.gmra.mxu0 %v2760
      %v2970 = vpop.f32.mrf.mxu0
      %v2971 = vadd.f32 0.0, %v2970
      %v2972 = vpop.f32.mrf.mxu0
      %2973 = vmatprep.mubr.f32.mxu0 0.0
      %2974 = vmatmul.mubr.f32.gmra.mxu0 %v2763
      %v2975 = vpop.f32.mrf.mxu0
      %v2976 = vadd.f32 0.0, %v2975
      %v2977 = vpop.f32.mrf.mxu0
      %2978 = vmatprep.mubr.f32.mxu0 0.0
      %2979 = vmatmul.mubr.f32.gmra.mxu0 %v2766
      %v2980 = vpop.f32.mrf.mxu0
      %v2981 = vadd.f32 0.0, %v2980
      %v2982 = vpop.f32.mrf.mxu0
      %2983 = vmatprep.mubr.f32.mxu0 0.0
      %2984 = vmatmul.mubr.f32.gmra.mxu0 %v2769
      %v2985 = vpop.f32.mrf.mxu0
      %v2986 = vadd.f32 0.0, %v2985
      %v2987 = vpop.f32.mrf.mxu0
      %2988 = vmatprep.mubr.f32.mxu0 0.0
      %2989 = vmatmul.mubr.f32.gmra.mxu0 %v2772
      %v2990 = vpop.f32.mrf.mxu0
      %v2991 = vadd.f32 0.0, %v2990
      %v2992 = vpop.f32.mrf.mxu0
      %2993 = vmatprep.mubr.f32.mxu0 0.0
      %2994 = vmatmul.mubr.f32.gmra.mxu0 %v2775
      %v2995 = vpop.f32.mrf.mxu0
      %v2996 = vadd.f32 0.0, %v2995
      %v2997 = vpop.f32.mrf.mxu0
      %2998 = vmatprep.mubr.f32.mxu0 0.0
      %2999 = vmatmul.mubr.f32.gmra.mxu0 %v2778
      %v3000 = vpop.f32.mrf.mxu0
      %v3001 = vadd.f32 0.0, %v3000
      %v3002 = vpop.f32.mrf.mxu0
      %3003 = vmatprep.mubr.f32.mxu0 0.0
      %3004 = vmatmul.mubr.f32.gmra.mxu0 %v2781
      %v3005 = vpop.f32.mrf.mxu0
      %v3006 = vadd.f32 0.0, %v3005
      %v3007 = vpop.f32.mrf.mxu0
      %3008 = vmatprep.mubr.f32.mxu0 0.0
      %3009 = vmatmul.mubr.f32.gmra.mxu0 %v2784
      %v3010 = vpop.f32.mrf.mxu0
      %v3011 = vadd.f32 0.0, %v3010
      %v3012 = vpop.f32.mrf.mxu0
      %3013 = vdwg.mxu0
      %v3015 = vsel %vm899, %v2649, 0
      %v3018 = vsel %vm899, %v2650, 0
      %v3021 = vsel %vm996, %v2686, 0
      %3023 = vmatprep.subr.mxu0 0.0
      %3024 = vmatpush1.msra.mxu0 0.0
      %3025 = vmatprep.subr.mxu0 0.0
      %3026 = vmatpush1.msra.mxu0 0.0
      %3027 = vmatprep.subr.mxu0 0.0
      %3028 = vmatpush1.msra.mxu0 0.0
      %3029 = vmatprep.subr.mxu0 0.0
      %3030 = vmatpush1.msra.mxu0 0.0
      %3031 = vmatprep.subr.mxu0 0.0
      %3032 = vmatpush1.msra.mxu0 0.0
      %3033 = vmatprep.subr.mxu0 0.0
      %3034 = vmatpush1.msra.mxu0 0.0
      %3035 = vmatprep.subr.mxu0 0.0
      %3036 = vmatpush1.msra.mxu0 0.0
      %3037 = vmatprep.subr.mxu0 0.0
      %3038 = vmatpush1.msra.mxu0 0.0
      %3039 = vmatprep.subr.mxu0 0.0
      %3040 = vmatpush1.msra.mxu0 0.0
      %3041 = vmatprep.subr.mxu0 0.0
      %3042 = vmatpush1.msra.mxu0 0.0
      %3043 = vmatprep.subr.mxu0 0.0
      %3044 = vmatpush1.msra.mxu0 0.0
      %3045 = vmatprep.subr.mxu0 0.0
      %3046 = vmatpush1.msra.mxu0 0.0
      %3047 = vmatprep.subr.mxu0 0.0
      %3048 = vmatpush1.msra.mxu0 0.0
      %3049 = vmatprep.subr.mxu0 0.0
      %3050 = vmatpush1.msra.mxu0 0.0
      %3051 = vmatprep.subr.mxu0 0.0
      %3052 = vmatpush1.msra.mxu0 %v3021
      %3053 = vmatprep.subr.mxu0 0.0
      %3054 = vmatpush1.msra.mxu0 %v2685
      %3055 = vmatprep.subr.mxu0 0.0
      %3056 = vmatpush2.msra.mxu0 0.0
      %3057 = vmatprep.subr.mxu0 0.0
      %3058 = vmatpush2.msra.mxu0 0.0
      %3059 = vmatprep.subr.mxu0 0.0
      %3060 = vmatpush2.msra.mxu0 0.0
      %3061 = vmatprep.subr.mxu0 0.0
      %3062 = vmatpush2.msra.mxu0 0.0
      %3063 = vmatprep.subr.mxu0 0.0
      %3064 = vmatpush2.msra.mxu0 0.0
      %3065 = vmatprep.subr.mxu0 0.0
      %3066 = vmatpush2.msra.mxu0 0.0
      %3067 = vmatprep.subr.mxu0 0.0
      %3068 = vmatpush2.msra.mxu0 0.0
      %3069 = vmatprep.subr.mxu0 0.0
      %3070 = vmatpush2.msra.mxu0 0.0
      %3071 = vmatprep.subr.mxu0 0.0
      %3072 = vmatpush2.msra.mxu0 0.0
      %3073 = vmatprep.subr.mxu0 0.0
      %3074 = vmatpush2.msra.mxu0 0.0
      %3075 = vmatprep.subr.mxu0 0.0
      %3076 = vmatpush2.msra.mxu0 0.0
      %3077 = vmatprep.subr.mxu0 0.0
      %3078 = vmatpush2.msra.mxu0 0.0
      %3079 = vmatprep.subr.mxu0 0.0
      %3080 = vmatpush2.msra.mxu0 0.0
      %3081 = vmatprep.subr.mxu0 0.0
      %3082 = vmatpush2.msra.mxu0 0.0
      %3083 = vmatprep.subr.mxu0 0.0
      %3084 = vmatpush2.msra.mxu0 0.0
      %3085 = vmatprep.subr.mxu0 0.0
      %3086 = vmatpush2.msra.mxu0 0.0
      %3087 = vmatprep.mubr.f32.mxu0 0.0
      %3088 = vmatmul.mubr.f32.gmra.mxu0 %v3015
      %v3089 = vpop.f32.mrf.mxu0
      %v3090 = vadd.f32 %v2856, %v3089
      %v3091 = vpop.f32.mrf.mxu0
      %3092 = vmatprep.mubr.f32.mxu0 0.0
      %3093 = vmatmul.mubr.f32.gmra.mxu0 %v3018
      %v3094 = vpop.f32.mrf.mxu0
      %v3095 = vadd.f32 %v2861, %v3094
      %v3096 = vpop.f32.mrf.mxu0
      %3097 = vmatprep.mubr.f32.mxu0 0.0
      %3098 = vmatmul.mubr.f32.gmra.mxu0 %v2691
      %v3099 = vpop.f32.mrf.mxu0
      %v3100 = vadd.f32 %v2866, %v3099
      %v3101 = vpop.f32.mrf.mxu0
      %3102 = vmatprep.mubr.f32.mxu0 0.0
      %3103 = vmatmul.mubr.f32.gmra.mxu0 %v2694
      %v3104 = vpop.f32.mrf.mxu0
      %v3105 = vadd.f32 %v2871, %v3104
      %v3106 = vpop.f32.mrf.mxu0
      %3107 = vmatprep.mubr.f32.mxu0 0.0
      %3108 = vmatmul.mubr.f32.gmra.mxu0 %v2697
      %v3109 = vpop.f32.mrf.mxu0
      %v3110 = vadd.f32 %v2876, %v3109
      %v3111 = vpop.f32.mrf.mxu0
      %3112 = vmatprep.mubr.f32.mxu0 0.0
      %3113 = vmatmul.mubr.f32.gmra.mxu0 %v2700
      %v3114 = vpop.f32.mrf.mxu0
      %v3115 = vadd.f32 %v2881, %v3114
      %v3116 = vpop.f32.mrf.mxu0
      %3117 = vmatprep.mubr.f32.mxu0 0.0
      %3118 = vmatmul.mubr.f32.gmra.mxu0 %v2703
      %v3119 = vpop.f32.mrf.mxu0
      %v3120 = vadd.f32 %v2886, %v3119
      %v3121 = vpop.f32.mrf.mxu0
      %3122 = vmatprep.mubr.f32.mxu0 0.0
      %3123 = vmatmul.mubr.f32.gmra.mxu0 %v2706
      %v3124 = vpop.f32.mrf.mxu0
      %v3125 = vadd.f32 %v2891, %v3124
      %v3126 = vpop.f32.mrf.mxu0
      %3127 = vmatprep.mubr.f32.mxu0 0.0
      %3128 = vmatmul.mubr.f32.gmra.mxu0 %v2709
      %v3129 = vpop.f32.mrf.mxu0
      %v3130 = vadd.f32 %v2896, %v3129
      %v3131 = vpop.f32.mrf.mxu0
      %3132 = vmatprep.mubr.f32.mxu0 0.0
      %3133 = vmatmul.mubr.f32.gmra.mxu0 %v2712
      %v3134 = vpop.f32.mrf.mxu0
      %v3135 = vadd.f32 %v2901, %v3134
      %v3136 = vpop.f32.mrf.mxu0
      %3137 = vmatprep.mubr.f32.mxu0 0.0
      %3138 = vmatmul.mubr.f32.gmra.mxu0 %v2715
      %v3139 = vpop.f32.mrf.mxu0
      %v3140 = vadd.f32 %v2906, %v3139
      %v3141 = vpop.f32.mrf.mxu0
      %3142 = vmatprep.mubr.f32.mxu0 0.0
      %3143 = vmatmul.mubr.f32.gmra.mxu0 %v2718
      %v3144 = vpop.f32.mrf.mxu0
      %v3145 = vadd.f32 %v2911, %v3144
      %v3146 = vpop.f32.mrf.mxu0
      %3147 = vmatprep.mubr.f32.mxu0 0.0
      %3148 = vmatmul.mubr.f32.gmra.mxu0 %v2721
      %v3149 = vpop.f32.mrf.mxu0
      %v3150 = vadd.f32 %v2916, %v3149
      %v3151 = vpop.f32.mrf.mxu0
      %3152 = vmatprep.mubr.f32.mxu0 0.0
      %3153 = vmatmul.mubr.f32.gmra.mxu0 %v2724
      %v3154 = vpop.f32.mrf.mxu0
      %v3155 = vadd.f32 %v2921, %v3154
      %v3156 = vpop.f32.mrf.mxu0
      %3157 = vmatprep.mubr.f32.mxu0 0.0
      %3158 = vmatmul.mubr.f32.gmra.mxu0 %v2727
      %v3159 = vpop.f32.mrf.mxu0
      %v3160 = vadd.f32 %v2926, %v3159
      %v3161 = vpop.f32.mrf.mxu0
      %3162 = vmatprep.mubr.f32.mxu0 0.0
      %3163 = vmatmul.mubr.f32.gmra.mxu0 %v2730
      %v3164 = vpop.f32.mrf.mxu0
      %v3165 = vadd.f32 %v2931, %v3164
      %v3166 = vpop.f32.mrf.mxu0
      %3167 = vmatprep.mubr.f32.mxu0 0.0
      %3168 = vmatmul.mubr.f32.gmra.mxu0 %v2733
      %v3169 = vpop.f32.mrf.mxu0
      %v3170 = vadd.f32 %v2936, %v3169
      %v3171 = vpop.f32.mrf.mxu0
      %3172 = vmatprep.mubr.f32.mxu0 0.0
      %3173 = vmatmul.mubr.f32.gmra.mxu0 %v2736
      %v3174 = vpop.f32.mrf.mxu0
      %v3175 = vadd.f32 %v2941, %v3174
      %v3176 = vpop.f32.mrf.mxu0
      %3177 = vmatprep.mubr.f32.mxu0 0.0
      %3178 = vmatmul.mubr.f32.gmra.mxu0 %v2739
      %v3179 = vpop.f32.mrf.mxu0
      %v3180 = vadd.f32 %v2946, %v3179
      %v3181 = vpop.f32.mrf.mxu0
      %3182 = vmatprep.mubr.f32.mxu0 0.0
      %3183 = vmatmul.mubr.f32.gmra.mxu0 %v2742
      %v3184 = vpop.f32.mrf.mxu0
      %v3185 = vadd.f32 %v2951, %v3184
      %v3186 = vpop.f32.mrf.mxu0
      %3187 = vmatprep.mubr.f32.mxu0 0.0
      %3188 = vmatmul.mubr.f32.gmra.mxu0 %v2745
      %v3189 = vpop.f32.mrf.mxu0
      %v3190 = vadd.f32 %v2956, %v3189
      %v3191 = vpop.f32.mrf.mxu0
      %3192 = vmatprep.mubr.f32.mxu0 0.0
      %3193 = vmatmul.mubr.f32.gmra.mxu0 %v2748
      %v3194 = vpop.f32.mrf.mxu0
      %v3195 = vadd.f32 %v2961, %v3194
      %v3196 = vpop.f32.mrf.mxu0
      %3197 = vmatprep.mubr.f32.mxu0 0.0
      %3198 = vmatmul.mubr.f32.gmra.mxu0 %v2751
      %v3199 = vpop.f32.mrf.mxu0
      %v3200 = vadd.f32 %v2966, %v3199
      %v3201 = vpop.f32.mrf.mxu0
      %3202 = vmatprep.mubr.f32.mxu0 0.0
      %3203 = vmatmul.mubr.f32.gmra.mxu0 %v2754
      %v3204 = vpop.f32.mrf.mxu0
      %v3205 = vadd.f32 %v2971, %v3204
      %v3206 = vpop.f32.mrf.mxu0
      %3207 = vmatprep.mubr.f32.mxu0 0.0
      %3208 = vmatmul.mubr.f32.gmra.mxu0 %v2757
      %v3209 = vpop.f32.mrf.mxu0
      %v3210 = vadd.f32 %v2976, %v3209
      %v3211 = vpop.f32.mrf.mxu0
      %3212 = vmatprep.mubr.f32.mxu0 0.0
      %3213 = vmatmul.mubr.f32.gmra.mxu0 %v2760
      %v3214 = vpop.f32.mrf.mxu0
      %v3215 = vadd.f32 %v2981, %v3214
      %v3216 = vpop.f32.mrf.mxu0
      %3217 = vmatprep.mubr.f32.mxu0 0.0
      %3218 = vmatmul.mubr.f32.gmra.mxu0 %v2763
      %v3219 = vpop.f32.mrf.mxu0
      %v3220 = vadd.f32 %v2986, %v3219
      %v3221 = vpop.f32.mrf.mxu0
      %3222 = vmatprep.mubr.f32.mxu0 0.0
      %3223 = vmatmul.mubr.f32.gmra.mxu0 %v2766
      %v3224 = vpop.f32.mrf.mxu0
      %v3225 = vadd.f32 %v2991, %v3224
      %v3226 = vpop.f32.mrf.mxu0
      %3227 = vmatprep.mubr.f32.mxu0 0.0
      %3228 = vmatmul.mubr.f32.gmra.mxu0 %v2769
      %v3229 = vpop.f32.mrf.mxu0
      %v3230 = vadd.f32 %v2996, %v3229
      %v3231 = vpop.f32.mrf.mxu0
      %3232 = vmatprep.mubr.f32.mxu0 0.0
      %3233 = vmatmul.mubr.f32.gmra.mxu0 %v2772
      %v3234 = vpop.f32.mrf.mxu0
      %v3235 = vadd.f32 %v3001, %v3234
      %v3236 = vpop.f32.mrf.mxu0
      %3237 = vmatprep.mubr.f32.mxu0 0.0
      %3238 = vmatmul.mubr.f32.gmra.mxu0 %v2775
      %v3239 = vpop.f32.mrf.mxu0
      %v3240 = vadd.f32 %v3006, %v3239
      %v3241 = vpop.f32.mrf.mxu0
      %3242 = vmatprep.mubr.f32.mxu0 0.0
      %3243 = vmatmul.mubr.f32.gmra.mxu0 %v2778
      %v3244 = vpop.f32.mrf.mxu0
      %v3245 = vadd.f32 %v3011, %v3244
      %v3246 = vpop.f32.mrf.mxu0
      %3247 = vdwg.mxu0
      %s3248 = scalar_lea.vmem %s2, 32
      %v3249 = vld [vmem:[%s3248] sm:$0xff]
      %v3250 = vld [vmem:[%s3248 + $0x8] sm:$0xf]
      %v3252 = vsel %vm899, %v2683, 0
      %v3255 = vsel %vm899, %v2684, 0
      %v3258 = vsel %vm996, %v3250, 0
      %3260 = vmatprep.subr.mxu0 0.0
      %3261 = vmatpush1.msra.mxu0 0.0
      %3262 = vmatprep.subr.mxu0 0.0
      %3263 = vmatpush1.msra.mxu0 0.0
      %3264 = vmatprep.subr.mxu0 0.0
      %3265 = vmatpush1.msra.mxu0 0.0
      %3266 = vmatprep.subr.mxu0 0.0
      %3267 = vmatpush1.msra.mxu0 0.0
      %3268 = vmatprep.subr.mxu0 0.0
      %3269 = vmatpush1.msra.mxu0 0.0
      %3270 = vmatprep.subr.mxu0 0.0
      %3271 = vmatpush1.msra.mxu0 0.0
      %3272 = vmatprep.subr.mxu0 0.0
      %3273 = vmatpush1.msra.mxu0 0.0
      %3274 = vmatprep.subr.mxu0 0.0
      %3275 = vmatpush1.msra.mxu0 0.0
      %3276 = vmatprep.subr.mxu0 0.0
      %3277 = vmatpush1.msra.mxu0 0.0
      %3278 = vmatprep.subr.mxu0 0.0
      %3279 = vmatpush1.msra.mxu0 0.0
      %3280 = vmatprep.subr.mxu0 0.0
      %3281 = vmatpush1.msra.mxu0 0.0
      %3282 = vmatprep.subr.mxu0 0.0
      %3283 = vmatpush1.msra.mxu0 0.0
      %3284 = vmatprep.subr.mxu0 0.0
      %3285 = vmatpush1.msra.mxu0 0.0
      %3286 = vmatprep.subr.mxu0 0.0
      %3287 = vmatpush1.msra.mxu0 0.0
      %3288 = vmatprep.subr.mxu0 0.0
      %3289 = vmatpush1.msra.mxu0 %v3258
      %3290 = vmatprep.subr.mxu0 0.0
      %3291 = vmatpush1.msra.mxu0 %v3249
      %3292 = vmatprep.subr.mxu0 0.0
      %3293 = vmatpush2.msra.mxu0 0.0
      %3294 = vmatprep.subr.mxu0 0.0
      %3295 = vmatpush2.msra.mxu0 0.0
      %3296 = vmatprep.subr.mxu0 0.0
      %3297 = vmatpush2.msra.mxu0 0.0
      %3298 = vmatprep.subr.mxu0 0.0
      %3299 = vmatpush2.msra.mxu0 0.0
      %3300 = vmatprep.subr.mxu0 0.0
      %3301 = vmatpush2.msra.mxu0 0.0
      %3302 = vmatprep.subr.mxu0 0.0
      %3303 = vmatpush2.msra.mxu0 0.0
      %3304 = vmatprep.subr.mxu0 0.0
      %3305 = vmatpush2.msra.mxu0 0.0
      %3306 = vmatprep.subr.mxu0 0.0
      %3307 = vmatpush2.msra.mxu0 0.0
      %3308 = vmatprep.subr.mxu0 0.0
      %3309 = vmatpush2.msra.mxu0 0.0
      %3310 = vmatprep.subr.mxu0 0.0
      %3311 = vmatpush2.msra.mxu0 0.0
      %3312 = vmatprep.subr.mxu0 0.0
      %3313 = vmatpush2.msra.mxu0 0.0
      %3314 = vmatprep.subr.mxu0 0.0
      %3315 = vmatpush2.msra.mxu0 0.0
      %3316 = vmatprep.subr.mxu0 0.0
      %3317 = vmatpush2.msra.mxu0 0.0
      %3318 = vmatprep.subr.mxu0 0.0
      %3319 = vmatpush2.msra.mxu0 0.0
      %3320 = vmatprep.subr.mxu0 0.0
      %3321 = vmatpush2.msra.mxu0 0.0
      %3322 = vmatprep.subr.mxu0 0.0
      %3323 = vmatpush2.msra.mxu0 0.0
      %3324 = vmatprep.mubr.f32.mxu0 0.0
      %3325 = vmatmul.mubr.f32.gmra.mxu0 %v2697
      %v3326 = vpop.f32.mrf.mxu0
      %v3327 = vadd.f32 0.0, %v3326
      %v3328 = vpop.f32.mrf.mxu0
      %3329 = vmatprep.mubr.f32.mxu0 0.0
      %3330 = vmatmul.mubr.f32.gmra.mxu0 %v2700
      %v3331 = vpop.f32.mrf.mxu0
      %v3332 = vadd.f32 0.0, %v3331
      %v3333 = vpop.f32.mrf.mxu0
      %3334 = vmatprep.mubr.f32.mxu0 0.0
      %3335 = vmatmul.mubr.f32.gmra.mxu0 %v2703
      %v3336 = vpop.f32.mrf.mxu0
      %v3337 = vadd.f32 0.0, %v3336
      %v3338 = vpop.f32.mrf.mxu0
      %3339 = vmatprep.mubr.f32.mxu0 0.0
      %3340 = vmatmul.mubr.f32.gmra.mxu0 %v2706
      %v3341 = vpop.f32.mrf.mxu0
      %v3342 = vadd.f32 0.0, %v3341
      %v3343 = vpop.f32.mrf.mxu0
      %3344 = vmatprep.mubr.f32.mxu0 0.0
      %3345 = vmatmul.mubr.f32.gmra.mxu0 %v2709
      %v3346 = vpop.f32.mrf.mxu0
      %v3347 = vadd.f32 0.0, %v3346
      %v3348 = vpop.f32.mrf.mxu0
      %3349 = vmatprep.mubr.f32.mxu0 0.0
      %3350 = vmatmul.mubr.f32.gmra.mxu0 %v2712
      %v3351 = vpop.f32.mrf.mxu0
      %v3352 = vadd.f32 0.0, %v3351
      %v3353 = vpop.f32.mrf.mxu0
      %3354 = vmatprep.mubr.f32.mxu0 0.0
      %3355 = vmatmul.mubr.f32.gmra.mxu0 %v2715
      %v3356 = vpop.f32.mrf.mxu0
      %v3357 = vadd.f32 0.0, %v3356
      %v3358 = vpop.f32.mrf.mxu0
      %3359 = vmatprep.mubr.f32.mxu0 0.0
      %3360 = vmatmul.mubr.f32.gmra.mxu0 %v2718
      %v3361 = vpop.f32.mrf.mxu0
      %v3362 = vadd.f32 0.0, %v3361
      %v3363 = vpop.f32.mrf.mxu0
      %3364 = vmatprep.mubr.f32.mxu0 0.0
      %3365 = vmatmul.mubr.f32.gmra.mxu0 %v2721
      %v3366 = vpop.f32.mrf.mxu0
      %v3367 = vadd.f32 0.0, %v3366
      %v3368 = vpop.f32.mrf.mxu0
      %3369 = vmatprep.mubr.f32.mxu0 0.0
      %3370 = vmatmul.mubr.f32.gmra.mxu0 %v2724
      %v3371 = vpop.f32.mrf.mxu0
      %v3372 = vadd.f32 0.0, %v3371
      %v3373 = vpop.f32.mrf.mxu0
      %3374 = vmatprep.mubr.f32.mxu0 0.0
      %3375 = vmatmul.mubr.f32.gmra.mxu0 %v2727
      %v3376 = vpop.f32.mrf.mxu0
      %v3377 = vadd.f32 0.0, %v3376
      %v3378 = vpop.f32.mrf.mxu0
      %3379 = vmatprep.mubr.f32.mxu0 0.0
      %3380 = vmatmul.mubr.f32.gmra.mxu0 %v2730
      %v3381 = vpop.f32.mrf.mxu0
      %v3382 = vadd.f32 0.0, %v3381
      %v3383 = vpop.f32.mrf.mxu0
      %3384 = vmatprep.mubr.f32.mxu0 0.0
      %3385 = vmatmul.mubr.f32.gmra.mxu0 %v2733
      %v3386 = vpop.f32.mrf.mxu0
      %v3387 = vadd.f32 0.0, %v3386
      %v3388 = vpop.f32.mrf.mxu0
      %3389 = vmatprep.mubr.f32.mxu0 0.0
      %3390 = vmatmul.mubr.f32.gmra.mxu0 %v2736
      %v3391 = vpop.f32.mrf.mxu0
      %v3392 = vadd.f32 0.0, %v3391
      %v3393 = vpop.f32.mrf.mxu0
      %3394 = vmatprep.mubr.f32.mxu0 0.0
      %3395 = vmatmul.mubr.f32.gmra.mxu0 %v2739
      %v3396 = vpop.f32.mrf.mxu0
      %v3397 = vadd.f32 0.0, %v3396
      %v3398 = vpop.f32.mrf.mxu0
      %3399 = vmatprep.mubr.f32.mxu0 0.0
      %3400 = vmatmul.mubr.f32.gmra.mxu0 %v2742
      %v3401 = vpop.f32.mrf.mxu0
      %v3402 = vadd.f32 0.0, %v3401
      %v3403 = vpop.f32.mrf.mxu0
      %3404 = vmatprep.mubr.f32.mxu0 0.0
      %3405 = vmatmul.mubr.f32.gmra.mxu0 %v2745
      %v3406 = vpop.f32.mrf.mxu0
      %v3407 = vadd.f32 0.0, %v3406
      %v3408 = vpop.f32.mrf.mxu0
      %3409 = vmatprep.mubr.f32.mxu0 0.0
      %3410 = vmatmul.mubr.f32.gmra.mxu0 %v2748
      %v3411 = vpop.f32.mrf.mxu0
      %v3412 = vadd.f32 0.0, %v3411
      %v3413 = vpop.f32.mrf.mxu0
      %3414 = vmatprep.mubr.f32.mxu0 0.0
      %3415 = vmatmul.mubr.f32.gmra.mxu0 %v2751
      %v3416 = vpop.f32.mrf.mxu0
      %v3417 = vadd.f32 0.0, %v3416
      %v3418 = vpop.f32.mrf.mxu0
      %3419 = vmatprep.mubr.f32.mxu0 0.0
      %3420 = vmatmul.mubr.f32.gmra.mxu0 %v2754
      %v3421 = vpop.f32.mrf.mxu0
      %v3422 = vadd.f32 0.0, %v3421
      %v3423 = vpop.f32.mrf.mxu0
      %3424 = vmatprep.mubr.f32.mxu0 0.0
      %3425 = vmatmul.mubr.f32.gmra.mxu0 %v2757
      %v3426 = vpop.f32.mrf.mxu0
      %v3427 = vadd.f32 0.0, %v3426
      %v3428 = vpop.f32.mrf.mxu0
      %3429 = vmatprep.mubr.f32.mxu0 0.0
      %3430 = vmatmul.mubr.f32.gmra.mxu0 %v2760
      %v3431 = vpop.f32.mrf.mxu0
      %v3432 = vadd.f32 0.0, %v3431
      %v3433 = vpop.f32.mrf.mxu0
      %3434 = vmatprep.mubr.f32.mxu0 0.0
      %3435 = vmatmul.mubr.f32.gmra.mxu0 %v2763
      %v3436 = vpop.f32.mrf.mxu0
      %v3437 = vadd.f32 0.0, %v3436
      %v3438 = vpop.f32.mrf.mxu0
      %3439 = vmatprep.mubr.f32.mxu0 0.0
      %3440 = vmatmul.mubr.f32.gmra.mxu0 %v2766
      %v3441 = vpop.f32.mrf.mxu0
      %v3442 = vadd.f32 0.0, %v3441
      %v3443 = vpop.f32.mrf.mxu0
      %3444 = vmatprep.mubr.f32.mxu0 0.0
      %3445 = vmatmul.mubr.f32.gmra.mxu0 %v2769
      %v3446 = vpop.f32.mrf.mxu0
      %v3447 = vadd.f32 0.0, %v3446
      %v3448 = vpop.f32.mrf.mxu0
      %3449 = vmatprep.mubr.f32.mxu0 0.0
      %3450 = vmatmul.mubr.f32.gmra.mxu0 %v2772
      %v3451 = vpop.f32.mrf.mxu0
      %v3452 = vadd.f32 0.0, %v3451
      %v3453 = vpop.f32.mrf.mxu0
      %3454 = vmatprep.mubr.f32.mxu0 0.0
      %3455 = vmatmul.mubr.f32.gmra.mxu0 %v2775
      %v3456 = vpop.f32.mrf.mxu0
      %v3457 = vadd.f32 0.0, %v3456
      %v3458 = vpop.f32.mrf.mxu0
      %3459 = vmatprep.mubr.f32.mxu0 0.0
      %3460 = vmatmul.mubr.f32.gmra.mxu0 %v2778
      %v3461 = vpop.f32.mrf.mxu0
      %v3462 = vadd.f32 0.0, %v3461
      %v3463 = vpop.f32.mrf.mxu0
      %3464 = vmatprep.mubr.f32.mxu0 0.0
      %3465 = vmatmul.mubr.f32.gmra.mxu0 %v2781
      %v3466 = vpop.f32.mrf.mxu0
      %v3467 = vadd.f32 0.0, %v3466
      %v3468 = vpop.f32.mrf.mxu0
      %3469 = vmatprep.mubr.f32.mxu0 0.0
      %3470 = vmatmul.mubr.f32.gmra.mxu0 %v2784
      %v3471 = vpop.f32.mrf.mxu0
      %v3472 = vadd.f32 0.0, %v3471
      %v3473 = vpop.f32.mrf.mxu0
      %3474 = vmatprep.mubr.f32.mxu0 0.0
      %3475 = vmatmul.mubr.f32.gmra.mxu0 %v3252
      %v3476 = vpop.f32.mrf.mxu0
      %v3477 = vadd.f32 0.0, %v3476
      %v3478 = vpop.f32.mrf.mxu0
      %3479 = vmatprep.mubr.f32.mxu0 0.0
      %3480 = vmatmul.mubr.f32.gmra.mxu0 %v3255
      %v3481 = vpop.f32.mrf.mxu0
      %v3482 = vadd.f32 0.0, %v3481
      %v3483 = vpop.f32.mrf.mxu0
      %3484 = vdwg.mxu0
      %v3485 = vadd.f32 %v3090, %v3327
      %v3486 = vadd.f32 %v3095, %v3332
      %v3487 = vadd.f32 %v3100, %v3337
      %v3488 = vadd.f32 %v3105, %v3342
      %v3489 = vadd.f32 %v3110, %v3347
      %v3490 = vadd.f32 %v3115, %v3352
      %v3491 = vadd.f32 %v3120, %v3357
      %v3492 = vadd.f32 %v3125, %v3362
      %v3493 = vadd.f32 %v3130, %v3367
      %v3494 = vadd.f32 %v3135, %v3372
      %v3495 = vadd.f32 %v3140, %v3377
      %v3496 = vadd.f32 %v3145, %v3382
      %v3497 = vadd.f32 %v3150, %v3387
      %v3498 = vadd.f32 %v3155, %v3392
      %v3499 = vadd.f32 %v3160, %v3397
      %v3500 = vadd.f32 %v3165, %v3402
      %v3501 = vadd.f32 %v3170, %v3407
      %v3502 = vadd.f32 %v3175, %v3412
      %v3503 = vadd.f32 %v3180, %v3417
      %v3504 = vadd.f32 %v3185, %v3422
      %v3505 = vadd.f32 %v3190, %v3427
      %v3506 = vadd.f32 %v3195, %v3432
      %v3507 = vadd.f32 %v3200, %v3437
      %v3508 = vadd.f32 %v3205, %v3442
      %v3509 = vadd.f32 %v3210, %v3447
      %v3510 = vadd.f32 %v3215, %v3452
      %v3511 = vadd.f32 %v3220, %v3457
      %v3512 = vadd.f32 %v3225, %v3462
      %v3513 = vadd.f32 %v3230, %v3467
      %v3514 = vadd.f32 %v3235, %v3472
      %v3515 = vadd.f32 %v3240, %v3477
      %v3516 = vadd.f32 %v3245, %v3482
      %v3517 = vsel %vm204, %v3485, 0.0
      %v3518 = vsel %vm204, %v3486, 0.0
      %v3519 = vadd.f32 %v3517, %v3518
      %v3520 = vsel %vm204, %v3487, 0.0
      %v3521 = vadd.f32 %v3519, %v3520
      %v3522 = vsel %vm204, %v3488, 0.0
      %v3523 = vadd.f32 %v3521, %v3522
      %v3524 = vsel %vm204, %v3489, 0.0
      %v3525 = vadd.f32 %v3523, %v3524
      %v3526 = vsel %vm204, %v3490, 0.0
      %v3527 = vadd.f32 %v3525, %v3526
      %v3528 = vsel %vm204, %v3491, 0.0
      %v3529 = vadd.f32 %v3527, %v3528
      %v3530 = vsel %vm204, %v3492, 0.0
      %v3531 = vadd.f32 %v3529, %v3530
      %v3532 = vsel %vm204, %v3493, 0.0
      %v3533 = vadd.f32 %v3531, %v3532
      %v3534 = vsel %vm204, %v3494, 0.0
      %v3535 = vadd.f32 %v3533, %v3534
      %v3536 = vsel %vm204, %v3495, 0.0
      %v3537 = vadd.f32 %v3535, %v3536
      %v3538 = vsel %vm204, %v3496, 0.0
      %v3539 = vadd.f32 %v3537, %v3538
      %v3540 = vsel %vm204, %v3497, 0.0
      %v3541 = vadd.f32 %v3539, %v3540
      %v3542 = vsel %vm204, %v3498, 0.0
      %v3543 = vadd.f32 %v3541, %v3542
      %v3544 = vsel %vm204, %v3499, 0.0
      %v3545 = vadd.f32 %v3543, %v3544
      %v3546 = vsel %vm204, %v3500, 0.0
      %v3547 = vadd.f32 %v3545, %v3546
      %v3548 = vsel %vm204, %v3501, 0.0
      %v3549 = vadd.f32 %v3547, %v3548
      %v3550 = vsel %vm204, %v3502, 0.0
      %v3551 = vadd.f32 %v3549, %v3550
      %v3552 = vsel %vm204, %v3503, 0.0
      %v3553 = vadd.f32 %v3551, %v3552
      %v3554 = vsel %vm204, %v3504, 0.0
      %v3555 = vadd.f32 %v3553, %v3554
      %v3556 = vsel %vm204, %v3505, 0.0
      %v3557 = vadd.f32 %v3555, %v3556
      %v3558 = vsel %vm204, %v3506, 0.0
      %v3559 = vadd.f32 %v3557, %v3558
      %v3560 = vsel %vm204, %v3507, 0.0
      %v3561 = vadd.f32 %v3559, %v3560
      %v3562 = vsel %vm204, %v3508, 0.0
      %v3563 = vadd.f32 %v3561, %v3562
      %v3564 = vsel %vm204, %v3509, 0.0
      %v3565 = vadd.f32 %v3563, %v3564
      %v3566 = vsel %vm204, %v3510, 0.0
      %v3567 = vadd.f32 %v3565, %v3566
      %v3568 = vsel %vm204, %v3511, 0.0
      %v3569 = vadd.f32 %v3567, %v3568
      %v3570 = vsel %vm204, %v3512, 0.0
      %v3571 = vadd.f32 %v3569, %v3570
      %v3572 = vsel %vm204, %v3513, 0.0
      %v3573 = vadd.f32 %v3571, %v3572
      %v3574 = vsel %vm204, %v3514, 0.0
      %v3575 = vadd.f32 %v3573, %v3574
      %v3576 = vsel %vm204, %v3515, 0.0
      %v3577 = vadd.f32 %v3575, %v3576
      %v3578 = vsel %vm204, %v3516, 0.0
      %v3579 = vadd.f32 %v3577, %v3578
      %v3580 = vrot.slane %v3579, 4
      %v3581 = vadd.f32 %v3579, %v3580
      %v3582 = vrot.slane %v3581, 2
      %v3583 = vadd.f32 %v3581, %v3582
      %v3584 = vrot.slane %v3583, 1
      %v3585 = vadd.f32 %v3583, %v3584
      %v3586 = vmul.f32 %v3485, %v3485
      %v3587 = vmul.f32 %v3486, %v3486
      %v3588 = vmul.f32 %v3487, %v3487
      %v3589 = vmul.f32 %v3488, %v3488
      %v3590 = vmul.f32 %v3489, %v3489
      %v3591 = vmul.f32 %v3490, %v3490
      %v3592 = vmul.f32 %v3491, %v3491
      %v3593 = vmul.f32 %v3492, %v3492
      %v3594 = vmul.f32 %v3493, %v3493
      %v3595 = vmul.f32 %v3494, %v3494
      %v3596 = vmul.f32 %v3495, %v3495
      %v3597 = vmul.f32 %v3496, %v3496
      %v3598 = vmul.f32 %v3497, %v3497
      %v3599 = vmul.f32 %v3498, %v3498
      %v3600 = vmul.f32 %v3499, %v3499
      %v3601 = vmul.f32 %v3500, %v3500
      %v3602 = vmul.f32 %v3501, %v3501
      %v3603 = vmul.f32 %v3502, %v3502
      %v3604 = vmul.f32 %v3503, %v3503
      %v3605 = vmul.f32 %v3504, %v3504
      %v3606 = vmul.f32 %v3505, %v3505
      %v3607 = vmul.f32 %v3506, %v3506
      %v3608 = vmul.f32 %v3507, %v3507
      %v3609 = vmul.f32 %v3508, %v3508
      %v3610 = vmul.f32 %v3509, %v3509
      %v3611 = vmul.f32 %v3510, %v3510
      %v3612 = vmul.f32 %v3511, %v3511
      %v3613 = vmul.f32 %v3512, %v3512
      %v3614 = vmul.f32 %v3513, %v3513
      %v3615 = vmul.f32 %v3514, %v3514
      %v3616 = vmul.f32 %v3515, %v3515
      %v3617 = vmul.f32 %v3516, %v3516
      %v3618 = vsel %vm204, %v3586, 0.0
      %v3619 = vsel %vm204, %v3587, 0.0
      %v3620 = vadd.f32 %v3618, %v3619
      %v3621 = vsel %vm204, %v3588, 0.0
      %v3622 = vadd.f32 %v3620, %v3621
      %v3623 = vsel %vm204, %v3589, 0.0
      %v3624 = vadd.f32 %v3622, %v3623
      %v3625 = vsel %vm204, %v3590, 0.0
      %v3626 = vadd.f32 %v3624, %v3625
      %v3627 = vsel %vm204, %v3591, 0.0
      %v3628 = vadd.f32 %v3626, %v3627
      %v3629 = vsel %vm204, %v3592, 0.0
      %v3630 = vadd.f32 %v3628, %v3629
      %v3631 = vsel %vm204, %v3593, 0.0
      %v3632 = vadd.f32 %v3630, %v3631
      %v3633 = vsel %vm204, %v3594, 0.0
      %v3634 = vadd.f32 %v3632, %v3633
      %v3635 = vsel %vm204, %v3595, 0.0
      %v3636 = vadd.f32 %v3634, %v3635
      %v3637 = vsel %vm204, %v3596, 0.0
      %v3638 = vadd.f32 %v3636, %v3637
      %v3639 = vsel %vm204, %v3597, 0.0
      %v3640 = vadd.f32 %v3638, %v3639
      %v3641 = vsel %vm204, %v3598, 0.0
      %v3642 = vadd.f32 %v3640, %v3641
      %v3643 = vsel %vm204, %v3599, 0.0
      %v3644 = vadd.f32 %v3642, %v3643
      %v3645 = vsel %vm204, %v3600, 0.0
      %v3646 = vadd.f32 %v3644, %v3645
      %v3647 = vsel %vm204, %v3601, 0.0
      %v3648 = vadd.f32 %v3646, %v3647
      %v3649 = vsel %vm204, %v3602, 0.0
      %v3650 = vadd.f32 %v3648, %v3649
      %v3651 = vsel %vm204, %v3603, 0.0
      %v3652 = vadd.f32 %v3650, %v3651
      %v3653 = vsel %vm204, %v3604, 0.0
      %v3654 = vadd.f32 %v3652, %v3653
      %v3655 = vsel %vm204, %v3605, 0.0
      %v3656 = vadd.f32 %v3654, %v3655
      %v3657 = vsel %vm204, %v3606, 0.0
      %v3658 = vadd.f32 %v3656, %v3657
      %v3659 = vsel %vm204, %v3607, 0.0
      %v3660 = vadd.f32 %v3658, %v3659
      %v3661 = vsel %vm204, %v3608, 0.0
      %v3662 = vadd.f32 %v3660, %v3661
      %v3663 = vsel %vm204, %v3609, 0.0
      %v3664 = vadd.f32 %v3662, %v3663
      %v3665 = vsel %vm204, %v3610, 0.0
      %v3666 = vadd.f32 %v3664, %v3665
      %v3667 = vsel %vm204, %v3611, 0.0
      %v3668 = vadd.f32 %v3666, %v3667
      %v3669 = vsel %vm204, %v3612, 0.0
      %v3670 = vadd.f32 %v3668, %v3669
      %v3671 = vsel %vm204, %v3613, 0.0
      %v3672 = vadd.f32 %v3670, %v3671
      %v3673 = vsel %vm204, %v3614, 0.0
      %v3674 = vadd.f32 %v3672, %v3673
      %v3675 = vsel %vm204, %v3615, 0.0
      %v3676 = vadd.f32 %v3674, %v3675
      %v3677 = vsel %vm204, %v3616, 0.0
      %v3678 = vadd.f32 %v3676, %v3677
      %v3679 = vsel %vm204, %v3617, 0.0
      %v3680 = vadd.f32 %v3678, %v3679
      %v3681 = vrot.slane %v3680, 4
      %v3682 = vadd.f32 %v3680, %v3681
      %v3683 = vrot.slane %v3682, 2
      %v3684 = vadd.f32 %v3682, %v3683
      %v3685 = vrot.slane %v3684, 1
      %v3686 = vadd.f32 %v3684, %v3685
      %v3687 = vmul.f32 %v3585, 0.00390625
      %v3688 = vmul.f32 %v3686, 0.00390625
      %v3689 = vmul.f32 %v3687, %v3687
      %v3690 = vsub.f32 %v3688, %v3689
      %v3691 = vmax.f32 %v3690, 0.0
      %v3692 = vsub.f32 %v3485, %v3687
      %v3693 = vsub.f32 %v3486, %v3687
      %v3694 = vsub.f32 %v3487, %v3687
      %v3695 = vsub.f32 %v3488, %v3687
      %v3696 = vsub.f32 %v3489, %v3687
      %v3697 = vsub.f32 %v3490, %v3687
      %v3698 = vsub.f32 %v3491, %v3687
      %v3699 = vsub.f32 %v3492, %v3687
      %v3700 = vsub.f32 %v3493, %v3687
      %v3701 = vsub.f32 %v3494, %v3687
      %v3702 = vsub.f32 %v3495, %v3687
      %v3703 = vsub.f32 %v3496, %v3687
      %v3704 = vsub.f32 %v3497, %v3687
      %v3705 = vsub.f32 %v3498, %v3687
      %v3706 = vsub.f32 %v3499, %v3687
      %v3707 = vsub.f32 %v3500, %v3687
      %v3708 = vsub.f32 %v3501, %v3687
      %v3709 = vsub.f32 %v3502, %v3687
      %v3710 = vsub.f32 %v3503, %v3687
      %v3711 = vsub.f32 %v3504, %v3687
      %v3712 = vsub.f32 %v3505, %v3687
      %v3713 = vsub.f32 %v3506, %v3687
      %v3714 = vsub.f32 %v3507, %v3687
      %v3715 = vsub.f32 %v3508, %v3687
      %v3716 = vsub.f32 %v3509, %v3687
      %v3717 = vsub.f32 %v3510, %v3687
      %v3718 = vsub.f32 %v3511, %v3687
      %v3719 = vsub.f32 %v3512, %v3687
      %v3720 = vsub.f32 %v3513, %v3687
      %v3721 = vsub.f32 %v3514, %v3687
      %v3722 = vsub.f32 %v3515, %v3687
      %v3723 = vsub.f32 %v3516, %v3687
      %v3724 = vadd.f32 %v3691, 1e-05
      %v3725 = vrsqrt.pop %v3724
      %v3726 = vmul.f32 %v3692, %v3725
      %v3727 = vmul.f32 %v3693, %v3725
      %v3728 = vmul.f32 %v3694, %v3725
      %v3729 = vmul.f32 %v3695, %v3725
      %v3730 = vmul.f32 %v3696, %v3725
      %v3731 = vmul.f32 %v3697, %v3725
      %v3732 = vmul.f32 %v3698, %v3725
      %v3733 = vmul.f32 %v3699, %v3725
      %v3734 = vmul.f32 %v3700, %v3725
      %v3735 = vmul.f32 %v3701, %v3725
      %v3736 = vmul.f32 %v3702, %v3725
      %v3737 = vmul.f32 %v3703, %v3725
      %v3738 = vmul.f32 %v3704, %v3725
      %v3739 = vmul.f32 %v3705, %v3725
      %v3740 = vmul.f32 %v3706, %v3725
      %v3741 = vmul.f32 %v3707, %v3725
      %v3742 = vmul.f32 %v3708, %v3725
      %v3743 = vmul.f32 %v3709, %v3725
      %v3744 = vmul.f32 %v3710, %v3725
      %v3745 = vmul.f32 %v3711, %v3725
      %v3746 = vmul.f32 %v3712, %v3725
      %v3747 = vmul.f32 %v3713, %v3725
      %v3748 = vmul.f32 %v3714, %v3725
      %v3749 = vmul.f32 %v3715, %v3725
      %v3750 = vmul.f32 %v3716, %v3725
      %v3751 = vmul.f32 %v3717, %v3725
      %v3752 = vmul.f32 %v3718, %v3725
      %v3753 = vmul.f32 %v3719, %v3725
      %v3754 = vmul.f32 %v3720, %v3725
      %v3755 = vmul.f32 %v3721, %v3725
      %v3756 = vmul.f32 %v3722, %v3725
      %v3757 = vmul.f32 %v3723, %v3725
      %v3758 = vadd.f32 %v171, %v3726
      %v3759 = vadd.f32 %v172, %v3727
      %v3760 = vadd.f32 %v173, %v3728
      %v3761 = vadd.f32 %v174, %v3729
      %v3762 = vadd.f32 %v175, %v3730
      %v3763 = vadd.f32 %v176, %v3731
      %v3764 = vadd.f32 %v177, %v3732
      %v3765 = vadd.f32 %v178, %v3733
      %v3766 = vadd.f32 %v179, %v3734
      %v3767 = vadd.f32 %v180, %v3735
      %v3768 = vadd.f32 %v181, %v3736
      %v3769 = vadd.f32 %v182, %v3737
      %v3770 = vadd.f32 %v183, %v3738
      %v3771 = vadd.f32 %v184, %v3739
      %v3772 = vadd.f32 %v185, %v3740
      %v3773 = vadd.f32 %v186, %v3741
      %v3774 = vadd.f32 %v187, %v3742
      %v3775 = vadd.f32 %v188, %v3743
      %v3776 = vadd.f32 %v189, %v3744
      %v3777 = vadd.f32 %v190, %v3745
      %v3778 = vadd.f32 %v191, %v3746
      %v3779 = vadd.f32 %v192, %v3747
      %v3780 = vadd.f32 %v193, %v3748
      %v3781 = vadd.f32 %v194, %v3749
      %v3782 = vadd.f32 %v195, %v3750
      %v3783 = vadd.f32 %v196, %v3751
      %v3784 = vadd.f32 %v197, %v3752
      %v3785 = vadd.f32 %v198, %v3753
      %v3786 = vadd.f32 %v199, %v3754
      %v3787 = vadd.f32 %v200, %v3755
      %v3788 = vadd.f32 %v201, %v3756
      %v3789 = vadd.f32 %v202, %v3757
      %3790 = vst.msk [vmem:[%s170] sm:$0xff] %vm204, %v3758
      %3791 = vst.msk [vmem:[%s170 + $0x8] sm:$0xff] %vm204, %v3759
      %3792 = vst.msk [vmem:[%s170 + $0x10] sm:$0xff] %vm204, %v3760
      %3793 = vst.msk [vmem:[%s170 + $0x18] sm:$0xff] %vm204, %v3761
      %3794 = vst.msk [vmem:[%s170 + $0x20] sm:$0xff] %vm204, %v3762
      %3795 = vst.msk [vmem:[%s170 + $0x28] sm:$0xff] %vm204, %v3763
      %3796 = vst.msk [vmem:[%s170 + $0x30] sm:$0xff] %vm204, %v3764
      %3797 = vst.msk [vmem:[%s170 + $0x38] sm:$0xff] %vm204, %v3765
      %3798 = vst.msk [vmem:[%s170 + $0x40] sm:$0xff] %vm204, %v3766
      %3799 = vst.msk [vmem:[%s170 + $0x48] sm:$0xff] %vm204, %v3767
      %3800 = vst.msk [vmem:[%s170 + $0x50] sm:$0xff] %vm204, %v3768
      %3801 = vst.msk [vmem:[%s170 + $0x58] sm:$0xff] %vm204, %v3769
      %3802 = vst.msk [vmem:[%s170 + $0x60] sm:$0xff] %vm204, %v3770
      %3803 = vst.msk [vmem:[%s170 + $0x68] sm:$0xff] %vm204, %v3771
      %3804 = vst.msk [vmem:[%s170 + $0x70] sm:$0xff] %vm204, %v3772
      %3805 = vst.msk [vmem:[%s170 + $0x78] sm:$0xff] %vm204, %v3773
      %3806 = vst.msk [vmem:[%s170 + $0x80] sm:$0xff] %vm204, %v3774
      %3807 = vst.msk [vmem:[%s170 + $0x88] sm:$0xff] %vm204, %v3775
      %3808 = vst.msk [vmem:[%s170 + $0x90] sm:$0xff] %vm204, %v3776
      %3809 = vst.msk [vmem:[%s170 + $0x98] sm:$0xff] %vm204, %v3777
      %3810 = vst.msk [vmem:[%s170 + $0xa0] sm:$0xff] %vm204, %v3778
      %3811 = vst.msk [vmem:[%s170 + $0xa8] sm:$0xff] %vm204, %v3779
      %3812 = vst.msk [vmem:[%s170 + $0xb0] sm:$0xff] %vm204, %v3780
      %3813 = vst.msk [vmem:[%s170 + $0xb8] sm:$0xff] %vm204, %v3781
      %3814 = vst.msk [vmem:[%s170 + $0xc0] sm:$0xff] %vm204, %v3782
      %3815 = vst.msk [vmem:[%s170 + $0xc8] sm:$0xff] %vm204, %v3783
      %3816 = vst.msk [vmem:[%s170 + $0xd0] sm:$0xff] %vm204, %v3784
      %3817 = vst.msk [vmem:[%s170 + $0xd8] sm:$0xff] %vm204, %v3785
      %3818 = vst.msk [vmem:[%s170 + $0xe0] sm:$0xff] %vm204, %v3786
      %3819 = vst.msk [vmem:[%s170 + $0xe8] sm:$0xff] %vm204, %v3787
      %3820 = vst.msk [vmem:[%s170 + $0xf0] sm:$0xff] %vm204, %v3788
      %3821 = vst.msk [vmem:[%s170 + $0xf8] sm:$0xff] %vm204, %v3789
      %p3822 = scmp.lt.s32.totalorder %s14, 1
      %s3823 = scalar_select %p3822, %s14, 1
      %s3824 = smul.addr %s3823, 32
      %s3825 = smul.addr %s3824, 8
      %s3826 = scalar_lea.vmem %s3, %s3825
      // Predicated region
      $region33: #{residual_block.1} parent=31 // pred_check
        %p3827 = pneg %p100
      $region34: #{residual_block.1} parent=31 // pred_check_branch
        %3829 = sbr.rel (%p3827) target = $region36
      $region35: #{residual_block.1} parent=31 // pred_region
        _
      $region36: #{residual_block.1} parent=31 // pred_fallthru
        _
    $region32: #{residual_block.1} parent=5 // pred_fallthru
      _
    %p3830 = scmp.le.s32.totalorder 2, %s9
    // Predicated region
    $region37: #{residual_block.1} parent=5 // pred_check
      %p3831 = pneg %p3830
    $region38: #{residual_block.1} parent=5 // pred_check_branch
      %3833 = sbr.rel (%p3831) target = $region40
    $region39: #{residual_block.1} parent=5 // pred_region
      %s3834 = ssub.s32 %s9, 2
      // Predicated region
      $region41: #{residual_block.1} parent=39 // pred_check
        %p3835 = pneg %p106
      $region42: #{residual_block.1} parent=39 // pred_check_branch
        %3837 = sbr.rel (%p3835) target = $region44
      $region43: #{residual_block.1} parent=39 // pred_region
        %p3838 = scmp.lt.s32.totalorder %s15, 1
        %s3839 = scalar_select %p3838, %s15, 1
        %s3840 = smul.addr %s3839, 32
        %s3841 = smul.addr %s3840, 8
        %s3842 = scalar_lea.vmem %s3, %s3841
      $region44: #{residual_block.1} parent=39 // pred_fallthru
        _
    $region40: #{residual_block.1} parent=5 // pred_fallthru
      _
  $region6: #{residual_block.1} parent=0 // loop_footer
    %s13 = sadd.s32 1, %s9
  $region7: #{residual_block.1} parent=0 // loop_footer_branch
    %8 = sbr.rel target = $region3
  $region8: #{residual_block.1} parent=0 // loop_exit
    _

</llo_original>
